<compile_context>
chip_gen: v5e
topology: v5e:2x2
jax: 0.10.0
libtpu: 0.0.40
codegen_flags: <defaults>
</compile_context>

<pallas_src>
import functools

import jax
import jax.numpy as jnp
from jax.experimental import pallas as pl
from jax.experimental.pallas import tpu as pltpu

BN_EPS = 1e-5
LANE = 128
VMEM_LIMIT_BYTES = 48 * 1024 * 1024  # v7x-safe scoped-VMEM budget (64 MiB phys)


def _round_up(x, m):
    return ((x + m - 1) // m) * m


# -----------------------------------------------------------------------------
# Pass 1: conv (one im2col MXU matmul per row tile) + per-image BN sum / sumsq.
# -----------------------------------------------------------------------------
def _conv_stats_kernel(x_ref, w_ref, y_ref, stats_ref, *, th, ksize, pad, out_w):
    """grid = (N, H // th); axis 0 'parallel' (per image), axis 1 'arbitrary'.

    x_ref     : (1, H+2p, W+2p, Cin)   padded image, bf16 (resident across j)
    w_ref     : (ksize*ksize*Cin, Cp)  packed conv weights, bf16
    y_ref     : (1, th, W, Cp)         raw conv output tile, f32 (pre-BN)
    stats_ref : (1, 2, Cp)             per-image running [sum, sumsq] (revisited)
    """
    j = pl.program_id(1)
    halo = th + 2 * pad
    r0 = pl.multiple_of(j * th, th)

    xt = x_ref[0, pl.ds(r0, halo), :, :]                     # (th+2p, W+2p, Cin)

    # im2col: fold every (dh, dw) tap into the contraction dim -> one matmul
    # with K = ksize*ksize*Cin instead of ksize*ksize tiny-K matmuls.
    taps = []
    for dh in range(ksize):
        for dw in range(ksize):
            taps.append(xt[dh:dh + th, dw:dw + out_w, :])    # (th, W, Cin)
    patches = jnp.concatenate(taps, axis=-1)                 # (th, W, K)
    patches = patches.reshape(th * out_w, patches.shape[-1])

    acc = jnp.dot(patches, w_ref[...],                       # bf16 x bf16
                  preferred_element_type=jnp.float32)        # (th*W, Cp) f32

    # NOTE: the conv bias is intentionally dropped -- it is exactly cancelled
    # by the train-mode BatchNorm mean subtraction in pass 2.
    y_ref[0, :, :, :] = acc.reshape(th, out_w, acc.shape[-1]).astype(y_ref.dtype)

    tile_sum = jnp.sum(acc, axis=0, keepdims=True)           # (1, Cp)
    tile_sq = jnp.sum(acc * acc, axis=0, keepdims=True)      # (1, Cp)
    tile_stats = jnp.concatenate([tile_sum, tile_sq], axis=0)  # (2, Cp)

    @pl.when(j == 0)
    def _init():
        stats_ref[0, :, :] = tile_stats

    @pl.when(j > 0)
    def _accumulate():
        stats_ref[0, :, :] = stats_ref[0, :, :] + tile_stats


def _conv_stats(x_pad, w2d, *, out_h, out_w, th, ksize, pad):
    n = x_pad.shape[0]
    cin = x_pad.shape[-1]
    k_dim, cp = w2d.shape
    hp, wp = out_h + 2 * pad, out_w + 2 * pad
    nt = out_h // th

    kernel = functools.partial(_conv_stats_kernel,
                               th=th, ksize=ksize, pad=pad, out_w=out_w)
    flops = 2 * n * out_h * out_w * k_dim * cp
    bytes_accessed = (x_pad.size * x_pad.dtype.itemsize
                      + w2d.size * w2d.dtype.itemsize
                      + n * out_h * out_w * cp * 4
                      + n * 2 * cp * 4)
    return pl.pallas_call(
        kernel,
        grid=(n, nt),
        in_specs=[
            pl.BlockSpec((1, hp, wp, cin), lambda i, j: (i, 0, 0, 0)),
            pl.BlockSpec((k_dim, cp), lambda i, j: (0, 0)),
        ],
        out_specs=[
            pl.BlockSpec((1, th, out_w, cp), lambda i, j: (i, j, 0, 0)),
            pl.BlockSpec((1, 2, cp), lambda i, j: (i, 0, 0)),
        ],
        out_shape=[
            jax.ShapeDtypeStruct((n, out_h, out_w, cp), jnp.float32),
            jax.ShapeDtypeStruct((n, 2, cp), jnp.float32),
        ],
        compiler_params=pltpu.CompilerParams(
            dimension_semantics=("parallel", "arbitrary"),
            vmem_limit_bytes=VMEM_LIMIT_BYTES),
        cost_estimate=pl.CostEstimate(flops=flops, transcendentals=0,
                                      bytes_accessed=bytes_accessed),
    )(x_pad, w2d)


# -----------------------------------------------------------------------------
# Pass 2: finalize BN stats (mean / var from sum & sumsq) + affine + ReLU.
# -----------------------------------------------------------------------------
def _bn_relu_kernel(y_ref, stats_ref, g_ref, b_ref, o_ref, *, inv_count, eps):
    """grid = (N, H // th); both axes 'parallel'.

    y_ref     : (1, th, W, Cp)  raw conv tile, f32
    stats_ref : (2, Cp)         global [sum, sumsq] over (N, H, W)
    g_ref     : (1, Cp)         BN gamma (zero in padded channels)
    b_ref     : (1, Cp)         BN beta  (zero in padded channels)
    o_ref     : (1, th, W, Cp)  activation output
    """
    mean = stats_ref[0:1, :] * inv_count                         # (1, Cp)
    var = jnp.maximum(stats_ref[1:2, :] * inv_count - mean * mean, 0.0)
    scale = g_ref[...] * jax.lax.rsqrt(var + eps)                # (1, Cp)
    shift = b_ref[...] - mean * scale                            # (1, Cp)

    y = y_ref[...].astype(jnp.float32)                           # (1, th, W, Cp)
    o_ref[...] = jnp.maximum(y * scale + shift, 0.0).astype(o_ref.dtype)


def _bn_relu(y, stats_sum, gamma, beta, *, count, th, out_dtype):
    n, h, w, cp = y.shape
    kernel = functools.partial(_bn_relu_kernel, inv_count=1.0 / count, eps=BN_EPS)
    bytes_accessed = (y.size * y.dtype.itemsize
                      + n * h * w * cp * jnp.dtype(out_dtype).itemsize
                      + 4 * cp * 4)
    return pl.pallas_call(
        kernel,
        grid=(n, h // th),
        in_specs=[
            pl.BlockSpec((1, th, w, cp), lambda i, j: (i, j, 0, 0)),
            pl.BlockSpec((2, cp), lambda i, j: (0, 0)),
            pl.BlockSpec((1, cp), lambda i, j: (0, 0)),
            pl.BlockSpec((1, cp), lambda i, j: (0, 0)),
        ],
        out_specs=pl.BlockSpec((1, th, w, cp), lambda i, j: (i, j, 0, 0)),
        out_shape=jax.ShapeDtypeStruct((n, h, w, cp), out_dtype),
        compiler_params=pltpu.CompilerParams(
            dimension_semantics=("parallel", "parallel"),
            vmem_limit_bytes=VMEM_LIMIT_BYTES),
        cost_estimate=pl.CostEstimate(flops=3 * n * h * w * cp,
                                      transcendentals=cp * n * (h // th),
                                      bytes_accessed=bytes_accessed),
    )(y, stats_sum, gamma, beta)


# -----------------------------------------------------------------------------
# Host-side packing (layout plumbing only).
# -----------------------------------------------------------------------------
def _pack_weights(w_hwio, cin_pad, cout_pad):
    """(KH, KW, Cin, Cout) -> zero-padded (KH*KW*cin_pad, cout_pad), bf16."""
    kh, kw, cin, cout = w_hwio.shape
    w = jnp.zeros((kh, kw, cin_pad, cout_pad), jnp.float32)
    w = w.at[:, :, :cin, :cout].set(w_hwio)
    return w.reshape(kh * kw * cin_pad, cout_pad).astype(jnp.bfloat16)


def _pack_channel(v, cout_pad):
    """(1, Cout) -> zero-padded (1, cout_pad), f32."""
    return jnp.zeros((1, cout_pad), jnp.float32).at[:, :v.shape[-1]].set(v)


@functools.partial(jax.jit, static_argnames=("kernel_size",))
def double_conv(x_nchw, params, kernel_size):
    """Forward pass equivalent to DoubleConv(in_ch, out_ch, kernel_size)."""
    pad = (kernel_size - 1) // 2
    n, in_ch, h, w = x_nchw.shape
    out_ch = params["w1"].shape[-1]
    cp = _round_up(out_ch, LANE)          # lane-dense channel padding
    th = 8 if h % 8 == 0 else h           # row-tile height (th * W rows per matmul)
    count = n * h * w

    # NCHW -> NHWC, bf16 activations (MXU operands); spatial zero-pad in wrapper.
    x = jnp.transpose(x_nchw, (0, 2, 3, 1)).astype(jnp.bfloat16)
    xp = jnp.pad(x, ((0, 0), (pad, pad), (pad, pad), (0, 0)))

    # ---- stage 1: conv1 + stats, then BN1 + ReLU (bf16 intermediate) --------
    w1 = _pack_weights(params["w1"], in_ch, cp)
    g1 = _pack_channel(params["g1"], cp)
    beta1 = _pack_channel(params["beta1"], cp)
    y1, s1 = _conv_stats(xp, w1, out_h=h, out_w=w, th=th, ksize=kernel_size, pad=pad)
    a1 = _bn_relu(y1, jnp.sum(s1, axis=0), g1, beta1,
                  count=count, th=th, out_dtype=jnp.bfloat16)

    # ---- stage 2: conv2 + stats, then BN2 + ReLU (f32 output) ---------------
    a1p = jnp.pad(a1, ((0, 0), (pad, pad), (pad, pad), (0, 0)))
    w2 = _pack_weights(params["w2"], cp, cp)
    g2 = _pack_channel(params["g2"], cp)
    beta2 = _pack_channel(params["beta2"], cp)
    y2, s2 = _conv_stats(a1p, w2, out_h=h, out_w=w, th=th, ksize=kernel_size, pad=pad)
    a2 = _bn_relu(y2, jnp.sum(s2, axis=0), g2, beta2,
                  count=count, th=th, out_dtype=jnp.float32)

    out = a2[..., :out_ch]                # drop padded channels
    return jnp.transpose(out, (0, 3, 1, 2))  # NHWC -> NCHW


# -----------------------------------------------------------------------------
# Parameter init (shapes match nn.Conv2d / nn.BatchNorm2d) and f32 reference.
# -----------------------------------------------------------------------------
def init_params(key, in_ch, out_ch, kernel_size):
    k1, k2, k3, k4 = jax.random.split(key, 4)
    fan1 = in_ch * kernel_size * kernel_size
    fan2 = out_ch * kernel_size * kernel_size
    # Conv weights stored as HWIO; PyTorch OIHW maps via transpose(w, (2,3,1,0)).
    w1 = jax.random.normal(k1, (kernel_size, kernel_size, in_ch, out_ch),
                           jnp.float32) * jnp.sqrt(2.0 / fan1)
    b1 = jax.random.normal(k2, (1, out_ch), jnp.float32) * 0.05
    w2 = jax.random.normal(k3, (kernel_size, kernel_size, out_ch, out_ch),
                           jnp.float32) * jnp.sqrt(2.0 / fan2)
    b2 = jax.random.normal(k4, (1, out_ch), jnp.float32) * 0.05
    return {
        "w1": w1, "b1": b1,
        "g1": jnp.ones((1, out_ch), jnp.float32),
        "beta1": jnp.zeros((1, out_ch), jnp.float32),
        "w2": w2, "b2": b2,
        "g2": jnp.ones((1, out_ch), jnp.float32),
        "beta2": jnp.zeros((1, out_ch), jnp.float32),
    }


def _ref_stage(x_nhwc, w, b, g, beta):
    y = jax.lax.conv_general_dilated(
        x_nhwc, w, window_strides=(1, 1), padding="SAME",
        dimension_numbers=("NHWC", "HWIO", "NHWC")) + b
    mean = y.mean(axis=(0, 1, 2), keepdims=True)
    var = jnp.square(y - mean).mean(axis=(0, 1, 2), keepdims=True)
    y = (y - mean) * jax.lax.rsqrt(var + BN_EPS) * g + beta
    return jnp.maximum(y, 0.0)


def double_conv_reference(x_nchw, params):
    x = jnp.transpose(x_nchw, (0, 2, 3, 1))
    y = _ref_stage(x, params["w1"], params["b1"], params["g1"], params["beta1"])
    y = _ref_stage(y, params["w2"], params["b2"], params["g2"], params["beta2"])
    return jnp.transpose(y, (0, 3, 1, 2))


if __name__ == "__main__":
    in_ch, out_ch, kernel_size = 4, 8, 3
    N, H, W = 2, 16, 16

    key = jax.random.PRNGKey(0)
    kx, kp = jax.random.split(key)
    x = jax.random.normal(kx, (N, in_ch, H, W), jnp.float32)
    params = init_params(kp, in_ch, out_ch, kernel_size)

    out = jax.block_until_ready(double_conv(x, params, kernel_size))
    ref = jax.block_until_ready(double_conv_reference(x, params))

    assert out.shape == (N, out_ch, H, W), out.shape
    # Tolerance accounts for bf16 MXU operands / bf16 intermediate activation
    # versus the all-f32 reference (BN stats & normalization stay f32).
    assert jnp.allclose(out, ref, atol=5e-2, rtol=5e-2), float(
        jnp.max(jnp.abs(out - ref)))

    print("KERNEL_OK")
</pallas_src>

<mosaic_0001>
module attributes {stable_mosaic.version = 11 : i64} {
  func.func @_bn_relu_kernel(%arg0: i32, %arg1: i32, %arg2: memref<1x8x16x128xf32, #tpu.memory_space<vmem>>, %arg3: memref<2x128xf32, #tpu.memory_space<vmem>>, %arg4: memref<1x128xf32, #tpu.memory_space<vmem>>, %arg5: memref<1x128xf32, #tpu.memory_space<vmem>>, %arg6: memref<1x8x16x128xf32, #tpu.memory_space<vmem>>) attributes {dimension_semantics = [#tpu.dimension_semantics<parallel>, #tpu.dimension_semantics<parallel>], iteration_bounds = array<i64: 2, 2>, scalar_prefetch = 0 : i64, scratch_operands = 0 : i64, tpu.core_type = #tpu.core_type<tc>, window_params = [{transform_indices = @transform_0, window_bounds = array<i64: 1, 8, 16, 128>}, {pipeline_mode = #tpu.pipeline_mode<synchronous>, transform_indices = @transform_1, window_bounds = array<i64: 2, 128>}, {pipeline_mode = #tpu.pipeline_mode<synchronous>, transform_indices = @transform_2, window_bounds = array<i64: 1, 128>}, {pipeline_mode = #tpu.pipeline_mode<synchronous>, transform_indices = @transform_3, window_bounds = array<i64: 1, 128>}, {transform_indices = @transform_4, window_bounds = array<i64: 1, 8, 16, 128>}]} {
    %c0 = arith.constant 0 : index
    %c0_0 = arith.constant 0 : index
    %0 = vector.load %arg3[%c0, %c0_0] : memref<2x128xf32, #tpu.memory_space<vmem>>, vector<1x128xf32>
    %cst = arith.constant 0.001953125 : f32
    %1 = vector.broadcast %cst : f32 to vector<1x128xf32>
    %2 = arith.mulf %0, %1 : vector<1x128xf32>
    %c1 = arith.constant 1 : index
    %c0_1 = arith.constant 0 : index
    %3 = vector.load %arg3[%c1, %c0_1] : memref<2x128xf32, #tpu.memory_space<vmem>>, vector<1x128xf32>
    %cst_2 = arith.constant 0.001953125 : f32
    %4 = vector.broadcast %cst_2 : f32 to vector<1x128xf32>
    %5 = arith.mulf %3, %4 : vector<1x128xf32>
    %6 = arith.mulf %2, %2 : vector<1x128xf32>
    %7 = arith.subf %5, %6 : vector<1x128xf32>
    %cst_3 = arith.constant 0.000000e+00 : f32
    %8 = vector.broadcast %cst_3 : f32 to vector<1x128xf32>
    %9 = arith.maximumf %7, %8 : vector<1x128xf32>
    %c0_4 = arith.constant 0 : index
    %c0_5 = arith.constant 0 : index
    %10 = vector.load %arg4[%c0_4, %c0_5] : memref<1x128xf32, #tpu.memory_space<vmem>>, vector<1x128xf32>
    %cst_6 = arith.constant 9.99999974E-6 : f32
    %11 = vector.broadcast %cst_6 : f32 to vector<1x128xf32>
    %12 = arith.addf %9, %11 : vector<1x128xf32>
    %13 = math.rsqrt %12 : vector<1x128xf32>
    %14 = arith.mulf %10, %13 : vector<1x128xf32>
    %c0_7 = arith.constant 0 : index
    %c0_8 = arith.constant 0 : index
    %15 = vector.load %arg5[%c0_7, %c0_8] : memref<1x128xf32, #tpu.memory_space<vmem>>, vector<1x128xf32>
    %16 = arith.mulf %2, %14 : vector<1x128xf32>
    %17 = arith.subf %15, %16 : vector<1x128xf32>
    %c0_9 = arith.constant 0 : index
    %c0_10 = arith.constant 0 : index
    %c0_11 = arith.constant 0 : index
    %c0_12 = arith.constant 0 : index
    %18 = vector.load %arg2[%c0_9, %c0_10, %c0_11, %c0_12] : memref<1x8x16x128xf32, #tpu.memory_space<vmem>>, vector<1x8x16x128xf32>
    %19 = vector.shape_cast %14 : vector<1x128xf32> to vector<1x1x1x128xf32>
    %20 = vector.broadcast %19 : vector<1x1x1x128xf32> to vector<1x8x16x128xf32>
    %21 = arith.mulf %18, %20 : vector<1x8x16x128xf32>
    %22 = vector.shape_cast %17 : vector<1x128xf32> to vector<1x1x1x128xf32>
    %23 = vector.broadcast %22 : vector<1x1x1x128xf32> to vector<1x8x16x128xf32>
    %24 = arith.addf %21, %23 : vector<1x8x16x128xf32>
    %cst_13 = arith.constant 0.000000e+00 : f32
    %25 = vector.broadcast %cst_13 : f32 to vector<1x8x16x128xf32>
    %26 = arith.maximumf %24, %25 : vector<1x8x16x128xf32>
    %c0_14 = arith.constant 0 : index
    %c0_15 = arith.constant 0 : index
    %c0_16 = arith.constant 0 : index
    %c0_17 = arith.constant 0 : index
    %27 = vector.load %arg6[%c0_14, %c0_15, %c0_16, %c0_17] : memref<1x8x16x128xf32, #tpu.memory_space<vmem>>, vector<1x8x16x128xf32>
    tpu.vector_store %arg6[%c0_14, %c0_15, %c0_16, %c0_17], %26 {strides = array<i32>} : memref<1x8x16x128xf32, #tpu.memory_space<vmem>>, vector<1x8x16x128xf32>,
    return
  }
  func.func @transform_0(%arg0: i32, %arg1: i32) -> (i32, i32, i32, i32) {
    %c0_i32 = arith.constant 0 : i32
    %c0_i32_0 = arith.constant 0 : i32
    %c0_i32_1 = arith.constant 0 : i32
    return %arg0, %arg1, %c0_i32, %c0_i32_0 : i32, i32, i32, i32
  }
  func.func @transform_1(%arg0: i32, %arg1: i32) -> (i32, i32) {
    %c0_i32 = arith.constant 0 : i32
    %c0_i32_0 = arith.constant 0 : i32
    %c0_i32_1 = arith.constant 0 : i32
    return %c0_i32, %c0_i32_0 : i32, i32
  }
  func.func @transform_2(%arg0: i32, %arg1: i32) -> (i32, i32) {
    %c0_i32 = arith.constant 0 : i32
    %c0_i32_0 = arith.constant 0 : i32
    %c0_i32_1 = arith.constant 0 : i32
    return %c0_i32, %c0_i32_0 : i32, i32
  }
  func.func @transform_3(%arg0: i32, %arg1: i32) -> (i32, i32) {
    %c0_i32 = arith.constant 0 : i32
    %c0_i32_0 = arith.constant 0 : i32
    %c0_i32_1 = arith.constant 0 : i32
    return %c0_i32, %c0_i32_0 : i32, i32
  }
  func.func @transform_4(%arg0: i32, %arg1: i32) -> (i32, i32, i32, i32) {
    %c0_i32 = arith.constant 0 : i32
    %c0_i32_0 = arith.constant 0 : i32
    %c0_i32_1 = arith.constant 0 : i32
    return %arg0, %arg1, %c0_i32, %c0_i32_0 : i32, i32, i32, i32
  }
}

module attributes {stable_mosaic.version = 11 : i64} {
  func.func @_conv_stats_kernel(%arg0: i32, %arg1: i32, %arg2: memref<1x18x18x4xbf16, #tpu.memory_space<vmem>>, %arg3: memref<36x128xbf16, #tpu.memory_space<vmem>>, %arg4: memref<1x8x16x128xf32, #tpu.memory_space<vmem>>, %arg5: memref<1x2x128xf32, #tpu.memory_space<vmem>>) attributes {dimension_semantics = [#tpu.dimension_semantics<parallel>, #tpu.dimension_semantics<arbitrary>], iteration_bounds = array<i64: 2, 2>, scalar_prefetch = 0 : i64, scratch_operands = 0 : i64, tpu.core_type = #tpu.core_type<tc>, window_params = [{transform_indices = @transform_0, window_bounds = array<i64: 1, 18, 18, 4>}, {pipeline_mode = #tpu.pipeline_mode<synchronous>, transform_indices = @transform_1, window_bounds = array<i64: 36, 128>}, {transform_indices = @transform_2, window_bounds = array<i64: 1, 8, 16, 128>}, {transform_indices = @transform_3, window_bounds = array<i64: 1, 2, 128>}]} {
    %c8_i32 = arith.constant 8 : i32
    %0 = arith.muli %arg1, %c8_i32 : i32
    %1 = tpu.assume_multiple %0, 8 : i32
    %c0 = arith.constant 0 : index
    %2 = arith.index_cast %1 : i32 to index
    %c0_0 = arith.constant 0 : index
    %c0_1 = arith.constant 0 : index
    %3 = vector.load %arg2[%c0, %2, %c0_0, %c0_1] : memref<1x18x18x4xbf16, #tpu.memory_space<vmem>>, vector<1x10x18x4xbf16>
    %4 = vector.shape_cast %3 : vector<1x10x18x4xbf16> to vector<10x18x4xbf16>
    %5 = vector.extract_strided_slice %4 {offsets = [0, 0, 0], sizes = [8, 16, 4], strides = [1, 1, 1]} : vector<10x18x4xbf16> to vector<8x16x4xbf16>
    %6 = vector.extract_strided_slice %4 {offsets = [0, 1, 0], sizes = [8, 16, 4], strides = [1, 1, 1]} : vector<10x18x4xbf16> to vector<8x16x4xbf16>
    %7 = vector.extract_strided_slice %4 {offsets = [0, 2, 0], sizes = [8, 16, 4], strides = [1, 1, 1]} : vector<10x18x4xbf16> to vector<8x16x4xbf16>
    %8 = vector.extract_strided_slice %4 {offsets = [1, 0, 0], sizes = [8, 16, 4], strides = [1, 1, 1]} : vector<10x18x4xbf16> to vector<8x16x4xbf16>
    %9 = vector.extract_strided_slice %4 {offsets = [1, 1, 0], sizes = [8, 16, 4], strides = [1, 1, 1]} : vector<10x18x4xbf16> to vector<8x16x4xbf16>
    %10 = vector.extract_strided_slice %4 {offsets = [1, 2, 0], sizes = [8, 16, 4], strides = [1, 1, 1]} : vector<10x18x4xbf16> to vector<8x16x4xbf16>
    %11 = vector.extract_strided_slice %4 {offsets = [2, 0, 0], sizes = [8, 16, 4], strides = [1, 1, 1]} : vector<10x18x4xbf16> to vector<8x16x4xbf16>
    %12 = vector.extract_strided_slice %4 {offsets = [2, 1, 0], sizes = [8, 16, 4], strides = [1, 1, 1]} : vector<10x18x4xbf16> to vector<8x16x4xbf16>
    %13 = vector.extract_strided_slice %4 {offsets = [2, 2, 0], sizes = [8, 16, 4], strides = [1, 1, 1]} : vector<10x18x4xbf16> to vector<8x16x4xbf16>
    %14 = tpu.concatenate %5, %6, %7, %8, %9, %10, %11, %12, %13 in 2 : vector<8x16x4xbf16>, vector<8x16x4xbf16>, vector<8x16x4xbf16>, vector<8x16x4xbf16>, vector<8x16x4xbf16>, vector<8x16x4xbf16>, vector<8x16x4xbf16>, vector<8x16x4xbf16>, vector<8x16x4xbf16> -> vector<8x16x36xbf16>
    %15 = vector.shape_cast %14 : vector<8x16x36xbf16> to vector<128x36xbf16>
    %c0_2 = arith.constant 0 : index
    %c0_3 = arith.constant 0 : index
    %16 = vector.load %arg3[%c0_2, %c0_3] : memref<36x128xbf16, #tpu.memory_space<vmem>>, vector<36x128xbf16>
    %cst = arith.constant dense<0.000000e+00> : vector<128x128xf32>
    %17 = tpu.matmul %15, %16, %cst {dimension_numbers = #tpu.dot_dimension_numbers<[1], [0], [0], [1], [0, 0, 1, 1], [], []>} : vector<128x36xbf16>, vector<36x128xbf16>, vector<128x128xf32> -> vector<128x128xf32>
    %18 = vector.shape_cast %17 : vector<128x128xf32> to vector<8x16x128xf32>
    %c0_4 = arith.constant 0 : index
    %c0_5 = arith.constant 0 : index
    %c0_6 = arith.constant 0 : index
    %c0_7 = arith.constant 0 : index
    %19 = vector.load %arg4[%c0_4, %c0_5, %c0_6, %c0_7] : memref<1x8x16x128xf32, #tpu.memory_space<vmem>>, vector<1x8x16x128xf32>
    %20 = vector.shape_cast %19 : vector<1x8x16x128xf32> to vector<8x16x128xf32>
    %21 = vector.shape_cast %18 : vector<8x16x128xf32> to vector<1x8x16x128xf32>
    tpu.vector_store %arg4[%c0_4, %c0_5, %c0_6, %c0_7], %21 {strides = array<i32>} : memref<1x8x16x128xf32, #tpu.memory_space<vmem>>, vector<1x8x16x128xf32>,
    %cst_8 = arith.constant dense<0.000000e+00> : vector<128xf32>
    %22 = vector.multi_reduction <add>, %17, %cst_8 [0] : vector<128x128xf32> to vector<128xf32>
    %23 = vector.shape_cast %22 : vector<128xf32> to vector<1x128xf32>
    %24 = arith.mulf %17, %17 : vector<128x128xf32>
    %cst_9 = arith.constant dense<0.000000e+00> : vector<128xf32>
    %25 = vector.multi_reduction <add>, %24, %cst_9 [0] : vector<128x128xf32> to vector<128xf32>
    %26 = vector.shape_cast %25 : vector<128xf32> to vector<1x128xf32>
    %27 = tpu.concatenate %23, %26 in 0 : vector<1x128xf32>, vector<1x128xf32> -> vector<2x128xf32>
    %c0_i32 = arith.constant 0 : i32
    %28 = arith.cmpi eq, %arg1, %c0_i32 : i32
    %29 = arith.extui %28 : i1 to i32
    %c0_i32_10 = arith.constant 0 : i32
    %30 = arith.cmpi ne, %29, %c0_i32_10 : i32
    scf.if %30 {
      %c0_13 = arith.constant 0 : index
      %c0_14 = arith.constant 0 : index
      %c0_15 = arith.constant 0 : index
      %34 = vector.load %arg5[%c0_13, %c0_14, %c0_15] : memref<1x2x128xf32, #tpu.memory_space<vmem>>, vector<1x2x128xf32>
      %35 = vector.shape_cast %34 : vector<1x2x128xf32> to vector<2x128xf32>
      %36 = vector.shape_cast %27 : vector<2x128xf32> to vector<1x2x128xf32>
      tpu.vector_store %arg5[%c0_13, %c0_14, %c0_15], %36 {strides = array<i32>} : memref<1x2x128xf32, #tpu.memory_space<vmem>>, vector<1x2x128xf32>,
    } else {
    }
    %c0_i32_11 = arith.constant 0 : i32
    %31 = arith.cmpi sgt, %arg1, %c0_i32_11 : i32
    %32 = arith.extui %31 : i1 to i32
    %c0_i32_12 = arith.constant 0 : i32
    %33 = arith.cmpi ne, %32, %c0_i32_12 : i32
    scf.if %33 {
      %c0_13 = arith.constant 0 : index
      %c0_14 = arith.constant 0 : index
      %c0_15 = arith.constant 0 : index
      %34 = vector.load %arg5[%c0_13, %c0_14, %c0_15] : memref<1x2x128xf32, #tpu.memory_space<vmem>>, vector<1x2x128xf32>
      %35 = vector.shape_cast %34 : vector<1x2x128xf32> to vector<2x128xf32>
      %36 = arith.addf %35, %27 : vector<2x128xf32>
      %c0_16 = arith.constant 0 : index
      %c0_17 = arith.constant 0 : index
      %c0_18 = arith.constant 0 : index
      %37 = vector.load %arg5[%c0_16, %c0_17, %c0_18] : memref<1x2x128xf32, #tpu.memory_space<vmem>>, vector<1x2x128xf32>
      %38 = vector.shape_cast %37 : vector<1x2x128xf32> to vector<2x128xf32>
      %39 = vector.shape_cast %36 : vector<2x128xf32> to vector<1x2x128xf32>
      tpu.vector_store %arg5[%c0_16, %c0_17, %c0_18], %39 {strides = array<i32>} : memref<1x2x128xf32, #tpu.memory_space<vmem>>, vector<1x2x128xf32>,
    } else {
    }
    return
  }
  func.func @transform_0(%arg0: i32, %arg1: i32) -> (i32, i32, i32, i32) {
    %c0_i32 = arith.constant 0 : i32
    %c0_i32_0 = arith.constant 0 : i32
    %c0_i32_1 = arith.constant 0 : i32
    %c0_i32_2 = arith.constant 0 : i32
    return %arg0, %c0_i32, %c0_i32_0, %c0_i32_1 : i32, i32, i32, i32
  }
  func.func @transform_1(%arg0: i32, %arg1: i32) -> (i32, i32) {
    %c0_i32 = arith.constant 0 : i32
    %c0_i32_0 = arith.constant 0 : i32
    %c0_i32_1 = arith.constant 0 : i32
    return %c0_i32, %c0_i32_0 : i32, i32
  }
  func.func @transform_2(%arg0: i32, %arg1: i32) -> (i32, i32, i32, i32) {
    %c0_i32 = arith.constant 0 : i32
    %c0_i32_0 = arith.constant 0 : i32
    %c0_i32_1 = arith.constant 0 : i32
    return %arg0, %arg1, %c0_i32, %c0_i32_0 : i32, i32, i32, i32
  }
  func.func @transform_3(%arg0: i32, %arg1: i32) -> (i32, i32, i32) {
    %c0_i32 = arith.constant 0 : i32
    %c0_i32_0 = arith.constant 0 : i32
    %c0_i32_1 = arith.constant 0 : i32
    return %arg0, %c0_i32, %c0_i32_0 : i32, i32, i32
  }
}

module attributes {stable_mosaic.version = 11 : i64} {
  func.func @_bn_relu_kernel(%arg0: i32, %arg1: i32, %arg2: memref<1x8x16x128xf32, #tpu.memory_space<vmem>>, %arg3: memref<2x128xf32, #tpu.memory_space<vmem>>, %arg4: memref<1x128xf32, #tpu.memory_space<vmem>>, %arg5: memref<1x128xf32, #tpu.memory_space<vmem>>, %arg6: memref<1x8x16x128xbf16, #tpu.memory_space<vmem>>) attributes {dimension_semantics = [#tpu.dimension_semantics<parallel>, #tpu.dimension_semantics<parallel>], iteration_bounds = array<i64: 2, 2>, scalar_prefetch = 0 : i64, scratch_operands = 0 : i64, tpu.core_type = #tpu.core_type<tc>, window_params = [{transform_indices = @transform_0, window_bounds = array<i64: 1, 8, 16, 128>}, {pipeline_mode = #tpu.pipeline_mode<synchronous>, transform_indices = @transform_1, window_bounds = array<i64: 2, 128>}, {pipeline_mode = #tpu.pipeline_mode<synchronous>, transform_indices = @transform_2, window_bounds = array<i64: 1, 128>}, {pipeline_mode = #tpu.pipeline_mode<synchronous>, transform_indices = @transform_3, window_bounds = array<i64: 1, 128>}, {transform_indices = @transform_4, window_bounds = array<i64: 1, 8, 16, 128>}]} {
    %c0 = arith.constant 0 : index
    %c0_0 = arith.constant 0 : index
    %0 = vector.load %arg3[%c0, %c0_0] : memref<2x128xf32, #tpu.memory_space<vmem>>, vector<1x128xf32>
    %cst = arith.constant 0.001953125 : f32
    %1 = vector.broadcast %cst : f32 to vector<1x128xf32>
    %2 = arith.mulf %0, %1 : vector<1x128xf32>
    %c1 = arith.constant 1 : index
    %c0_1 = arith.constant 0 : index
    %3 = vector.load %arg3[%c1, %c0_1] : memref<2x128xf32, #tpu.memory_space<vmem>>, vector<1x128xf32>
    %cst_2 = arith.constant 0.001953125 : f32
    %4 = vector.broadcast %cst_2 : f32 to vector<1x128xf32>
    %5 = arith.mulf %3, %4 : vector<1x128xf32>
    %6 = arith.mulf %2, %2 : vector<1x128xf32>
    %7 = arith.subf %5, %6 : vector<1x128xf32>
    %cst_3 = arith.constant 0.000000e+00 : f32
    %8 = vector.broadcast %cst_3 : f32 to vector<1x128xf32>
    %9 = arith.maximumf %7, %8 : vector<1x128xf32>
    %c0_4 = arith.constant 0 : index
    %c0_5 = arith.constant 0 : index
    %10 = vector.load %arg4[%c0_4, %c0_5] : memref<1x128xf32, #tpu.memory_space<vmem>>, vector<1x128xf32>
    %cst_6 = arith.constant 9.99999974E-6 : f32
    %11 = vector.broadcast %cst_6 : f32 to vector<1x128xf32>
    %12 = arith.addf %9, %11 : vector<1x128xf32>
    %13 = math.rsqrt %12 : vector<1x128xf32>
    %14 = arith.mulf %10, %13 : vector<1x128xf32>
    %c0_7 = arith.constant 0 : index
    %c0_8 = arith.constant 0 : index
    %15 = vector.load %arg5[%c0_7, %c0_8] : memref<1x128xf32, #tpu.memory_space<vmem>>, vector<1x128xf32>
    %16 = arith.mulf %2, %14 : vector<1x128xf32>
    %17 = arith.subf %15, %16 : vector<1x128xf32>
    %c0_9 = arith.constant 0 : index
    %c0_10 = arith.constant 0 : index
    %c0_11 = arith.constant 0 : index
    %c0_12 = arith.constant 0 : index
    %18 = vector.load %arg2[%c0_9, %c0_10, %c0_11, %c0_12] : memref<1x8x16x128xf32, #tpu.memory_space<vmem>>, vector<1x8x16x128xf32>
    %19 = vector.shape_cast %14 : vector<1x128xf32> to vector<1x1x1x128xf32>
    %20 = vector.broadcast %19 : vector<1x1x1x128xf32> to vector<1x8x16x128xf32>
    %21 = arith.mulf %18, %20 : vector<1x8x16x128xf32>
    %22 = vector.shape_cast %17 : vector<1x128xf32> to vector<1x1x1x128xf32>
    %23 = vector.broadcast %22 : vector<1x1x1x128xf32> to vector<1x8x16x128xf32>
    %24 = arith.addf %21, %23 : vector<1x8x16x128xf32>
    %cst_13 = arith.constant 0.000000e+00 : f32
    %25 = vector.broadcast %cst_13 : f32 to vector<1x8x16x128xf32>
    %26 = arith.maximumf %24, %25 : vector<1x8x16x128xf32>
    %27 = arith.truncf %26 : vector<1x8x16x128xf32> to vector<1x8x16x128xbf16>
    %c0_14 = arith.constant 0 : index
    %c0_15 = arith.constant 0 : index
    %c0_16 = arith.constant 0 : index
    %c0_17 = arith.constant 0 : index
    %28 = vector.load %arg6[%c0_14, %c0_15, %c0_16, %c0_17] : memref<1x8x16x128xbf16, #tpu.memory_space<vmem>>, vector<1x8x16x128xbf16>
    tpu.vector_store %arg6[%c0_14, %c0_15, %c0_16, %c0_17], %27 {strides = array<i32>} : memref<1x8x16x128xbf16, #tpu.memory_space<vmem>>, vector<1x8x16x128xbf16>,
    return
  }
  func.func @transform_0(%arg0: i32, %arg1: i32) -> (i32, i32, i32, i32) {
    %c0_i32 = arith.constant 0 : i32
    %c0_i32_0 = arith.constant 0 : i32
    %c0_i32_1 = arith.constant 0 : i32
    return %arg0, %arg1, %c0_i32, %c0_i32_0 : i32, i32, i32, i32
  }
  func.func @transform_1(%arg0: i32, %arg1: i32) -> (i32, i32) {
    %c0_i32 = arith.constant 0 : i32
    %c0_i32_0 = arith.constant 0 : i32
    %c0_i32_1 = arith.constant 0 : i32
    return %c0_i32, %c0_i32_0 : i32, i32
  }
  func.func @transform_2(%arg0: i32, %arg1: i32) -> (i32, i32) {
    %c0_i32 = arith.constant 0 : i32
    %c0_i32_0 = arith.constant 0 : i32
    %c0_i32_1 = arith.constant 0 : i32
    return %c0_i32, %c0_i32_0 : i32, i32
  }
  func.func @transform_3(%arg0: i32, %arg1: i32) -> (i32, i32) {
    %c0_i32 = arith.constant 0 : i32
    %c0_i32_0 = arith.constant 0 : i32
    %c0_i32_1 = arith.constant 0 : i32
    return %c0_i32, %c0_i32_0 : i32, i32
  }
  func.func @transform_4(%arg0: i32, %arg1: i32) -> (i32, i32, i32, i32) {
    %c0_i32 = arith.constant 0 : i32
    %c0_i32_0 = arith.constant 0 : i32
    %c0_i32_1 = arith.constant 0 : i32
    return %arg0, %arg1, %c0_i32, %c0_i32_0 : i32, i32, i32, i32
  }
}

module attributes {stable_mosaic.version = 11 : i64} {
  func.func @_conv_stats_kernel(%arg0: i32, %arg1: i32, %arg2: memref<1x18x18x128xbf16, #tpu.memory_space<vmem>>, %arg3: memref<1152x128xbf16, #tpu.memory_space<vmem>>, %arg4: memref<1x8x16x128xf32, #tpu.memory_space<vmem>>, %arg5: memref<1x2x128xf32, #tpu.memory_space<vmem>>) attributes {dimension_semantics = [#tpu.dimension_semantics<parallel>, #tpu.dimension_semantics<arbitrary>], iteration_bounds = array<i64: 2, 2>, scalar_prefetch = 0 : i64, scratch_operands = 0 : i64, tpu.core_type = #tpu.core_type<tc>, window_params = [{transform_indices = @transform_0, window_bounds = array<i64: 1, 18, 18, 128>}, {pipeline_mode = #tpu.pipeline_mode<synchronous>, transform_indices = @transform_1, window_bounds = array<i64: 1152, 128>}, {transform_indices = @transform_2, window_bounds = array<i64: 1, 8, 16, 128>}, {transform_indices = @transform_3, window_bounds = array<i64: 1, 2, 128>}]} {
    %c8_i32 = arith.constant 8 : i32
    %0 = arith.muli %arg1, %c8_i32 : i32
    %1 = tpu.assume_multiple %0, 8 : i32
    %c0 = arith.constant 0 : index
    %2 = arith.index_cast %1 : i32 to index
    %c0_0 = arith.constant 0 : index
    %c0_1 = arith.constant 0 : index
    %3 = vector.load %arg2[%c0, %2, %c0_0, %c0_1] : memref<1x18x18x128xbf16, #tpu.memory_space<vmem>>, vector<1x10x18x128xbf16>
    %4 = vector.shape_cast %3 : vector<1x10x18x128xbf16> to vector<10x18x128xbf16>
    %5 = vector.extract_strided_slice %4 {offsets = [0, 0, 0], sizes = [8, 16, 128], strides = [1, 1, 1]} : vector<10x18x128xbf16> to vector<8x16x128xbf16>
    %6 = vector.extract_strided_slice %4 {offsets = [0, 1, 0], sizes = [8, 16, 128], strides = [1, 1, 1]} : vector<10x18x128xbf16> to vector<8x16x128xbf16>
    %7 = vector.extract_strided_slice %4 {offsets = [0, 2, 0], sizes = [8, 16, 128], strides = [1, 1, 1]} : vector<10x18x128xbf16> to vector<8x16x128xbf16>
    %8 = vector.extract_strided_slice %4 {offsets = [1, 0, 0], sizes = [8, 16, 128], strides = [1, 1, 1]} : vector<10x18x128xbf16> to vector<8x16x128xbf16>
    %9 = vector.extract_strided_slice %4 {offsets = [1, 1, 0], sizes = [8, 16, 128], strides = [1, 1, 1]} : vector<10x18x128xbf16> to vector<8x16x128xbf16>
    %10 = vector.extract_strided_slice %4 {offsets = [1, 2, 0], sizes = [8, 16, 128], strides = [1, 1, 1]} : vector<10x18x128xbf16> to vector<8x16x128xbf16>
    %11 = vector.extract_strided_slice %4 {offsets = [2, 0, 0], sizes = [8, 16, 128], strides = [1, 1, 1]} : vector<10x18x128xbf16> to vector<8x16x128xbf16>
    %12 = vector.extract_strided_slice %4 {offsets = [2, 1, 0], sizes = [8, 16, 128], strides = [1, 1, 1]} : vector<10x18x128xbf16> to vector<8x16x128xbf16>
    %13 = vector.extract_strided_slice %4 {offsets = [2, 2, 0], sizes = [8, 16, 128], strides = [1, 1, 1]} : vector<10x18x128xbf16> to vector<8x16x128xbf16>
    %14 = tpu.concatenate %5, %6, %7, %8, %9, %10, %11, %12, %13 in 2 : vector<8x16x128xbf16>, vector<8x16x128xbf16>, vector<8x16x128xbf16>, vector<8x16x128xbf16>, vector<8x16x128xbf16>, vector<8x16x128xbf16>, vector<8x16x128xbf16>, vector<8x16x128xbf16>, vector<8x16x128xbf16> -> vector<8x16x1152xbf16>
    %15 = vector.shape_cast %14 : vector<8x16x1152xbf16> to vector<128x1152xbf16>
    %c0_2 = arith.constant 0 : index
    %c0_3 = arith.constant 0 : index
    %16 = vector.load %arg3[%c0_2, %c0_3] : memref<1152x128xbf16, #tpu.memory_space<vmem>>, vector<1152x128xbf16>
    %cst = arith.constant dense<0.000000e+00> : vector<128x128xf32>
    %17 = tpu.matmul %15, %16, %cst {dimension_numbers = #tpu.dot_dimension_numbers<[1], [0], [0], [1], [0, 0, 1, 1], [], []>} : vector<128x1152xbf16>, vector<1152x128xbf16>, vector<128x128xf32> -> vector<128x128xf32>
    %18 = vector.shape_cast %17 : vector<128x128xf32> to vector<8x16x128xf32>
    %c0_4 = arith.constant 0 : index
    %c0_5 = arith.constant 0 : index
    %c0_6 = arith.constant 0 : index
    %c0_7 = arith.constant 0 : index
    %19 = vector.load %arg4[%c0_4, %c0_5, %c0_6, %c0_7] : memref<1x8x16x128xf32, #tpu.memory_space<vmem>>, vector<1x8x16x128xf32>
    %20 = vector.shape_cast %19 : vector<1x8x16x128xf32> to vector<8x16x128xf32>
    %21 = vector.shape_cast %18 : vector<8x16x128xf32> to vector<1x8x16x128xf32>
    tpu.vector_store %arg4[%c0_4, %c0_5, %c0_6, %c0_7], %21 {strides = array<i32>} : memref<1x8x16x128xf32, #tpu.memory_space<vmem>>, vector<1x8x16x128xf32>,
    %cst_8 = arith.constant dense<0.000000e+00> : vector<128xf32>
    %22 = vector.multi_reduction <add>, %17, %cst_8 [0] : vector<128x128xf32> to vector<128xf32>
    %23 = vector.shape_cast %22 : vector<128xf32> to vector<1x128xf32>
    %24 = arith.mulf %17, %17 : vector<128x128xf32>
    %cst_9 = arith.constant dense<0.000000e+00> : vector<128xf32>
    %25 = vector.multi_reduction <add>, %24, %cst_9 [0] : vector<128x128xf32> to vector<128xf32>
    %26 = vector.shape_cast %25 : vector<128xf32> to vector<1x128xf32>
    %27 = tpu.concatenate %23, %26 in 0 : vector<1x128xf32>, vector<1x128xf32> -> vector<2x128xf32>
    %c0_i32 = arith.constant 0 : i32
    %28 = arith.cmpi eq, %arg1, %c0_i32 : i32
    %29 = arith.extui %28 : i1 to i32
    %c0_i32_10 = arith.constant 0 : i32
    %30 = arith.cmpi ne, %29, %c0_i32_10 : i32
    scf.if %30 {
      %c0_13 = arith.constant 0 : index
      %c0_14 = arith.constant 0 : index
      %c0_15 = arith.constant 0 : index
      %34 = vector.load %arg5[%c0_13, %c0_14, %c0_15] : memref<1x2x128xf32, #tpu.memory_space<vmem>>, vector<1x2x128xf32>
      %35 = vector.shape_cast %34 : vector<1x2x128xf32> to vector<2x128xf32>
      %36 = vector.shape_cast %27 : vector<2x128xf32> to vector<1x2x128xf32>
      tpu.vector_store %arg5[%c0_13, %c0_14, %c0_15], %36 {strides = array<i32>} : memref<1x2x128xf32, #tpu.memory_space<vmem>>, vector<1x2x128xf32>,
    } else {
    }
    %c0_i32_11 = arith.constant 0 : i32
    %31 = arith.cmpi sgt, %arg1, %c0_i32_11 : i32
    %32 = arith.extui %31 : i1 to i32
    %c0_i32_12 = arith.constant 0 : i32
    %33 = arith.cmpi ne, %32, %c0_i32_12 : i32
    scf.if %33 {
      %c0_13 = arith.constant 0 : index
      %c0_14 = arith.constant 0 : index
      %c0_15 = arith.constant 0 : index
      %34 = vector.load %arg5[%c0_13, %c0_14, %c0_15] : memref<1x2x128xf32, #tpu.memory_space<vmem>>, vector<1x2x128xf32>
      %35 = vector.shape_cast %34 : vector<1x2x128xf32> to vector<2x128xf32>
      %36 = arith.addf %35, %27 : vector<2x128xf32>
      %c0_16 = arith.constant 0 : index
      %c0_17 = arith.constant 0 : index
      %c0_18 = arith.constant 0 : index
      %37 = vector.load %arg5[%c0_16, %c0_17, %c0_18] : memref<1x2x128xf32, #tpu.memory_space<vmem>>, vector<1x2x128xf32>
      %38 = vector.shape_cast %37 : vector<1x2x128xf32> to vector<2x128xf32>
      %39 = vector.shape_cast %36 : vector<2x128xf32> to vector<1x2x128xf32>
      tpu.vector_store %arg5[%c0_16, %c0_17, %c0_18], %39 {strides = array<i32>} : memref<1x2x128xf32, #tpu.memory_space<vmem>>, vector<1x2x128xf32>,
    } else {
    }
    return
  }
  func.func @transform_0(%arg0: i32, %arg1: i32) -> (i32, i32, i32, i32) {
    %c0_i32 = arith.constant 0 : i32
    %c0_i32_0 = arith.constant 0 : i32
    %c0_i32_1 = arith.constant 0 : i32
    %c0_i32_2 = arith.constant 0 : i32
    return %arg0, %c0_i32, %c0_i32_0, %c0_i32_1 : i32, i32, i32, i32
  }
  func.func @transform_1(%arg0: i32, %arg1: i32) -> (i32, i32) {
    %c0_i32 = arith.constant 0 : i32
    %c0_i32_0 = arith.constant 0 : i32
    %c0_i32_1 = arith.constant 0 : i32
    return %c0_i32, %c0_i32_0 : i32, i32
  }
  func.func @transform_2(%arg0: i32, %arg1: i32) -> (i32, i32, i32, i32) {
    %c0_i32 = arith.constant 0 : i32
    %c0_i32_0 = arith.constant 0 : i32
    %c0_i32_1 = arith.constant 0 : i32
    return %arg0, %arg1, %c0_i32, %c0_i32_0 : i32, i32, i32, i32
  }
  func.func @transform_3(%arg0: i32, %arg1: i32) -> (i32, i32, i32) {
    %c0_i32 = arith.constant 0 : i32
    %c0_i32_0 = arith.constant 0 : i32
    %c0_i32_1 = arith.constant 0 : i32
    return %arg0, %c0_i32, %c0_i32_0 : i32, i32, i32
  }
}

</mosaic_0001>

<llo_original>
// kernel: double_conv.5
$region0: #{double_conv.5}
  #allocation0 [shape = 'u32[]', space=smem, size = 0x4, offset = 0x4, fixed_abs, tag = 'smem constant byte address 0x4 - core index']
  #allocation1 [shape = 'u32[72,128]{1,0:T(1,128)}', space=vmem, size = 0x9000, scoped, tag = 'internal scratch']
  %s0 = inlined_call_operand.vmem [shape: f32[2,16,16,128], index: 0, kind: input, shape index: {}]
  %s1 = inlined_call_operand.vmem [shape: f32[2,128], index: 1, kind: input, shape index: {}]
  %s2 = inlined_call_operand.vmem [shape: f32[1,128], index: 2, kind: input, shape index: {}]
  %s3 = inlined_call_operand.vmem [shape: f32[1,128], index: 3, kind: input, shape index: {}]
  %s4 = inlined_call_operand.vmem [shape: bf16[2,16,16,128], index: 4, kind: output, shape index: {}]
  %s5 = sld [smem:[#allocation0]]
  $region49: #{double_conv.5} parent=0
    _
  %s7 = ssub.s32 1, %s5
  %s8 = scalar_select 0, %s7, %s5
  loop: start=0, step=1, limit=6
  $region2: #{double_conv.5} parent=0 // loop_pre_header
    _
  $region3: #{double_conv.5} parent=0 // loop_header
    %s10 = sphi 0, %s14
    %p11 = scmp.ge.s32.totalorder %s10, 6
    %s17 = sphi 0, %s29
    %s18 = sphi 0, %s25
    %s19 = sphi 0, %s17
    %s20 = sphi 0, %s18
    %s21 = sphi 0, %s19
    %s22 = sphi 0, %s20
    %s34 = sphi 0, %s36
    %s37 = sphi 0, %s34
    %s38 = sphi 0, %s37
    %s54 = sphi 0, %s38
    %s58 = sphi 0, %s58
    %s60 = sphi 0, %s58
    %s61 = sphi 0, %s60
    %s75 = sphi 0, %s61
    %s79 = sphi 0, %s79
    %s81 = sphi 0, %s79
    %s82 = sphi 0, %s81
    %s96 = sphi 0, %s82
    %s100 = sphi 0, %s100
    %s102 = sphi 0, %s100
    %s103 = sphi 0, %s102
    %s117 = sphi 0, %s103
    %s125 = sphi 0, %s127
    %s128 = sphi 0, %s125
    %s129 = sphi 0, %s128
    %s145 = sphi 0, %s129
  $region4: #{double_conv.5} parent=0 // loop_header_branch
    %13 = sbr.rel (%p11) target = $region8
  $region5: #{double_conv.5} parent=0 // loop_body
    %s15 = ssub.s32 %s10, 1
    %s16 = ssub.s32 %s10, 2
    %s23 = sadd.s32 1, %s18
    %p24 = scmp.ge.s32.totalorder %s23, 2
    %s25 = scalar_select %p24, 0, %s23
    %s26 = sadd.s32 1, %s17
    %s27 = scalar_select %p24, %s26, %s17
    %p28 = scmp.ge.s32.totalorder %s27, 2
    %s29 = scalar_select %p28, 0, %s27
    %s30 = ssub.s32 %s17, %s29
    %s31 = ssub.s32 %s18, %s25
    %s32 = sor.u32 %s30, %s31
    %p33 = scmp.eq.s32.totalorder %s32, 0
    %s35 = sadd.s32 %s34, 1
    %s36 = scalar_select %p33, %s34, %s35
    %p39 = pneg %p33
    %p40 = scmp.eq.s32.totalorder %s10, 3
    %p41 = por %p39, %p40
    %p42 = scmp.ne.s32.totalorder %s34, %s37
    %p43 = scmp.eq.s32.totalorder %s10, 0
    %p44 = por %p42, %p43
    %p45 = scmp.ne.s32.totalorder %s34, %s37
    %p46 = scmp.eq.s32.totalorder %s15, 3
    %p47 = por %p45, %p46
    %p48 = scmp.ne.s32.totalorder %s37, %s38
    %p49 = scmp.eq.s32.totalorder %s15, 0
    %p50 = por %p48, %p49
    %p51 = scmp.ne.s32.totalorder %s37, %s38
    %p52 = scmp.eq.s32.totalorder %s16, 3
    %p53 = por %p51, %p52
    %p55 = scmp.ne.s32.totalorder %s38, %s54
    %p56 = scmp.eq.s32.totalorder %s16, 0
    %p57 = por %p55, %p56
    %s59 = sadd.s32 %s58, 1
    %p62 = scmp.eq.s32.totalorder %s10, 3
    %p63 = scmp.ne.s32.totalorder %s58, %s60
    %p64 = scmp.eq.s32.totalorder %s10, 0
    %p65 = por %p63, %p64
    %p66 = scmp.ne.s32.totalorder %s58, %s60
    %p67 = scmp.eq.s32.totalorder %s15, 3
    %p68 = por %p66, %p67
    %p69 = scmp.ne.s32.totalorder %s60, %s61
    %p70 = scmp.eq.s32.totalorder %s15, 0
    %p71 = por %p69, %p70
    %p72 = scmp.ne.s32.totalorder %s60, %s61
    %p73 = scmp.eq.s32.totalorder %s16, 3
    %p74 = por %p72, %p73
    %p76 = scmp.ne.s32.totalorder %s61, %s75
    %p77 = scmp.eq.s32.totalorder %s16, 0
    %p78 = por %p76, %p77
    %s80 = sadd.s32 %s79, 1
    %p83 = scmp.eq.s32.totalorder %s10, 3
    %p84 = scmp.ne.s32.totalorder %s79, %s81
    %p85 = scmp.eq.s32.totalorder %s10, 0
    %p86 = por %p84, %p85
    %p87 = scmp.ne.s32.totalorder %s79, %s81
    %p88 = scmp.eq.s32.totalorder %s15, 3
    %p89 = por %p87, %p88
    %p90 = scmp.ne.s32.totalorder %s81, %s82
    %p91 = scmp.eq.s32.totalorder %s15, 0
    %p92 = por %p90, %p91
    %p93 = scmp.ne.s32.totalorder %s81, %s82
    %p94 = scmp.eq.s32.totalorder %s16, 3
    %p95 = por %p93, %p94
    %p97 = scmp.ne.s32.totalorder %s82, %s96
    %p98 = scmp.eq.s32.totalorder %s16, 0
    %p99 = por %p97, %p98
    %s101 = sadd.s32 %s100, 1
    %p104 = scmp.eq.s32.totalorder %s10, 3
    %p105 = scmp.ne.s32.totalorder %s100, %s102
    %p106 = scmp.eq.s32.totalorder %s10, 0
    %p107 = por %p105, %p106
    %p108 = scmp.ne.s32.totalorder %s100, %s102
    %p109 = scmp.eq.s32.totalorder %s15, 3
    %p110 = por %p108, %p109
    %p111 = scmp.ne.s32.totalorder %s102, %s103
    %p112 = scmp.eq.s32.totalorder %s15, 0
    %p113 = por %p111, %p112
    %p114 = scmp.ne.s32.totalorder %s102, %s103
    %p115 = scmp.eq.s32.totalorder %s16, 3
    %p116 = por %p114, %p115
    %p118 = scmp.ne.s32.totalorder %s103, %s117
    %p119 = scmp.eq.s32.totalorder %s16, 0
    %p120 = por %p118, %p119
    %s121 = ssub.s32 %s17, %s29
    %s122 = ssub.s32 %s18, %s25
    %s123 = sor.u32 %s121, %s122
    %p124 = scmp.eq.s32.totalorder %s123, 0
    %s126 = sadd.s32 %s125, 1
    %s127 = scalar_select %p124, %s125, %s126
    %p130 = pneg %p124
    %p131 = scmp.eq.s32.totalorder %s10, 3
    %p132 = por %p130, %p131
    %p133 = scmp.ne.s32.totalorder %s125, %s128
    %p134 = scmp.eq.s32.totalorder %s10, 0
    %p135 = por %p133, %p134
    %p136 = scmp.ne.s32.totalorder %s125, %s128
    %p137 = scmp.eq.s32.totalorder %s15, 3
    %p138 = por %p136, %p137
    %p139 = scmp.ne.s32.totalorder %s128, %s129
    %p140 = scmp.eq.s32.totalorder %s15, 0
    %p141 = por %p139, %p140
    %p142 = scmp.ne.s32.totalorder %s128, %s129
    %p143 = scmp.eq.s32.totalorder %s16, 3
    %p144 = por %p142, %p143
    %p146 = scmp.ne.s32.totalorder %s129, %s145
    %p147 = scmp.eq.s32.totalorder %s16, 0
    %p148 = por %p146, %p147
    %p149 = scmp.le.s32.totalorder 1, %s10
    %p150 = scmp.lt.s32.totalorder %s10, 5
    %p151 = pnand %p149, %p150
    %p152 = pneg %p151
    // Predicated region
    $region9: #{double_conv.5} parent=5 // pred_check
      _
    $region10: #{double_conv.5} parent=5 // pred_check_branch
      %154 = sbr.rel (%p151) target = $region12
    $region11: #{double_conv.5} parent=5 // pred_region
      %s155 = ssub.s32 %s10, 1
      // Predicated region
      $region13: #{double_conv.5} parent=11 // pred_check
        %p156 = pneg %p71
      $region14: #{double_conv.5} parent=11 // pred_check_branch
        %158 = sbr.rel (%p156) target = $region16
      $region15: #{double_conv.5} parent=11 // pred_region
        _
      $region16: #{double_conv.5} parent=11 // pred_fallthru
        _
      // Predicated region
      $region17: #{double_conv.5} parent=11 // pred_check
        %p159 = pneg %p92
      $region18: #{double_conv.5} parent=11 // pred_check_branch
        %161 = sbr.rel (%p159) target = $region20
      $region19: #{double_conv.5} parent=11 // pred_region
        _
      $region20: #{double_conv.5} parent=11 // pred_fallthru
        _
      // Predicated region
      $region21: #{double_conv.5} parent=11 // pred_check
        %p162 = pneg %p113
      $region22: #{double_conv.5} parent=11 // pred_check_branch
        %164 = sbr.rel (%p162) target = $region24
      $region23: #{double_conv.5} parent=11 // pred_region
        _
      $region24: #{double_conv.5} parent=11 // pred_fallthru
        _
    $region12: #{double_conv.5} parent=5 // pred_fallthru
      _
    %p165 = scmp.lt.s32.totalorder %s10, 4
    // Predicated region
    $region25: #{double_conv.5} parent=5 // pred_check
      %p166 = pneg %p165
    $region26: #{double_conv.5} parent=5 // pred_check_branch
      %168 = sbr.rel (%p166) target = $region28
    $region27: #{double_conv.5} parent=5 // pred_region
      // Predicated region
      $region29: #{double_conv.5} parent=27 // pred_check
        %p169 = pneg %p44
      $region30: #{double_conv.5} parent=27 // pred_check_branch
        %171 = sbr.rel (%p169) target = $region32
      $region31: #{double_conv.5} parent=27 // pred_region
        %s172 = smul.u32 8, %s18
        %p173 = scmp.lt.s32.totalorder %s17, 1
        %s174 = scalar_select %p173, %s17, 1
        %p175 = scmp.lt.s32.totalorder %s172, 15
        %s176 = scalar_select %p175, %s172, 15
        %s177 = smul.addr %s176, 2
        %s178 = smul.addr %s174, 32
        %s179 = sadd.s32 %s177, %s178
        %s180 = smul.addr %s179, 8
        %s181 = scalar_lea.vmem %s0, %s180
        %s182 = smul.u32 8, %s18
      $region32: #{double_conv.5} parent=27 // pred_fallthru
        _
    $region28: #{double_conv.5} parent=5 // pred_fallthru
      _
    %p183 = scmp.le.s32.totalorder 1, %s10
    %p184 = scmp.lt.s32.totalorder %s10, 5
    %p185 = pnand %p183, %p184
    %p186 = pneg %p185
    // Predicated region
    $region33: #{double_conv.5} parent=5 // pred_check
      _
    $region34: #{double_conv.5} parent=5 // pred_check_branch
      %188 = sbr.rel (%p185) target = $region36
    $region35: #{double_conv.5} parent=5 // pred_region
      %s189 = ssub.s32 %s10, 1
      %s190 = smul.u32 8, %s20
      %p191 = scmp.lt.s32.totalorder %s19, 1
      %s192 = scalar_select %p191, %s19, 1
      %p193 = scmp.lt.s32.totalorder %s190, 15
      %s194 = scalar_select %p193, %s190, 15
      %s195 = smul.addr %s194, 2
      %s196 = smul.addr %s192, 32
      %s197 = sadd.s32 %s195, %s196
      %s198 = smul.addr %s197, 8
      %s199 = scalar_lea.vmem %s0, %s198
      %p200 = pneg %p50
      %p201 = pneg %p47
      %p202 = pneg %p71
      %p203 = pneg %p68
      %p204 = pneg %p92
      %p205 = pneg %p89
      %p206 = pneg %p113
      %p207 = pneg %p110
      %p208 = pneg %p141
      %p209 = pneg %p138
      %s210 = smul.u32 8, %s20
      %p211 = scmp.lt.s32.totalorder %s19, 1
      %s212 = scalar_select %p211, %s19, 1
      %p213 = scmp.lt.s32.totalorder %s210, 15
      %s214 = scalar_select %p213, %s210, 15
      %s215 = smul.addr %s214, 2
      %s216 = smul.addr %s212, 32
      %s217 = sadd.s32 %s215, %s216
      %s218 = smul.addr %s217, 4
      %s219 = scalar_lea.vmem %s4, %s218
      %s220 = smul.u32 8, %s20
      %p221 = scmp.lt.s32.totalorder %s19, 1
      %s222 = scalar_select %p221, %s19, 1
      %p223 = scmp.lt.s32.totalorder %s220, 15
      %s224 = scalar_select %p223, %s220, 15
      %s225 = smul.addr %s224, 2
      %s226 = smul.addr %s222, 32
      %s227 = sadd.s32 %s225, %s226
      %s228 = smul.addr %s227, 8
      %s229 = scalar_lea.vmem %s0, %s228
      %s230 = smul.u32 8, %s20
      %s231 = smul.u32 8, %s20
      %p232 = scmp.lt.s32.totalorder %s19, 1
      %s233 = scalar_select %p232, %s19, 1
      %p234 = scmp.lt.s32.totalorder %s231, 15
      %s235 = scalar_select %p234, %s231, 15
      %s236 = smul.addr %s235, 2
      %s237 = smul.addr %s233, 32
      %s238 = sadd.s32 %s236, %s237
      %s239 = smul.addr %s238, 4
      %s240 = scalar_lea.vmem %s4, %s239
      %s241 = smul.u32 8, %s20
      %v242 = vld [vmem:[%s1] sm:$0x1]
      %v243 = vmul.f32 %v242, 0.001953125
      %v244 = vld [vmem:[%s1 + $0x1] sm:$0x1]
      %v245 = vmul.f32 %v244, 0.001953125
      %v246 = vmul.f32 %v243, %v243
      %v247 = vsub.f32 %v245, %v246
      %v248 = vmax.f32 %v247, 0.0
      %v249 = vld [vmem:[%s2] sm:$0x1]
      %v250 = vadd.f32 %v248, 1e-05
      %v251 = vrsqrt.pop %v250
      %v252 = vmul.f32 %v251, %v250
      %v253 = vmul.f32 %v252, %v251
      %v254 = vmul.f32 0.5, %v253
      %v255 = vsub.f32 1.5, %v254
      %v256 = vmul.f32 %v251, %v255
      %vm257 = vweird.f32 %v250
      %vm258 = vweird.f32 %v251
      %vm259 = vmor %vm257, %vm258
      %v260 = vsel %vm259, %v251, %v256
      %v261 = vmul.f32 %v249, %v260
      %v262 = vld [vmem:[%s3] sm:$0x1]
      %v263 = vmul.f32 %v243, %v261
      %v264 = vsub.f32 %v262, %v263
      %v265 = vld [vmem:[%s229] sm:$0xff]
      %v266 = vld [vmem:[%s229 + $0x8] sm:$0xff]
      %v267 = vld [vmem:[%s229 + $0x10] sm:$0xff]
      %v268 = vld [vmem:[%s229 + $0x18] sm:$0xff]
      %v269 = vld [vmem:[%s229 + $0x20] sm:$0xff]
      %v270 = vld [vmem:[%s229 + $0x28] sm:$0xff]
      %v271 = vld [vmem:[%s229 + $0x30] sm:$0xff]
      %v272 = vld [vmem:[%s229 + $0x38] sm:$0xff]
      %v273 = vld [vmem:[%s229 + $0x40] sm:$0xff]
      %v274 = vld [vmem:[%s229 + $0x48] sm:$0xff]
      %v275 = vld [vmem:[%s229 + $0x50] sm:$0xff]
      %v276 = vld [vmem:[%s229 + $0x58] sm:$0xff]
      %v277 = vld [vmem:[%s229 + $0x60] sm:$0xff]
      %v278 = vld [vmem:[%s229 + $0x68] sm:$0xff]
      %v279 = vld [vmem:[%s229 + $0x70] sm:$0xff]
      %v280 = vld [vmem:[%s229 + $0x78] sm:$0xff]
      %v282 = vperm.slane %v261, 0
      %v284 = vmul.f32 %v265, %v282
      %v285 = vmul.f32 %v266, %v282
      %v286 = vmul.f32 %v267, %v282
      %v287 = vmul.f32 %v268, %v282
      %v288 = vmul.f32 %v269, %v282
      %v289 = vmul.f32 %v270, %v282
      %v290 = vmul.f32 %v271, %v282
      %v291 = vmul.f32 %v272, %v282
      %v292 = vmul.f32 %v273, %v282
      %v293 = vmul.f32 %v274, %v282
      %v294 = vmul.f32 %v275, %v282
      %v295 = vmul.f32 %v276, %v282
      %v296 = vmul.f32 %v277, %v282
      %v297 = vmul.f32 %v278, %v282
      %v298 = vmul.f32 %v279, %v282
      %v299 = vmul.f32 %v280, %v282
      %v301 = vperm.slane %v264, 0
      %v303 = vadd.f32 %v284, %v301
      %v304 = vadd.f32 %v285, %v301
      %v305 = vadd.f32 %v286, %v301
      %v306 = vadd.f32 %v287, %v301
      %v307 = vadd.f32 %v288, %v301
      %v308 = vadd.f32 %v289, %v301
      %v309 = vadd.f32 %v290, %v301
      %v310 = vadd.f32 %v291, %v301
      %v311 = vadd.f32 %v292, %v301
      %v312 = vadd.f32 %v293, %v301
      %v313 = vadd.f32 %v294, %v301
      %v314 = vadd.f32 %v295, %v301
      %v315 = vadd.f32 %v296, %v301
      %v316 = vadd.f32 %v297, %v301
      %v317 = vadd.f32 %v298, %v301
      %v318 = vadd.f32 %v299, %v301
      %v319 = vmax.f32 %v303, 0.0
      %v320 = vmax.f32 %v304, 0.0
      %v321 = vmax.f32 %v305, 0.0
      %v322 = vmax.f32 %v306, 0.0
      %v323 = vmax.f32 %v307, 0.0
      %v324 = vmax.f32 %v308, 0.0
      %v325 = vmax.f32 %v309, 0.0
      %v326 = vmax.f32 %v310, 0.0
      %v327 = vmax.f32 %v311, 0.0
      %v328 = vmax.f32 %v312, 0.0
      %v329 = vmax.f32 %v313, 0.0
      %v330 = vmax.f32 %v314, 0.0
      %v331 = vmax.f32 %v315, 0.0
      %v332 = vmax.f32 %v316, 0.0
      %v333 = vmax.f32 %v317, 0.0
      %v334 = vmax.f32 %v318, 0.0
      %v335 = vpack.c.bf16 %v319, %v319
      %v336 = vpack.c.bf16 %v320, %v320
      %v337 = vpack.c.bf16 %v321, %v321
      %v338 = vpack.c.bf16 %v322, %v322
      %v339 = vpack.c.bf16 %v323, %v323
      %v340 = vpack.c.bf16 %v324, %v324
      %v341 = vpack.c.bf16 %v325, %v325
      %v342 = vpack.c.bf16 %v326, %v326
      %v343 = vpack.c.bf16 %v327, %v327
      %v344 = vpack.c.bf16 %v328, %v328
      %v345 = vpack.c.bf16 %v329, %v329
      %v346 = vpack.c.bf16 %v330, %v330
      %v347 = vpack.c.bf16 %v331, %v331
      %v348 = vpack.c.bf16 %v332, %v332
      %v349 = vpack.c.bf16 %v333, %v333
      %v350 = vpack.c.bf16 %v334, %v334
      %351 = vst [vmem:[%s240] sm:$0xf] %v335
      %352 = vst [vmem:[%s240 + $0x4] sm:$0xf] %v336
      %353 = vst [vmem:[%s240 + $0x8] sm:$0xf] %v337
      %354 = vst [vmem:[%s240 + $0xc] sm:$0xf] %v338
      %355 = vst [vmem:[%s240 + $0x10] sm:$0xf] %v339
      %356 = vst [vmem:[%s240 + $0x14] sm:$0xf] %v340
      %357 = vst [vmem:[%s240 + $0x18] sm:$0xf] %v341
      %358 = vst [vmem:[%s240 + $0x1c] sm:$0xf] %v342
      %359 = vst [vmem:[%s240 + $0x20] sm:$0xf] %v343
      %360 = vst [vmem:[%s240 + $0x24] sm:$0xf] %v344
      %361 = vst [vmem:[%s240 + $0x28] sm:$0xf] %v345
      %362 = vst [vmem:[%s240 + $0x2c] sm:$0xf] %v346
      %363 = vst [vmem:[%s240 + $0x30] sm:$0xf] %v347
      %364 = vst [vmem:[%s240 + $0x34] sm:$0xf] %v348
      %365 = vst [vmem:[%s240 + $0x38] sm:$0xf] %v349
      %366 = vst [vmem:[%s240 + $0x3c] sm:$0xf] %v350
      %s367 = smul.u32 8, %s20
      %p368 = scmp.lt.s32.totalorder %s19, 1
      %s369 = scalar_select %p368, %s19, 1
      %p370 = scmp.lt.s32.totalorder %s367, 15
      %s371 = scalar_select %p370, %s367, 15
      %s372 = smul.addr %s371, 2
      %s373 = smul.addr %s369, 32
      %s374 = sadd.s32 %s372, %s373
      %s375 = smul.addr %s374, 4
      %s376 = scalar_lea.vmem %s4, %s375
      // Predicated region
      $region37: #{double_conv.5} parent=35 // pred_check
        %p377 = pneg %p138
      $region38: #{double_conv.5} parent=35 // pred_check_branch
        %379 = sbr.rel (%p377) target = $region40
      $region39: #{double_conv.5} parent=35 // pred_region
        %s380 = smul.u32 8, %s20
      $region40: #{double_conv.5} parent=35 // pred_fallthru
        _
    $region36: #{double_conv.5} parent=5 // pred_fallthru
      _
    %p381 = scmp.le.s32.totalorder 2, %s10
    // Predicated region
    $region41: #{double_conv.5} parent=5 // pred_check
      %p382 = pneg %p381
    $region42: #{double_conv.5} parent=5 // pred_check_branch
      %384 = sbr.rel (%p382) target = $region44
    $region43: #{double_conv.5} parent=5 // pred_region
      %s385 = ssub.s32 %s10, 2
      // Predicated region
      $region45: #{double_conv.5} parent=43 // pred_check
        %p386 = pneg %p144
      $region46: #{double_conv.5} parent=43 // pred_check_branch
        %388 = sbr.rel (%p386) target = $region48
      $region47: #{double_conv.5} parent=43 // pred_region
        %s389 = smul.u32 8, %s22
        %p390 = scmp.lt.s32.totalorder %s21, 1
        %s391 = scalar_select %p390, %s21, 1
        %p392 = scmp.lt.s32.totalorder %s389, 15
        %s393 = scalar_select %p392, %s389, 15
        %s394 = smul.addr %s393, 2
        %s395 = smul.addr %s391, 32
        %s396 = sadd.s32 %s394, %s395
        %s397 = smul.addr %s396, 4
        %s398 = scalar_lea.vmem %s4, %s397
      $region48: #{double_conv.5} parent=43 // pred_fallthru
        _
    $region44: #{double_conv.5} parent=5 // pred_fallthru
      _
  $region6: #{double_conv.5} parent=0 // loop_footer
    %s14 = sadd.s32 1, %s10
  $region7: #{double_conv.5} parent=0 // loop_footer_branch
    %9 = sbr.rel target = $region3
  $region8: #{double_conv.5} parent=0 // loop_exit
    _

// kernel: double_conv.7
$region0: #{double_conv.7}
  #allocation0 [shape = 'u32[]', space=smem, size = 0x4, offset = 0x4, fixed_abs, tag = 'smem constant byte address 0x4 - core index']
  #allocation1 [shape = 'u32[72,128]{1,0:T(1,128)}', space=vmem, size = 0x9000, scoped, tag = 'internal scratch']
  %s0 = inlined_call_operand.vmem [shape: f32[2,16,16,128], index: 0, kind: input, shape index: {}]
  %s1 = inlined_call_operand.vmem [shape: f32[2,128], index: 1, kind: input, shape index: {}]
  %s2 = inlined_call_operand.vmem [shape: f32[1,128], index: 2, kind: input, shape index: {}]
  %s3 = inlined_call_operand.vmem [shape: f32[1,128], index: 3, kind: input, shape index: {}]
  %s4 = inlined_call_operand.vmem [shape: f32[2,16,16,128], index: 4, kind: output, shape index: {}]
  %s5 = sld [smem:[#allocation0]]
  $region49: #{double_conv.7} parent=0
    _
  %s7 = ssub.s32 1, %s5
  %s8 = scalar_select 0, %s7, %s5
  loop: start=0, step=1, limit=6
  $region2: #{double_conv.7} parent=0 // loop_pre_header
    _
  $region3: #{double_conv.7} parent=0 // loop_header
    %s10 = sphi 0, %s14
    %p11 = scmp.ge.s32.totalorder %s10, 6
    %s17 = sphi 0, %s29
    %s18 = sphi 0, %s25
    %s19 = sphi 0, %s17
    %s20 = sphi 0, %s18
    %s21 = sphi 0, %s19
    %s22 = sphi 0, %s20
    %s34 = sphi 0, %s36
    %s37 = sphi 0, %s34
    %s38 = sphi 0, %s37
    %s54 = sphi 0, %s38
    %s58 = sphi 0, %s58
    %s60 = sphi 0, %s58
    %s61 = sphi 0, %s60
    %s75 = sphi 0, %s61
    %s79 = sphi 0, %s79
    %s81 = sphi 0, %s79
    %s82 = sphi 0, %s81
    %s96 = sphi 0, %s82
    %s100 = sphi 0, %s100
    %s102 = sphi 0, %s100
    %s103 = sphi 0, %s102
    %s117 = sphi 0, %s103
    %s125 = sphi 0, %s127
    %s128 = sphi 0, %s125
    %s129 = sphi 0, %s128
    %s145 = sphi 0, %s129
  $region4: #{double_conv.7} parent=0 // loop_header_branch
    %13 = sbr.rel (%p11) target = $region8
  $region5: #{double_conv.7} parent=0 // loop_body
    %s15 = ssub.s32 %s10, 1
    %s16 = ssub.s32 %s10, 2
    %s23 = sadd.s32 1, %s18
    %p24 = scmp.ge.s32.totalorder %s23, 2
    %s25 = scalar_select %p24, 0, %s23
    %s26 = sadd.s32 1, %s17
    %s27 = scalar_select %p24, %s26, %s17
    %p28 = scmp.ge.s32.totalorder %s27, 2
    %s29 = scalar_select %p28, 0, %s27
    %s30 = ssub.s32 %s17, %s29
    %s31 = ssub.s32 %s18, %s25
    %s32 = sor.u32 %s30, %s31
    %p33 = scmp.eq.s32.totalorder %s32, 0
    %s35 = sadd.s32 %s34, 1
    %s36 = scalar_select %p33, %s34, %s35
    %p39 = pneg %p33
    %p40 = scmp.eq.s32.totalorder %s10, 3
    %p41 = por %p39, %p40
    %p42 = scmp.ne.s32.totalorder %s34, %s37
    %p43 = scmp.eq.s32.totalorder %s10, 0
    %p44 = por %p42, %p43
    %p45 = scmp.ne.s32.totalorder %s34, %s37
    %p46 = scmp.eq.s32.totalorder %s15, 3
    %p47 = por %p45, %p46
    %p48 = scmp.ne.s32.totalorder %s37, %s38
    %p49 = scmp.eq.s32.totalorder %s15, 0
    %p50 = por %p48, %p49
    %p51 = scmp.ne.s32.totalorder %s37, %s38
    %p52 = scmp.eq.s32.totalorder %s16, 3
    %p53 = por %p51, %p52
    %p55 = scmp.ne.s32.totalorder %s38, %s54
    %p56 = scmp.eq.s32.totalorder %s16, 0
    %p57 = por %p55, %p56
    %s59 = sadd.s32 %s58, 1
    %p62 = scmp.eq.s32.totalorder %s10, 3
    %p63 = scmp.ne.s32.totalorder %s58, %s60
    %p64 = scmp.eq.s32.totalorder %s10, 0
    %p65 = por %p63, %p64
    %p66 = scmp.ne.s32.totalorder %s58, %s60
    %p67 = scmp.eq.s32.totalorder %s15, 3
    %p68 = por %p66, %p67
    %p69 = scmp.ne.s32.totalorder %s60, %s61
    %p70 = scmp.eq.s32.totalorder %s15, 0
    %p71 = por %p69, %p70
    %p72 = scmp.ne.s32.totalorder %s60, %s61
    %p73 = scmp.eq.s32.totalorder %s16, 3
    %p74 = por %p72, %p73
    %p76 = scmp.ne.s32.totalorder %s61, %s75
    %p77 = scmp.eq.s32.totalorder %s16, 0
    %p78 = por %p76, %p77
    %s80 = sadd.s32 %s79, 1
    %p83 = scmp.eq.s32.totalorder %s10, 3
    %p84 = scmp.ne.s32.totalorder %s79, %s81
    %p85 = scmp.eq.s32.totalorder %s10, 0
    %p86 = por %p84, %p85
    %p87 = scmp.ne.s32.totalorder %s79, %s81
    %p88 = scmp.eq.s32.totalorder %s15, 3
    %p89 = por %p87, %p88
    %p90 = scmp.ne.s32.totalorder %s81, %s82
    %p91 = scmp.eq.s32.totalorder %s15, 0
    %p92 = por %p90, %p91
    %p93 = scmp.ne.s32.totalorder %s81, %s82
    %p94 = scmp.eq.s32.totalorder %s16, 3
    %p95 = por %p93, %p94
    %p97 = scmp.ne.s32.totalorder %s82, %s96
    %p98 = scmp.eq.s32.totalorder %s16, 0
    %p99 = por %p97, %p98
    %s101 = sadd.s32 %s100, 1
    %p104 = scmp.eq.s32.totalorder %s10, 3
    %p105 = scmp.ne.s32.totalorder %s100, %s102
    %p106 = scmp.eq.s32.totalorder %s10, 0
    %p107 = por %p105, %p106
    %p108 = scmp.ne.s32.totalorder %s100, %s102
    %p109 = scmp.eq.s32.totalorder %s15, 3
    %p110 = por %p108, %p109
    %p111 = scmp.ne.s32.totalorder %s102, %s103
    %p112 = scmp.eq.s32.totalorder %s15, 0
    %p113 = por %p111, %p112
    %p114 = scmp.ne.s32.totalorder %s102, %s103
    %p115 = scmp.eq.s32.totalorder %s16, 3
    %p116 = por %p114, %p115
    %p118 = scmp.ne.s32.totalorder %s103, %s117
    %p119 = scmp.eq.s32.totalorder %s16, 0
    %p120 = por %p118, %p119
    %s121 = ssub.s32 %s17, %s29
    %s122 = ssub.s32 %s18, %s25
    %s123 = sor.u32 %s121, %s122
    %p124 = scmp.eq.s32.totalorder %s123, 0
    %s126 = sadd.s32 %s125, 1
    %s127 = scalar_select %p124, %s125, %s126
    %p130 = pneg %p124
    %p131 = scmp.eq.s32.totalorder %s10, 3
    %p132 = por %p130, %p131
    %p133 = scmp.ne.s32.totalorder %s125, %s128
    %p134 = scmp.eq.s32.totalorder %s10, 0
    %p135 = por %p133, %p134
    %p136 = scmp.ne.s32.totalorder %s125, %s128
    %p137 = scmp.eq.s32.totalorder %s15, 3
    %p138 = por %p136, %p137
    %p139 = scmp.ne.s32.totalorder %s128, %s129
    %p140 = scmp.eq.s32.totalorder %s15, 0
    %p141 = por %p139, %p140
    %p142 = scmp.ne.s32.totalorder %s128, %s129
    %p143 = scmp.eq.s32.totalorder %s16, 3
    %p144 = por %p142, %p143
    %p146 = scmp.ne.s32.totalorder %s129, %s145
    %p147 = scmp.eq.s32.totalorder %s16, 0
    %p148 = por %p146, %p147
    %p149 = scmp.le.s32.totalorder 1, %s10
    %p150 = scmp.lt.s32.totalorder %s10, 5
    %p151 = pnand %p149, %p150
    %p152 = pneg %p151
    // Predicated region
    $region9: #{double_conv.7} parent=5 // pred_check
      _
    $region10: #{double_conv.7} parent=5 // pred_check_branch
      %154 = sbr.rel (%p151) target = $region12
    $region11: #{double_conv.7} parent=5 // pred_region
      %s155 = ssub.s32 %s10, 1
      // Predicated region
      $region13: #{double_conv.7} parent=11 // pred_check
        %p156 = pneg %p71
      $region14: #{double_conv.7} parent=11 // pred_check_branch
        %158 = sbr.rel (%p156) target = $region16
      $region15: #{double_conv.7} parent=11 // pred_region
        _
      $region16: #{double_conv.7} parent=11 // pred_fallthru
        _
      // Predicated region
      $region17: #{double_conv.7} parent=11 // pred_check
        %p159 = pneg %p92
      $region18: #{double_conv.7} parent=11 // pred_check_branch
        %161 = sbr.rel (%p159) target = $region20
      $region19: #{double_conv.7} parent=11 // pred_region
        _
      $region20: #{double_conv.7} parent=11 // pred_fallthru
        _
      // Predicated region
      $region21: #{double_conv.7} parent=11 // pred_check
        %p162 = pneg %p113
      $region22: #{double_conv.7} parent=11 // pred_check_branch
        %164 = sbr.rel (%p162) target = $region24
      $region23: #{double_conv.7} parent=11 // pred_region
        _
      $region24: #{double_conv.7} parent=11 // pred_fallthru
        _
    $region12: #{double_conv.7} parent=5 // pred_fallthru
      _
    %p165 = scmp.lt.s32.totalorder %s10, 4
    // Predicated region
    $region25: #{double_conv.7} parent=5 // pred_check
      %p166 = pneg %p165
    $region26: #{double_conv.7} parent=5 // pred_check_branch
      %168 = sbr.rel (%p166) target = $region28
    $region27: #{double_conv.7} parent=5 // pred_region
      // Predicated region
      $region29: #{double_conv.7} parent=27 // pred_check
        %p169 = pneg %p44
      $region30: #{double_conv.7} parent=27 // pred_check_branch
        %171 = sbr.rel (%p169) target = $region32
      $region31: #{double_conv.7} parent=27 // pred_region
        %s172 = smul.u32 8, %s18
        %p173 = scmp.lt.s32.totalorder %s17, 1
        %s174 = scalar_select %p173, %s17, 1
        %p175 = scmp.lt.s32.totalorder %s172, 15
        %s176 = scalar_select %p175, %s172, 15
        %s177 = smul.addr %s176, 2
        %s178 = smul.addr %s174, 32
        %s179 = sadd.s32 %s177, %s178
        %s180 = smul.addr %s179, 8
        %s181 = scalar_lea.vmem %s0, %s180
        %s182 = smul.u32 8, %s18
      $region32: #{double_conv.7} parent=27 // pred_fallthru
        _
    $region28: #{double_conv.7} parent=5 // pred_fallthru
      _
    %p183 = scmp.le.s32.totalorder 1, %s10
    %p184 = scmp.lt.s32.totalorder %s10, 5
    %p185 = pnand %p183, %p184
    %p186 = pneg %p185
    // Predicated region
    $region33: #{double_conv.7} parent=5 // pred_check
      _
    $region34: #{double_conv.7} parent=5 // pred_check_branch
      %188 = sbr.rel (%p185) target = $region36
    $region35: #{double_conv.7} parent=5 // pred_region
      %s189 = ssub.s32 %s10, 1
      %s190 = smul.u32 8, %s20
      %p191 = scmp.lt.s32.totalorder %s19, 1
      %s192 = scalar_select %p191, %s19, 1
      %p193 = scmp.lt.s32.totalorder %s190, 15
      %s194 = scalar_select %p193, %s190, 15
      %s195 = smul.addr %s194, 2
      %s196 = smul.addr %s192, 32
      %s197 = sadd.s32 %s195, %s196
      %s198 = smul.addr %s197, 8
      %s199 = scalar_lea.vmem %s0, %s198
      %p200 = pneg %p50
      %p201 = pneg %p47
      %p202 = pneg %p71
      %p203 = pneg %p68
      %p204 = pneg %p92
      %p205 = pneg %p89
      %p206 = pneg %p113
      %p207 = pneg %p110
      %p208 = pneg %p141
      %p209 = pneg %p138
      %s210 = smul.u32 8, %s20
      %p211 = scmp.lt.s32.totalorder %s19, 1
      %s212 = scalar_select %p211, %s19, 1
      %p213 = scmp.lt.s32.totalorder %s210, 15
      %s214 = scalar_select %p213, %s210, 15
      %s215 = smul.addr %s214, 2
      %s216 = smul.addr %s212, 32
      %s217 = sadd.s32 %s215, %s216
      %s218 = smul.addr %s217, 8
      %s219 = scalar_lea.vmem %s4, %s218
      %s220 = smul.u32 8, %s20
      %p221 = scmp.lt.s32.totalorder %s19, 1
      %s222 = scalar_select %p221, %s19, 1
      %p223 = scmp.lt.s32.totalorder %s220, 15
      %s224 = scalar_select %p223, %s220, 15
      %s225 = smul.addr %s224, 2
      %s226 = smul.addr %s222, 32
      %s227 = sadd.s32 %s225, %s226
      %s228 = smul.addr %s227, 8
      %s229 = scalar_lea.vmem %s0, %s228
      %s230 = smul.u32 8, %s20
      %s231 = smul.u32 8, %s20
      %p232 = scmp.lt.s32.totalorder %s19, 1
      %s233 = scalar_select %p232, %s19, 1
      %p234 = scmp.lt.s32.totalorder %s231, 15
      %s235 = scalar_select %p234, %s231, 15
      %s236 = smul.addr %s235, 2
      %s237 = smul.addr %s233, 32
      %s238 = sadd.s32 %s236, %s237
      %s239 = smul.addr %s238, 8
      %s240 = scalar_lea.vmem %s4, %s239
      %s241 = smul.u32 8, %s20
      %v242 = vld [vmem:[%s1] sm:$0x1]
      %v243 = vmul.f32 %v242, 0.001953125
      %v244 = vld [vmem:[%s1 + $0x1] sm:$0x1]
      %v245 = vmul.f32 %v244, 0.001953125
      %v246 = vmul.f32 %v243, %v243
      %v247 = vsub.f32 %v245, %v246
      %v248 = vmax.f32 %v247, 0.0
      %v249 = vld [vmem:[%s2] sm:$0x1]
      %v250 = vadd.f32 %v248, 1e-05
      %v251 = vrsqrt.pop %v250
      %v252 = vmul.f32 %v251, %v250
      %v253 = vmul.f32 %v252, %v251
      %v254 = vmul.f32 0.5, %v253
      %v255 = vsub.f32 1.5, %v254
      %v256 = vmul.f32 %v251, %v255
      %vm257 = vweird.f32 %v250
      %vm258 = vweird.f32 %v251
      %vm259 = vmor %vm257, %vm258
      %v260 = vsel %vm259, %v251, %v256
      %v261 = vmul.f32 %v249, %v260
      %v262 = vld [vmem:[%s3] sm:$0x1]
      %v263 = vmul.f32 %v243, %v261
      %v264 = vsub.f32 %v262, %v263
      %v265 = vld [vmem:[%s229] sm:$0xff]
      %v266 = vld [vmem:[%s229 + $0x8] sm:$0xff]
      %v267 = vld [vmem:[%s229 + $0x10] sm:$0xff]
      %v268 = vld [vmem:[%s229 + $0x18] sm:$0xff]
      %v269 = vld [vmem:[%s229 + $0x20] sm:$0xff]
      %v270 = vld [vmem:[%s229 + $0x28] sm:$0xff]
      %v271 = vld [vmem:[%s229 + $0x30] sm:$0xff]
      %v272 = vld [vmem:[%s229 + $0x38] sm:$0xff]
      %v273 = vld [vmem:[%s229 + $0x40] sm:$0xff]
      %v274 = vld [vmem:[%s229 + $0x48] sm:$0xff]
      %v275 = vld [vmem:[%s229 + $0x50] sm:$0xff]
      %v276 = vld [vmem:[%s229 + $0x58] sm:$0xff]
      %v277 = vld [vmem:[%s229 + $0x60] sm:$0xff]
      %v278 = vld [vmem:[%s229 + $0x68] sm:$0xff]
      %v279 = vld [vmem:[%s229 + $0x70] sm:$0xff]
      %v280 = vld [vmem:[%s229 + $0x78] sm:$0xff]
      %v282 = vperm.slane %v261, 0
      %v284 = vmul.f32 %v265, %v282
      %v285 = vmul.f32 %v266, %v282
      %v286 = vmul.f32 %v267, %v282
      %v287 = vmul.f32 %v268, %v282
      %v288 = vmul.f32 %v269, %v282
      %v289 = vmul.f32 %v270, %v282
      %v290 = vmul.f32 %v271, %v282
      %v291 = vmul.f32 %v272, %v282
      %v292 = vmul.f32 %v273, %v282
      %v293 = vmul.f32 %v274, %v282
      %v294 = vmul.f32 %v275, %v282
      %v295 = vmul.f32 %v276, %v282
      %v296 = vmul.f32 %v277, %v282
      %v297 = vmul.f32 %v278, %v282
      %v298 = vmul.f32 %v279, %v282
      %v299 = vmul.f32 %v280, %v282
      %v301 = vperm.slane %v264, 0
      %v303 = vadd.f32 %v284, %v301
      %v304 = vadd.f32 %v285, %v301
      %v305 = vadd.f32 %v286, %v301
      %v306 = vadd.f32 %v287, %v301
      %v307 = vadd.f32 %v288, %v301
      %v308 = vadd.f32 %v289, %v301
      %v309 = vadd.f32 %v290, %v301
      %v310 = vadd.f32 %v291, %v301
      %v311 = vadd.f32 %v292, %v301
      %v312 = vadd.f32 %v293, %v301
      %v313 = vadd.f32 %v294, %v301
      %v314 = vadd.f32 %v295, %v301
      %v315 = vadd.f32 %v296, %v301
      %v316 = vadd.f32 %v297, %v301
      %v317 = vadd.f32 %v298, %v301
      %v318 = vadd.f32 %v299, %v301
      %v319 = vmax.f32 %v303, 0.0
      %v320 = vmax.f32 %v304, 0.0
      %v321 = vmax.f32 %v305, 0.0
      %v322 = vmax.f32 %v306, 0.0
      %v323 = vmax.f32 %v307, 0.0
      %v324 = vmax.f32 %v308, 0.0
      %v325 = vmax.f32 %v309, 0.0
      %v326 = vmax.f32 %v310, 0.0
      %v327 = vmax.f32 %v311, 0.0
      %v328 = vmax.f32 %v312, 0.0
      %v329 = vmax.f32 %v313, 0.0
      %v330 = vmax.f32 %v314, 0.0
      %v331 = vmax.f32 %v315, 0.0
      %v332 = vmax.f32 %v316, 0.0
      %v333 = vmax.f32 %v317, 0.0
      %v334 = vmax.f32 %v318, 0.0
      %335 = vst [vmem:[%s240] sm:$0xff] %v319
      %336 = vst [vmem:[%s240 + $0x8] sm:$0xff] %v320
      %337 = vst [vmem:[%s240 + $0x10] sm:$0xff] %v321
      %338 = vst [vmem:[%s240 + $0x18] sm:$0xff] %v322
      %339 = vst [vmem:[%s240 + $0x20] sm:$0xff] %v323
      %340 = vst [vmem:[%s240 + $0x28] sm:$0xff] %v324
      %341 = vst [vmem:[%s240 + $0x30] sm:$0xff] %v325
      %342 = vst [vmem:[%s240 + $0x38] sm:$0xff] %v326
      %343 = vst [vmem:[%s240 + $0x40] sm:$0xff] %v327
      %344 = vst [vmem:[%s240 + $0x48] sm:$0xff] %v328
      %345 = vst [vmem:[%s240 + $0x50] sm:$0xff] %v329
      %346 = vst [vmem:[%s240 + $0x58] sm:$0xff] %v330
      %347 = vst [vmem:[%s240 + $0x60] sm:$0xff] %v331
      %348 = vst [vmem:[%s240 + $0x68] sm:$0xff] %v332
      %349 = vst [vmem:[%s240 + $0x70] sm:$0xff] %v333
      %350 = vst [vmem:[%s240 + $0x78] sm:$0xff] %v334
      %s351 = smul.u32 8, %s20
      %p352 = scmp.lt.s32.totalorder %s19, 1
      %s353 = scalar_select %p352, %s19, 1
      %p354 = scmp.lt.s32.totalorder %s351, 15
      %s355 = scalar_select %p354, %s351, 15
      %s356 = smul.addr %s355, 2
      %s357 = smul.addr %s353, 32
      %s358 = sadd.s32 %s356, %s357
      %s359 = smul.addr %s358, 8
      %s360 = scalar_lea.vmem %s4, %s359
      // Predicated region
      $region37: #{double_conv.7} parent=35 // pred_check
        %p361 = pneg %p138
      $region38: #{double_conv.7} parent=35 // pred_check_branch
        %363 = sbr.rel (%p361) target = $region40
      $region39: #{double_conv.7} parent=35 // pred_region
        %s364 = smul.u32 8, %s20
      $region40: #{double_conv.7} parent=35 // pred_fallthru
        _
    $region36: #{double_conv.7} parent=5 // pred_fallthru
      _
    %p365 = scmp.le.s32.totalorder 2, %s10
    // Predicated region
    $region41: #{double_conv.7} parent=5 // pred_check
      %p366 = pneg %p365
    $region42: #{double_conv.7} parent=5 // pred_check_branch
      %368 = sbr.rel (%p366) target = $region44
    $region43: #{double_conv.7} parent=5 // pred_region
      %s369 = ssub.s32 %s10, 2
      // Predicated region
      $region45: #{double_conv.7} parent=43 // pred_check
        %p370 = pneg %p144
      $region46: #{double_conv.7} parent=43 // pred_check_branch
        %372 = sbr.rel (%p370) target = $region48
      $region47: #{double_conv.7} parent=43 // pred_region
        %s373 = smul.u32 8, %s22
        %p374 = scmp.lt.s32.totalorder %s21, 1
        %s375 = scalar_select %p374, %s21, 1
        %p376 = scmp.lt.s32.totalorder %s373, 15
        %s377 = scalar_select %p376, %s373, 15
        %s378 = smul.addr %s377, 2
        %s379 = smul.addr %s375, 32
        %s380 = sadd.s32 %s378, %s379
        %s381 = smul.addr %s380, 8
        %s382 = scalar_lea.vmem %s4, %s381
      $region48: #{double_conv.7} parent=43 // pred_fallthru
        _
    $region44: #{double_conv.7} parent=5 // pred_fallthru
      _
  $region6: #{double_conv.7} parent=0 // loop_footer
    %s14 = sadd.s32 1, %s10
  $region7: #{double_conv.7} parent=0 // loop_footer_branch
    %9 = sbr.rel target = $region3
  $region8: #{double_conv.7} parent=0 // loop_exit
    _

// kernel: double_conv.4
$region0: #{double_conv.4}
  #allocation0 [shape = 'u32[]', space=smem, size = 0x4, offset = 0x4, fixed_abs, tag = 'smem constant byte address 0x4 - core index']
  #allocation1 [shape = 'u32[72,128]{1,0:T(1,128)}', space=vmem, size = 0x9000, scoped, tag = 'internal scratch']
  %s0 = inlined_call_operand.vmem [shape: bf16[2,18,18,4], index: 0, kind: input, shape index: {}]
  %s1 = inlined_call_operand.vmem [shape: bf16[36,128], index: 1, kind: input, shape index: {}]
  %s2 = inlined_call_operand.vmem [shape: f32[2,16,16,128], index: 2, kind: output, shape index: {0}]
  %s3 = inlined_call_operand.vmem [shape: f32[2,2,128], index: 3, kind: output, shape index: {1}]
  %4 = xla_tuple %s2, %s3
  %s5 = sld [smem:[#allocation0]]
  $region57: #{double_conv.4} parent=0
    _
  %s7 = ssub.s32 1, %s5
  %s8 = scalar_select 0, %s7, %s5
  loop: start=0, step=1, limit=6
  $region2: #{double_conv.4} parent=0 // loop_pre_header
    _
  $region3: #{double_conv.4} parent=0 // loop_header
    %s10 = sphi 0, %s14
    %p11 = scmp.ge.s32.totalorder %s10, 6
    %s17 = sphi 0, %s29
    %s18 = sphi 0, %s25
    %s19 = sphi 0, %s17
    %s20 = sphi 0, %s18
    %s21 = sphi 0, %s19
    %s22 = sphi 0, %s20
    %s32 = sphi 0, %s34
    %s35 = sphi 0, %s32
    %s36 = sphi 0, %s35
    %s52 = sphi 0, %s36
    %s56 = sphi 0, %s56
    %s58 = sphi 0, %s56
    %s59 = sphi 0, %s58
    %s73 = sphi 0, %s59
    %s81 = sphi 0, %s83
    %s84 = sphi 0, %s81
    %s85 = sphi 0, %s84
    %s101 = sphi 0, %s85
    %s107 = sphi 0, %s109
    %s110 = sphi 0, %s107
    %s111 = sphi 0, %s110
    %s127 = sphi 0, %s111
  $region4: #{double_conv.4} parent=0 // loop_header_branch
    %13 = sbr.rel (%p11) target = $region8
  $region5: #{double_conv.4} parent=0 // loop_body
    %s15 = ssub.s32 %s10, 1
    %s16 = ssub.s32 %s10, 2
    %s23 = sadd.s32 1, %s18
    %p24 = scmp.ge.s32.totalorder %s23, 2
    %s25 = scalar_select %p24, 0, %s23
    %s26 = sadd.s32 1, %s17
    %s27 = scalar_select %p24, %s26, %s17
    %p28 = scmp.ge.s32.totalorder %s27, 2
    %s29 = scalar_select %p28, 0, %s27
    %s30 = ssub.s32 %s17, %s29
    %p31 = scmp.eq.s32.totalorder %s30, 0
    %s33 = sadd.s32 %s32, 1
    %s34 = scalar_select %p31, %s32, %s33
    %p37 = pneg %p31
    %p38 = scmp.eq.s32.totalorder %s10, 3
    %p39 = por %p37, %p38
    %p40 = scmp.ne.s32.totalorder %s32, %s35
    %p41 = scmp.eq.s32.totalorder %s10, 0
    %p42 = por %p40, %p41
    %p43 = scmp.ne.s32.totalorder %s32, %s35
    %p44 = scmp.eq.s32.totalorder %s15, 3
    %p45 = por %p43, %p44
    %p46 = scmp.ne.s32.totalorder %s35, %s36
    %p47 = scmp.eq.s32.totalorder %s15, 0
    %p48 = por %p46, %p47
    %p49 = scmp.ne.s32.totalorder %s35, %s36
    %p50 = scmp.eq.s32.totalorder %s16, 3
    %p51 = por %p49, %p50
    %p53 = scmp.ne.s32.totalorder %s36, %s52
    %p54 = scmp.eq.s32.totalorder %s16, 0
    %p55 = por %p53, %p54
    %s57 = sadd.s32 %s56, 1
    %p60 = scmp.eq.s32.totalorder %s10, 3
    %p61 = scmp.ne.s32.totalorder %s56, %s58
    %p62 = scmp.eq.s32.totalorder %s10, 0
    %p63 = por %p61, %p62
    %p64 = scmp.ne.s32.totalorder %s56, %s58
    %p65 = scmp.eq.s32.totalorder %s15, 3
    %p66 = por %p64, %p65
    %p67 = scmp.ne.s32.totalorder %s58, %s59
    %p68 = scmp.eq.s32.totalorder %s15, 0
    %p69 = por %p67, %p68
    %p70 = scmp.ne.s32.totalorder %s58, %s59
    %p71 = scmp.eq.s32.totalorder %s16, 3
    %p72 = por %p70, %p71
    %p74 = scmp.ne.s32.totalorder %s59, %s73
    %p75 = scmp.eq.s32.totalorder %s16, 0
    %p76 = por %p74, %p75
    %s77 = ssub.s32 %s17, %s29
    %s78 = ssub.s32 %s18, %s25
    %s79 = sor.u32 %s77, %s78
    %p80 = scmp.eq.s32.totalorder %s79, 0
    %s82 = sadd.s32 %s81, 1
    %s83 = scalar_select %p80, %s81, %s82
    %p86 = pneg %p80
    %p87 = scmp.eq.s32.totalorder %s10, 3
    %p88 = por %p86, %p87
    %p89 = scmp.ne.s32.totalorder %s81, %s84
    %p90 = scmp.eq.s32.totalorder %s10, 0
    %p91 = por %p89, %p90
    %p92 = scmp.ne.s32.totalorder %s81, %s84
    %p93 = scmp.eq.s32.totalorder %s15, 3
    %p94 = por %p92, %p93
    %p95 = scmp.ne.s32.totalorder %s84, %s85
    %p96 = scmp.eq.s32.totalorder %s15, 0
    %p97 = por %p95, %p96
    %p98 = scmp.ne.s32.totalorder %s84, %s85
    %p99 = scmp.eq.s32.totalorder %s16, 3
    %p100 = por %p98, %p99
    %p102 = scmp.ne.s32.totalorder %s85, %s101
    %p103 = scmp.eq.s32.totalorder %s16, 0
    %p104 = por %p102, %p103
    %s105 = ssub.s32 %s17, %s29
    %p106 = scmp.eq.s32.totalorder %s105, 0
    %s108 = sadd.s32 %s107, 1
    %s109 = scalar_select %p106, %s107, %s108
    %p112 = pneg %p106
    %p113 = scmp.eq.s32.totalorder %s10, 3
    %p114 = por %p112, %p113
    %p115 = scmp.ne.s32.totalorder %s107, %s110
    %p116 = scmp.eq.s32.totalorder %s10, 0
    %p117 = por %p115, %p116
    %p118 = scmp.ne.s32.totalorder %s107, %s110
    %p119 = scmp.eq.s32.totalorder %s15, 3
    %p120 = por %p118, %p119
    %p121 = scmp.ne.s32.totalorder %s110, %s111
    %p122 = scmp.eq.s32.totalorder %s15, 0
    %p123 = por %p121, %p122
    %p124 = scmp.ne.s32.totalorder %s110, %s111
    %p125 = scmp.eq.s32.totalorder %s16, 3
    %p126 = por %p124, %p125
    %p128 = scmp.ne.s32.totalorder %s111, %s127
    %p129 = scmp.eq.s32.totalorder %s16, 0
    %p130 = por %p128, %p129
    %p131 = scmp.le.s32.totalorder 1, %s10
    %p132 = scmp.lt.s32.totalorder %s10, 5
    %p133 = pnand %p131, %p132
    %p134 = pneg %p133
    // Predicated region
    $region9: #{double_conv.4} parent=5 // pred_check
      _
    $region10: #{double_conv.4} parent=5 // pred_check_branch
      %136 = sbr.rel (%p133) target = $region12
    $region11: #{double_conv.4} parent=5 // pred_region
      %s137 = ssub.s32 %s10, 1
      // Predicated region
      $region13: #{double_conv.4} parent=11 // pred_check
        %p138 = pneg %p69
      $region14: #{double_conv.4} parent=11 // pred_check_branch
        %140 = sbr.rel (%p138) target = $region16
      $region15: #{double_conv.4} parent=11 // pred_region
        _
      $region16: #{double_conv.4} parent=11 // pred_fallthru
        _
    $region12: #{double_conv.4} parent=5 // pred_fallthru
      _
    %p141 = scmp.lt.s32.totalorder %s10, 4
    // Predicated region
    $region17: #{double_conv.4} parent=5 // pred_check
      %p142 = pneg %p141
    $region18: #{double_conv.4} parent=5 // pred_check_branch
      %144 = sbr.rel (%p142) target = $region20
    $region19: #{double_conv.4} parent=5 // pred_region
      // Predicated region
      $region21: #{double_conv.4} parent=19 // pred_check
        %p145 = pneg %p42
      $region22: #{double_conv.4} parent=19 // pred_check_branch
        %147 = sbr.rel (%p145) target = $region24
      $region23: #{double_conv.4} parent=19 // pred_region
        %p148 = scmp.lt.s32.totalorder %s17, 1
        %s149 = scalar_select %p148, %s17, 1
        %s150 = smul.addr %s149, 54
        %s151 = smul.addr %s150, 4
        %s152 = scalar_lea.vmem %s0, %s151
      $region24: #{double_conv.4} parent=19 // pred_fallthru
        _
    $region20: #{double_conv.4} parent=5 // pred_fallthru
      _
    %p153 = scmp.le.s32.totalorder 1, %s10
    %p154 = scmp.lt.s32.totalorder %s10, 5
    %p155 = pnand %p153, %p154
    %p156 = pneg %p155
    // Predicated region
    $region25: #{double_conv.4} parent=5 // pred_check
      _
    $region26: #{double_conv.4} parent=5 // pred_check_branch
      %158 = sbr.rel (%p155) target = $region28
    $region27: #{double_conv.4} parent=5 // pred_region
      %s159 = ssub.s32 %s10, 1
      %p160 = scmp.lt.s32.totalorder %s19, 1
      %s161 = scalar_select %p160, %s19, 1
      %s162 = smul.addr %s161, 54
      %s163 = smul.addr %s162, 4
      %s164 = scalar_lea.vmem %s0, %s163
      %p165 = pneg %p48
      %p166 = pneg %p45
      %p167 = pneg %p69
      %p168 = pneg %p66
      %p169 = pneg %p97
      %p170 = pneg %p94
      %s171 = smul.u32 8, %s20
      %p172 = scmp.lt.s32.totalorder %s19, 1
      %s173 = scalar_select %p172, %s19, 1
      %p174 = scmp.lt.s32.totalorder %s171, 15
      %s175 = scalar_select %p174, %s171, 15
      %s176 = smul.addr %s175, 2
      %s177 = smul.addr %s173, 32
      %s178 = sadd.s32 %s176, %s177
      %s179 = smul.addr %s178, 8
      %s180 = scalar_lea.vmem %s2, %s179
      %p181 = pneg %p123
      %p182 = pneg %p120
      %p183 = scmp.lt.s32.totalorder %s19, 1
      %s184 = scalar_select %p183, %s19, 1
      %s185 = smul.addr %s184, 2
      %s186 = scalar_lea.vmem %s3, %s185
      %p187 = scmp.lt.s32.totalorder %s19, 1
      %s188 = scalar_select %p187, %s19, 1
      %s189 = smul.addr %s188, 54
      %s190 = smul.addr %s189, 4
      %s191 = scalar_lea.vmem %s0, %s190
      %s192 = smul.u32 8, %s20
      %p193 = scmp.lt.s32.totalorder %s19, 1
      %s194 = scalar_select %p193, %s19, 1
      %p195 = scmp.lt.s32.totalorder %s192, 15
      %s196 = scalar_select %p195, %s192, 15
      %s197 = smul.addr %s196, 2
      %s198 = smul.addr %s194, 32
      %s199 = sadd.s32 %s197, %s198
      %s200 = smul.addr %s199, 8
      %s201 = scalar_lea.vmem %s2, %s200
      %s202 = smul.u32 8, %s20
      %p203 = scmp.lt.s32.totalorder %s19, 1
      %s204 = scalar_select %p203, %s19, 1
      %s205 = smul.addr %s204, 2
      %s206 = scalar_lea.vmem %s3, %s205
      %s208 = smul.u32 %s20, 8
      %s209 = smul.u32 %s208, 3
      %s210 = smul.addr %s209, 4
      %s211 = scalar_lea.vmem %s191, %s210
      %v212 = vld [vmem:[%s211] sm:$0xf]
      %v213 = vld [vmem:[%s211 + $0x4] sm:$0xf]
      %v214 = vld [vmem:[%s211 + $0x8] sm:$0x1]
      %v215 = vld [vmem:[%s211 + $0xc] sm:$0xf]
      %v216 = vld [vmem:[%s211 + $0x10] sm:$0xf]
      %v217 = vld [vmem:[%s211 + $0x14] sm:$0x1]
      %v218 = vld [vmem:[%s211 + $0x18] sm:$0xf]
      %v219 = vld [vmem:[%s211 + $0x1c] sm:$0xf]
      %v220 = vld [vmem:[%s211 + $0x20] sm:$0x1]
      %v221 = vld [vmem:[%s211 + $0x24] sm:$0xf]
      %v222 = vld [vmem:[%s211 + $0x28] sm:$0xf]
      %v223 = vld [vmem:[%s211 + $0x2c] sm:$0x1]
      %v224 = vld [vmem:[%s211 + $0x30] sm:$0xf]
      %v225 = vld [vmem:[%s211 + $0x34] sm:$0xf]
      %v226 = vld [vmem:[%s211 + $0x38] sm:$0x1]
      %v227 = vld [vmem:[%s211 + $0x3c] sm:$0xf]
      %v228 = vld [vmem:[%s211 + $0x40] sm:$0xf]
      %v229 = vld [vmem:[%s211 + $0x44] sm:$0x1]
      %v230 = vld [vmem:[%s211 + $0x48] sm:$0xf]
      %v231 = vld [vmem:[%s211 + $0x4c] sm:$0xf]
      %v232 = vld [vmem:[%s211 + $0x50] sm:$0x1]
      %v233 = vld [vmem:[%s211 + $0x54] sm:$0xf]
      %v234 = vld [vmem:[%s211 + $0x58] sm:$0xf]
      %v235 = vld [vmem:[%s211 + $0x5c] sm:$0x1]
      %v236 = vld [vmem:[%s211 + $0x60] sm:$0xf]
      %v237 = vld [vmem:[%s211 + $0x64] sm:$0xf]
      %v238 = vld [vmem:[%s211 + $0x68] sm:$0x1]
      %v239 = vld [vmem:[%s211 + $0x6c] sm:$0xf]
      %v240 = vld [vmem:[%s211 + $0x70] sm:$0xf]
      %v241 = vld [vmem:[%s211 + $0x74] sm:$0x1]
      %v258 = vunpack.c.l.b16 %v212
      %v259 = vunpack.c.l.b16 %v213
      %v260 = vunpack.c.l.b16 %v215
      %v261 = vunpack.c.l.b16 %v216
      %v262 = vunpack.c.l.b16 %v218
      %v263 = vunpack.c.l.b16 %v219
      %v264 = vunpack.c.l.b16 %v221
      %v265 = vunpack.c.l.b16 %v222
      %v266 = vunpack.c.l.b16 %v224
      %v267 = vunpack.c.l.b16 %v225
      %v268 = vunpack.c.l.b16 %v227
      %v269 = vunpack.c.l.b16 %v228
      %v270 = vunpack.c.l.b16 %v230
      %v271 = vunpack.c.l.b16 %v231
      %v272 = vunpack.c.l.b16 %v233
      %v273 = vunpack.c.l.b16 %v234
      %v274 = vpack.c.b16 %v259, %v258
      %v275 = vpack.c.b16 %v261, %v260
      %v276 = vpack.c.b16 %v263, %v262
      %v277 = vpack.c.b16 %v265, %v264
      %v278 = vpack.c.b16 %v267, %v266
      %v279 = vpack.c.b16 %v269, %v268
      %v280 = vpack.c.b16 %v271, %v270
      %v281 = vpack.c.b16 %v273, %v272
      %v290 = vunpack.c.l.b16 %v214
      %v291 = vunpack.c.l.b16 %v217
      %v292 = vunpack.c.l.b16 %v220
      %v293 = vunpack.c.l.b16 %v223
      %v294 = vunpack.c.l.b16 %v226
      %v295 = vunpack.c.l.b16 %v229
      %v296 = vunpack.c.l.b16 %v232
      %v297 = vunpack.c.l.b16 %v235
      %v298 = vpack.c.b16 %v290, %v290
      %v299 = vpack.c.b16 %v291, %v291
      %v300 = vpack.c.b16 %v292, %v292
      %v301 = vpack.c.b16 %v293, %v293
      %v302 = vpack.c.b16 %v294, %v294
      %v303 = vpack.c.b16 %v295, %v295
      %v304 = vpack.c.b16 %v296, %v296
      %v305 = vpack.c.b16 %v297, %v297
      %vm306 = vsmask.f32 7424
      %v308 = vshrl.u32 %v274, 16
      %v310 = vshll.u32 %v274, 16
      %v312 = vrot.slane %v310, 1
      %v313 = vor.u32 %v308, %v312
      %v315 = vshll.u32 %v298, 16
      %v317 = vrot.slane %v315, 1
      %v318 = vsel %vm306, %v313, %v317
      %v320 = vshrl.u32 %v275, 16
      %v322 = vshll.u32 %v275, 16
      %v324 = vrot.slane %v322, 1
      %v325 = vor.u32 %v320, %v324
      %v327 = vshll.u32 %v299, 16
      %v329 = vrot.slane %v327, 1
      %v330 = vsel %vm306, %v325, %v329
      %v332 = vshrl.u32 %v276, 16
      %v334 = vshll.u32 %v276, 16
      %v336 = vrot.slane %v334, 1
      %v337 = vor.u32 %v332, %v336
      %v339 = vshll.u32 %v300, 16
      %v341 = vrot.slane %v339, 1
      %v342 = vsel %vm306, %v337, %v341
      %v344 = vshrl.u32 %v277, 16
      %v346 = vshll.u32 %v277, 16
      %v348 = vrot.slane %v346, 1
      %v349 = vor.u32 %v344, %v348
      %v351 = vshll.u32 %v301, 16
      %v353 = vrot.slane %v351, 1
      %v354 = vsel %vm306, %v349, %v353
      %v356 = vshrl.u32 %v278, 16
      %v358 = vshll.u32 %v278, 16
      %v360 = vrot.slane %v358, 1
      %v361 = vor.u32 %v356, %v360
      %v363 = vshll.u32 %v302, 16
      %v365 = vrot.slane %v363, 1
      %v366 = vsel %vm306, %v361, %v365
      %v368 = vshrl.u32 %v279, 16
      %v370 = vshll.u32 %v279, 16
      %v372 = vrot.slane %v370, 1
      %v373 = vor.u32 %v368, %v372
      %v375 = vshll.u32 %v303, 16
      %v377 = vrot.slane %v375, 1
      %v378 = vsel %vm306, %v373, %v377
      %v380 = vshrl.u32 %v280, 16
      %v382 = vshll.u32 %v280, 16
      %v384 = vrot.slane %v382, 1
      %v385 = vor.u32 %v380, %v384
      %v387 = vshll.u32 %v304, 16
      %v389 = vrot.slane %v387, 1
      %v390 = vsel %vm306, %v385, %v389
      %v392 = vshrl.u32 %v281, 16
      %v394 = vshll.u32 %v281, 16
      %v396 = vrot.slane %v394, 1
      %v397 = vor.u32 %v392, %v396
      %v399 = vshll.u32 %v305, 16
      %v401 = vrot.slane %v399, 1
      %v402 = vsel %vm306, %v397, %v401
      %403 = vrot.lane.b32.xlu0 %v318, 4
      %v404 = vpop.permute.xlu0 %403
      %405 = vrot.lane.b32.xlu0 %v330, 4
      %v406 = vpop.permute.xlu0 %405
      %407 = vrot.lane.b32.xlu0 %v342, 4
      %v408 = vpop.permute.xlu0 %407
      %409 = vrot.lane.b32.xlu0 %v354, 4
      %v410 = vpop.permute.xlu0 %409
      %411 = vrot.lane.b32.xlu0 %v366, 4
      %v412 = vpop.permute.xlu0 %411
      %413 = vrot.lane.b32.xlu0 %v378, 4
      %v414 = vpop.permute.xlu0 %413
      %415 = vrot.lane.b32.xlu0 %v390, 4
      %v416 = vpop.permute.xlu0 %415
      %417 = vrot.lane.b32.xlu0 %v402, 4
      %v418 = vpop.permute.xlu0 %417
      %vm419 = vcmask 1046528
      %v420 = vrot.slane %v274, 1
      %v421 = vrot.slane %v298, 1
      %v422 = vsel %vm419, %v420, %v421
      %v423 = vrot.slane %v275, 1
      %v424 = vrot.slane %v299, 1
      %v425 = vsel %vm419, %v423, %v424
      %v426 = vrot.slane %v276, 1
      %v427 = vrot.slane %v300, 1
      %v428 = vsel %vm419, %v426, %v427
      %v429 = vrot.slane %v277, 1
      %v430 = vrot.slane %v301, 1
      %v431 = vsel %vm419, %v429, %v430
      %v432 = vrot.slane %v278, 1
      %v433 = vrot.slane %v302, 1
      %v434 = vsel %vm419, %v432, %v433
      %v435 = vrot.slane %v279, 1
      %v436 = vrot.slane %v303, 1
      %v437 = vsel %vm419, %v435, %v436
      %v438 = vrot.slane %v280, 1
      %v439 = vrot.slane %v304, 1
      %v440 = vsel %vm419, %v438, %v439
      %v441 = vrot.slane %v281, 1
      %v442 = vrot.slane %v305, 1
      %v443 = vsel %vm419, %v441, %v442
      %444 = vrot.lane.b32.xlu0 %v422, 8
      %v445 = vpop.permute.xlu0 %444
      %446 = vrot.lane.b32.xlu0 %v425, 8
      %v447 = vpop.permute.xlu0 %446
      %448 = vrot.lane.b32.xlu0 %v428, 8
      %v449 = vpop.permute.xlu0 %448
      %450 = vrot.lane.b32.xlu0 %v431, 8
      %v451 = vpop.permute.xlu0 %450
      %452 = vrot.lane.b32.xlu0 %v434, 8
      %v453 = vpop.permute.xlu0 %452
      %454 = vrot.lane.b32.xlu0 %v437, 8
      %v455 = vpop.permute.xlu0 %454
      %456 = vrot.lane.b32.xlu0 %v440, 8
      %v457 = vpop.permute.xlu0 %456
      %458 = vrot.lane.b32.xlu0 %v443, 8
      %v459 = vpop.permute.xlu0 %458
      %v462 = vunpack.c.l.b16 %v236
      %v463 = vunpack.c.l.b16 %v237
      %v464 = vpack.c.b16 %v463, %v462
      %465 = vrot.lane.b32.xlu0 %v275, 12
      %v466 = vpop.permute.xlu0 %465
      %467 = vrot.lane.b32.xlu0 %v276, 12
      %v468 = vpop.permute.xlu0 %467
      %469 = vrot.lane.b32.xlu0 %v277, 12
      %v470 = vpop.permute.xlu0 %469
      %471 = vrot.lane.b32.xlu0 %v278, 12
      %v472 = vpop.permute.xlu0 %471
      %473 = vrot.lane.b32.xlu0 %v279, 12
      %v474 = vpop.permute.xlu0 %473
      %475 = vrot.lane.b32.xlu0 %v280, 12
      %v476 = vpop.permute.xlu0 %475
      %477 = vrot.lane.b32.xlu0 %v281, 12
      %v478 = vpop.permute.xlu0 %477
      %479 = vrot.lane.b32.xlu0 %v464, 12
      %v480 = vpop.permute.xlu0 %479
      %v482 = vunpack.c.l.b16 %v238
      %v483 = vpack.c.b16 %v482, %v482
      %v485 = vshrl.u32 %v464, 16
      %v487 = vshll.u32 %v464, 16
      %v489 = vrot.slane %v487, 1
      %v490 = vor.u32 %v485, %v489
      %v492 = vshll.u32 %v483, 16
      %v494 = vrot.slane %v492, 1
      %v495 = vsel %vm306, %v490, %v494
      %496 = vrot.lane.b32.xlu0 %v330, 16
      %v497 = vpop.permute.xlu0 %496
      %498 = vrot.lane.b32.xlu0 %v342, 16
      %v499 = vpop.permute.xlu0 %498
      %500 = vrot.lane.b32.xlu0 %v354, 16
      %v501 = vpop.permute.xlu0 %500
      %502 = vrot.lane.b32.xlu0 %v366, 16
      %v503 = vpop.permute.xlu0 %502
      %504 = vrot.lane.b32.xlu0 %v378, 16
      %v505 = vpop.permute.xlu0 %504
      %506 = vrot.lane.b32.xlu0 %v390, 16
      %v507 = vpop.permute.xlu0 %506
      %508 = vrot.lane.b32.xlu0 %v402, 16
      %v509 = vpop.permute.xlu0 %508
      %510 = vrot.lane.b32.xlu0 %v495, 16
      %v511 = vpop.permute.xlu0 %510
      %v512 = vrot.slane %v464, 1
      %v513 = vrot.slane %v483, 1
      %v514 = vsel %vm419, %v512, %v513
      %515 = vrot.lane.b32.xlu0 %v425, 20
      %v516 = vpop.permute.xlu0 %515
      %517 = vrot.lane.b32.xlu0 %v428, 20
      %v518 = vpop.permute.xlu0 %517
      %519 = vrot.lane.b32.xlu0 %v431, 20
      %v520 = vpop.permute.xlu0 %519
      %521 = vrot.lane.b32.xlu0 %v434, 20
      %v522 = vpop.permute.xlu0 %521
      %523 = vrot.lane.b32.xlu0 %v437, 20
      %v524 = vpop.permute.xlu0 %523
      %525 = vrot.lane.b32.xlu0 %v440, 20
      %v526 = vpop.permute.xlu0 %525
      %527 = vrot.lane.b32.xlu0 %v443, 20
      %v528 = vpop.permute.xlu0 %527
      %529 = vrot.lane.b32.xlu0 %v514, 20
      %v530 = vpop.permute.xlu0 %529
      %v533 = vunpack.c.l.b16 %v239
      %v534 = vunpack.c.l.b16 %v240
      %v535 = vpack.c.b16 %v534, %v533
      %536 = vrot.lane.b32.xlu0 %v276, 24
      %v537 = vpop.permute.xlu0 %536
      %538 = vrot.lane.b32.xlu0 %v277, 24
      %v539 = vpop.permute.xlu0 %538
      %540 = vrot.lane.b32.xlu0 %v278, 24
      %v541 = vpop.permute.xlu0 %540
      %542 = vrot.lane.b32.xlu0 %v279, 24
      %v543 = vpop.permute.xlu0 %542
      %544 = vrot.lane.b32.xlu0 %v280, 24
      %v545 = vpop.permute.xlu0 %544
      %546 = vrot.lane.b32.xlu0 %v281, 24
      %v547 = vpop.permute.xlu0 %546
      %548 = vrot.lane.b32.xlu0 %v464, 24
      %v549 = vpop.permute.xlu0 %548
      %550 = vrot.lane.b32.xlu0 %v535, 24
      %v551 = vpop.permute.xlu0 %550
      %v553 = vunpack.c.l.b16 %v241
      %v554 = vpack.c.b16 %v553, %v553
      %v556 = vshrl.u32 %v535, 16
      %v558 = vshll.u32 %v535, 16
      %v560 = vrot.slane %v558, 1
      %v561 = vor.u32 %v556, %v560
      %v563 = vshll.u32 %v554, 16
      %v565 = vrot.slane %v563, 1
      %v566 = vsel %vm306, %v561, %v565
      %567 = vrot.lane.b32.xlu0 %v342, 28
      %v568 = vpop.permute.xlu0 %567
      %569 = vrot.lane.b32.xlu0 %v354, 28
      %v570 = vpop.permute.xlu0 %569
      %571 = vrot.lane.b32.xlu0 %v366, 28
      %v572 = vpop.permute.xlu0 %571
      %573 = vrot.lane.b32.xlu0 %v378, 28
      %v574 = vpop.permute.xlu0 %573
      %575 = vrot.lane.b32.xlu0 %v390, 28
      %v576 = vpop.permute.xlu0 %575
      %577 = vrot.lane.b32.xlu0 %v402, 28
      %v578 = vpop.permute.xlu0 %577
      %579 = vrot.lane.b32.xlu0 %v495, 28
      %v580 = vpop.permute.xlu0 %579
      %581 = vrot.lane.b32.xlu0 %v566, 28
      %v582 = vpop.permute.xlu0 %581
      %v583 = vrot.slane %v535, 1
      %v584 = vrot.slane %v554, 1
      %v585 = vsel %vm419, %v583, %v584
      %586 = vrot.lane.b32.xlu0 %v428, 32
      %v587 = vpop.permute.xlu0 %586
      %588 = vrot.lane.b32.xlu0 %v431, 32
      %v589 = vpop.permute.xlu0 %588
      %590 = vrot.lane.b32.xlu0 %v434, 32
      %v591 = vpop.permute.xlu0 %590
      %592 = vrot.lane.b32.xlu0 %v437, 32
      %v593 = vpop.permute.xlu0 %592
      %594 = vrot.lane.b32.xlu0 %v440, 32
      %v595 = vpop.permute.xlu0 %594
      %596 = vrot.lane.b32.xlu0 %v443, 32
      %v597 = vpop.permute.xlu0 %596
      %598 = vrot.lane.b32.xlu0 %v514, 32
      %v599 = vpop.permute.xlu0 %598
      %600 = vrot.lane.b32.xlu0 %v585, 32
      %v601 = vpop.permute.xlu0 %600
      %vm602 = vcmask 31744
      %v604 = vsel %vm602, %v274, %v404
      %v606 = vsel %vm602, %v275, %v406
      %v608 = vsel %vm602, %v276, %v408
      %v610 = vsel %vm602, %v277, %v410
      %v612 = vsel %vm602, %v278, %v412
      %v614 = vsel %vm602, %v279, %v414
      %v616 = vsel %vm602, %v280, %v416
      %v618 = vsel %vm602, %v281, %v418
      %vm619 = vcmask 64512
      %v621 = vsel %vm619, %v604, %v445
      %v623 = vsel %vm619, %v606, %v447
      %v625 = vsel %vm619, %v608, %v449
      %v627 = vsel %vm619, %v610, %v451
      %v629 = vsel %vm619, %v612, %v453
      %v631 = vsel %vm619, %v614, %v455
      %v633 = vsel %vm619, %v616, %v457
      %v635 = vsel %vm619, %v618, %v459
      %vm636 = vcmask 97280
      %v638 = vsel %vm636, %v621, %v466
      %v640 = vsel %vm636, %v623, %v468
      %v642 = vsel %vm636, %v625, %v470
      %v644 = vsel %vm636, %v627, %v472
      %v646 = vsel %vm636, %v629, %v474
      %v648 = vsel %vm636, %v631, %v476
      %v650 = vsel %vm636, %v633, %v478
      %v652 = vsel %vm636, %v635, %v480
      %vm653 = vcmask 130048
      %v655 = vsel %vm653, %v638, %v497
      %v657 = vsel %vm653, %v640, %v499
      %v659 = vsel %vm653, %v642, %v501
      %v661 = vsel %vm653, %v644, %v503
      %v663 = vsel %vm653, %v646, %v505
      %v665 = vsel %vm653, %v648, %v507
      %v667 = vsel %vm653, %v650, %v509
      %v669 = vsel %vm653, %v652, %v511
      %vm670 = vcmask 162816
      %v672 = vsel %vm670, %v655, %v516
      %v674 = vsel %vm670, %v657, %v518
      %v676 = vsel %vm670, %v659, %v520
      %v678 = vsel %vm670, %v661, %v522
      %v680 = vsel %vm670, %v663, %v524
      %v682 = vsel %vm670, %v665, %v526
      %v684 = vsel %vm670, %v667, %v528
      %v686 = vsel %vm670, %v669, %v530
      %vm687 = vcmask 195584
      %v689 = vsel %vm687, %v672, %v537
      %v691 = vsel %vm687, %v674, %v539
      %v693 = vsel %vm687, %v676, %v541
      %v695 = vsel %vm687, %v678, %v543
      %v697 = vsel %vm687, %v680, %v545
      %v699 = vsel %vm687, %v682, %v547
      %v701 = vsel %vm687, %v684, %v549
      %v703 = vsel %vm687, %v686, %v551
      %vm704 = vcmask 228352
      %v706 = vsel %vm704, %v689, %v568
      %v708 = vsel %vm704, %v691, %v570
      %v710 = vsel %vm704, %v693, %v572
      %v712 = vsel %vm704, %v695, %v574
      %v714 = vsel %vm704, %v697, %v576
      %v716 = vsel %vm704, %v699, %v578
      %v718 = vsel %vm704, %v701, %v580
      %v720 = vsel %vm704, %v703, %v582
      %vm721 = vcmask 261120
      %v723 = vsel %vm721, %v706, %v587
      %v725 = vsel %vm721, %v708, %v589
      %v727 = vsel %vm721, %v710, %v591
      %v729 = vsel %vm721, %v712, %v593
      %v731 = vsel %vm721, %v714, %v595
      %v733 = vsel %vm721, %v716, %v597
      %v735 = vsel %vm721, %v718, %v599
      %v737 = vsel %vm721, %v720, %v601
      %v738 = vld [vmem:[%s1] sm:$0xf]
      %v739 = vld [vmem:[%s1 + $0x4] sm:$0xf]
      %v740 = vld [vmem:[%s1 + $0x8] sm:$0xf]
      %v741 = vld [vmem:[%s1 + $0xc] sm:$0xf]
      %v742 = vld [vmem:[%s1 + $0x10] sm:$0x3]
      %v748 = vunpack.c.l.b16 %v738
      %v749 = vunpack.c.l.b16 %v739
      %v750 = vunpack.c.l.b16 %v740
      %v751 = vunpack.c.l.b16 %v741
      %v752 = vunpack.c.l.b16 %v742
      %v753 = vpack.c.b16 %v749, %v748
      %v754 = vpack.c.b16 %v751, %v750
      %v755 = vpack.c.b16 %v752, %v752
      %vm758 = vcmask 293888
      %v759 = vsel %vm758, %v723, 0
      %v761 = vsel %vm758, %v725, 0
      %v763 = vsel %vm758, %v727, 0
      %v765 = vsel %vm758, %v729, 0
      %v767 = vsel %vm758, %v731, 0
      %v769 = vsel %vm758, %v733, 0
      %v771 = vsel %vm758, %v735, 0
      %v773 = vsel %vm758, %v737, 0
      %vm775 = vcmask 1041408
      %v777 = vsel %vm775, %v755, 0
      %779 = vmatpush.bf16.msra.mxu0 0
      %780 = vmatpush.bf16.msra.mxu0 0
      %781 = vmatpush.bf16.msra.mxu0 0
      %782 = vmatpush.bf16.msra.mxu0 0
      %783 = vmatpush.bf16.msra.mxu0 0
      %784 = vmatpush.bf16.msra.mxu0 %v777
      %785 = vmatpush.bf16.msra.mxu0 %v754
      %786 = vmatpush.bf16.msra.mxu0 %v753
      %787 = vmatmul.bf16.gmra.mxu0 %v759
      %v788 = vpop.f32.mrf.mxu0
      %v789 = vadd.f32 0.0, %v788
      %v790 = vpop.f32.mrf.mxu0
      %v791 = vadd.f32 0.0, %v790
      %792 = vmatmul.bf16.gmra.mxu0 %v761
      %v793 = vpop.f32.mrf.mxu0
      %v794 = vadd.f32 0.0, %v793
      %v795 = vpop.f32.mrf.mxu0
      %v796 = vadd.f32 0.0, %v795
      %797 = vmatmul.bf16.gmra.mxu0 %v763
      %v798 = vpop.f32.mrf.mxu0
      %v799 = vadd.f32 0.0, %v798
      %v800 = vpop.f32.mrf.mxu0
      %v801 = vadd.f32 0.0, %v800
      %802 = vmatmul.bf16.gmra.mxu0 %v765
      %v803 = vpop.f32.mrf.mxu0
      %v804 = vadd.f32 0.0, %v803
      %v805 = vpop.f32.mrf.mxu0
      %v806 = vadd.f32 0.0, %v805
      %807 = vmatmul.bf16.gmra.mxu0 %v767
      %v808 = vpop.f32.mrf.mxu0
      %v809 = vadd.f32 0.0, %v808
      %v810 = vpop.f32.mrf.mxu0
      %v811 = vadd.f32 0.0, %v810
      %812 = vmatmul.bf16.gmra.mxu0 %v769
      %v813 = vpop.f32.mrf.mxu0
      %v814 = vadd.f32 0.0, %v813
      %v815 = vpop.f32.mrf.mxu0
      %v816 = vadd.f32 0.0, %v815
      %817 = vmatmul.bf16.gmra.mxu0 %v771
      %v818 = vpop.f32.mrf.mxu0
      %v819 = vadd.f32 0.0, %v818
      %v820 = vpop.f32.mrf.mxu0
      %v821 = vadd.f32 0.0, %v820
      %822 = vmatmul.bf16.gmra.mxu0 %v773
      %v823 = vpop.f32.mrf.mxu0
      %v824 = vadd.f32 0.0, %v823
      %v825 = vpop.f32.mrf.mxu0
      %v826 = vadd.f32 0.0, %v825
      %827 = vdwg.mxu0
      %828 = vst [vmem:[%s201] sm:$0xff] %v789
      %829 = vst [vmem:[%s201 + $0x8] sm:$0xff] %v791
      %830 = vst [vmem:[%s201 + $0x10] sm:$0xff] %v794
      %831 = vst [vmem:[%s201 + $0x18] sm:$0xff] %v796
      %832 = vst [vmem:[%s201 + $0x20] sm:$0xff] %v799
      %833 = vst [vmem:[%s201 + $0x28] sm:$0xff] %v801
      %834 = vst [vmem:[%s201 + $0x30] sm:$0xff] %v804
      %835 = vst [vmem:[%s201 + $0x38] sm:$0xff] %v806
      %836 = vst [vmem:[%s201 + $0x40] sm:$0xff] %v809
      %837 = vst [vmem:[%s201 + $0x48] sm:$0xff] %v811
      %838 = vst [vmem:[%s201 + $0x50] sm:$0xff] %v814
      %839 = vst [vmem:[%s201 + $0x58] sm:$0xff] %v816
      %840 = vst [vmem:[%s201 + $0x60] sm:$0xff] %v819
      %841 = vst [vmem:[%s201 + $0x68] sm:$0xff] %v821
      %842 = vst [vmem:[%s201 + $0x70] sm:$0xff] %v824
      %843 = vst [vmem:[%s201 + $0x78] sm:$0xff] %v826
      %v844 = vadd.f32 %v789, %v791
      %v845 = vadd.f32 %v844, %v794
      %v846 = vadd.f32 %v845, %v796
      %v847 = vadd.f32 %v846, %v799
      %v848 = vadd.f32 %v847, %v801
      %v849 = vadd.f32 %v848, %v804
      %v850 = vadd.f32 %v849, %v806
      %v851 = vadd.f32 %v850, %v809
      %v852 = vadd.f32 %v851, %v811
      %v853 = vadd.f32 %v852, %v814
      %v854 = vadd.f32 %v853, %v816
      %v855 = vadd.f32 %v854, %v819
      %v856 = vadd.f32 %v855, %v821
      %v857 = vadd.f32 %v856, %v824
      %v858 = vadd.f32 %v857, %v826
      %v859 = vrot.slane %v858, 4
      %v860 = vadd.f32 %v858, %v859
      %v861 = vrot.slane %v860, 2
      %v862 = vadd.f32 %v860, %v861
      %v863 = vrot.slane %v862, 1
      %v864 = vadd.f32 %v862, %v863
      %v865 = vmul.f32 %v789, %v789
      %v866 = vmul.f32 %v791, %v791
      %v867 = vmul.f32 %v794, %v794
      %v868 = vmul.f32 %v796, %v796
      %v869 = vmul.f32 %v799, %v799
      %v870 = vmul.f32 %v801, %v801
      %v871 = vmul.f32 %v804, %v804
      %v872 = vmul.f32 %v806, %v806
      %v873 = vmul.f32 %v809, %v809
      %v874 = vmul.f32 %v811, %v811
      %v875 = vmul.f32 %v814, %v814
      %v876 = vmul.f32 %v816, %v816
      %v877 = vmul.f32 %v819, %v819
      %v878 = vmul.f32 %v821, %v821
      %v879 = vmul.f32 %v824, %v824
      %v880 = vmul.f32 %v826, %v826
      %v881 = vadd.f32 %v865, %v866
      %v882 = vadd.f32 %v881, %v867
      %v883 = vadd.f32 %v882, %v868
      %v884 = vadd.f32 %v883, %v869
      %v885 = vadd.f32 %v884, %v870
      %v886 = vadd.f32 %v885, %v871
      %v887 = vadd.f32 %v886, %v872
      %v888 = vadd.f32 %v887, %v873
      %v889 = vadd.f32 %v888, %v874
      %v890 = vadd.f32 %v889, %v875
      %v891 = vadd.f32 %v890, %v876
      %v892 = vadd.f32 %v891, %v877
      %v893 = vadd.f32 %v892, %v878
      %v894 = vadd.f32 %v893, %v879
      %v895 = vadd.f32 %v894, %v880
      %v896 = vrot.slane %v895, 4
      %v897 = vadd.f32 %v895, %v896
      %v898 = vrot.slane %v897, 2
      %v899 = vadd.f32 %v897, %v898
      %v900 = vrot.slane %v899, 1
      %v901 = vadd.f32 %v899, %v900
      %vm902 = vcmask 1040384
      %v903 = vsel %vm902, %v864, %v901
      %p904 = scmp.eq.s32.totalorder %s20, 0
      // Predicated region
      $region29: #{double_conv.4} parent=27 // pred_check
        %p905 = pneg %p904
      $region30: #{double_conv.4} parent=27 // pred_check_branch
        %907 = sbr.rel (%p905) target = $region32
      $region31: #{double_conv.4} parent=27 // pred_region
        %908 = vst [vmem:[%s206] sm:$0x3] %v903
      $region32: #{double_conv.4} parent=27 // pred_fallthru
        _
      %p909 = scmp.gt.s32.totalorder %s20, 0
      // Predicated region
      $region33: #{double_conv.4} parent=27 // pred_check
        %p910 = pneg %p909
      $region34: #{double_conv.4} parent=27 // pred_check_branch
        %912 = sbr.rel (%p910) target = $region36
      $region35: #{double_conv.4} parent=27 // pred_region
        %v913 = vld [vmem:[%s206] sm:$0x3]
        %v914 = vadd.f32 %v913, %v903
        %915 = vst [vmem:[%s206] sm:$0x3] %v914
      $region36: #{double_conv.4} parent=27 // pred_fallthru
        _
      %s916 = smul.u32 8, %s20
      %p917 = scmp.lt.s32.totalorder %s19, 1
      %s918 = scalar_select %p917, %s19, 1
      %p919 = scmp.lt.s32.totalorder %s916, 15
      %s920 = scalar_select %p919, %s916, 15
      %s921 = smul.addr %s920, 2
      %s922 = smul.addr %s918, 32
      %s923 = sadd.s32 %s921, %s922
      %s924 = smul.addr %s923, 8
      %s925 = scalar_lea.vmem %s2, %s924
      %p926 = scmp.lt.s32.totalorder %s19, 1
      %s927 = scalar_select %p926, %s19, 1
      %s928 = smul.addr %s927, 2
      %s929 = scalar_lea.vmem %s3, %s928
      // Predicated region
      $region37: #{double_conv.4} parent=27 // pred_check
        %p930 = pneg %p94
      $region38: #{double_conv.4} parent=27 // pred_check_branch
        %932 = sbr.rel (%p930) target = $region40
      $region39: #{double_conv.4} parent=27 // pred_region
        %s933 = smul.u32 8, %s20
      $region40: #{double_conv.4} parent=27 // pred_fallthru
        _
      // Predicated region
      $region41: #{double_conv.4} parent=27 // pred_check
        %p934 = pneg %p120
      $region42: #{double_conv.4} parent=27 // pred_check_branch
        %936 = sbr.rel (%p934) target = $region44
      $region43: #{double_conv.4} parent=27 // pred_region
        _
      $region44: #{double_conv.4} parent=27 // pred_fallthru
        _
    $region28: #{double_conv.4} parent=5 // pred_fallthru
      _
    %p937 = scmp.le.s32.totalorder 2, %s10
    // Predicated region
    $region45: #{double_conv.4} parent=5 // pred_check
      %p938 = pneg %p937
    $region46: #{double_conv.4} parent=5 // pred_check_branch
      %940 = sbr.rel (%p938) target = $region48
    $region47: #{double_conv.4} parent=5 // pred_region
      %s941 = ssub.s32 %s10, 2
      // Predicated region
      $region49: #{double_conv.4} parent=47 // pred_check
        %p942 = pneg %p100
      $region50: #{double_conv.4} parent=47 // pred_check_branch
        %944 = sbr.rel (%p942) target = $region52
      $region51: #{double_conv.4} parent=47 // pred_region
        %s945 = smul.u32 8, %s22
        %p946 = scmp.lt.s32.totalorder %s21, 1
        %s947 = scalar_select %p946, %s21, 1
        %p948 = scmp.lt.s32.totalorder %s945, 15
        %s949 = scalar_select %p948, %s945, 15
        %s950 = smul.addr %s949, 2
        %s951 = smul.addr %s947, 32
        %s952 = sadd.s32 %s950, %s951
        %s953 = smul.addr %s952, 8
        %s954 = scalar_lea.vmem %s2, %s953
      $region52: #{double_conv.4} parent=47 // pred_fallthru
        _
      // Predicated region
      $region53: #{double_conv.4} parent=47 // pred_check
        %p955 = pneg %p126
      $region54: #{double_conv.4} parent=47 // pred_check_branch
        %957 = sbr.rel (%p955) target = $region56
      $region55: #{double_conv.4} parent=47 // pred_region
        %p958 = scmp.lt.s32.totalorder %s21, 1
        %s959 = scalar_select %p958, %s21, 1
        %s960 = smul.addr %s959, 2
        %s961 = scalar_lea.vmem %s3, %s960
      $region56: #{double_conv.4} parent=47 // pred_fallthru
        _
    $region48: #{double_conv.4} parent=5 // pred_fallthru
      _
  $region6: #{double_conv.4} parent=0 // loop_footer
    %s14 = sadd.s32 1, %s10
  $region7: #{double_conv.4} parent=0 // loop_footer_branch
    %9 = sbr.rel target = $region3
  $region8: #{double_conv.4} parent=0 // loop_exit
    _

// kernel: double_conv.6
$region0: #{double_conv.6}
  #allocation0 [shape = 'u32[]', space=smem, size = 0x4, offset = 0x4, fixed_abs, tag = 'smem constant byte address 0x4 - core index']
  #allocation1 [shape = 'u32[72,128]{1,0:T(1,128)}', space=vmem, size = 0x9000, scoped, tag = 'internal scratch']
  %s0 = inlined_call_operand.vmem [shape: bf16[2,18,18,128], index: 0, kind: input, shape index: {}]
  %s1 = inlined_call_operand.vmem [shape: bf16[1152,128], index: 1, kind: input, shape index: {}]
  %s2 = inlined_call_operand.vmem [shape: f32[2,16,16,128], index: 2, kind: output, shape index: {0}]
  %s3 = inlined_call_operand.vmem [shape: f32[2,2,128], index: 3, kind: output, shape index: {1}]
  %4 = xla_tuple %s2, %s3
  %s5 = sld [smem:[#allocation0]]
  $region57: #{double_conv.6} parent=0
    _
  %s7 = ssub.s32 1, %s5
  %s8 = scalar_select 0, %s7, %s5
  loop: start=0, step=1, limit=6
  $region2: #{double_conv.6} parent=0 // loop_pre_header
    _
  $region3: #{double_conv.6} parent=0 // loop_header
    %s10 = sphi 0, %s14
    %p11 = scmp.ge.s32.totalorder %s10, 6
    %s17 = sphi 0, %s29
    %s18 = sphi 0, %s25
    %s19 = sphi 0, %s17
    %s20 = sphi 0, %s18
    %s21 = sphi 0, %s19
    %s22 = sphi 0, %s20
    %s32 = sphi 0, %s34
    %s35 = sphi 0, %s32
    %s36 = sphi 0, %s35
    %s52 = sphi 0, %s36
    %s56 = sphi 0, %s56
    %s58 = sphi 0, %s56
    %s59 = sphi 0, %s58
    %s73 = sphi 0, %s59
    %s81 = sphi 0, %s83
    %s84 = sphi 0, %s81
    %s85 = sphi 0, %s84
    %s101 = sphi 0, %s85
    %s107 = sphi 0, %s109
    %s110 = sphi 0, %s107
    %s111 = sphi 0, %s110
    %s127 = sphi 0, %s111
  $region4: #{double_conv.6} parent=0 // loop_header_branch
    %13 = sbr.rel (%p11) target = $region8
  $region5: #{double_conv.6} parent=0 // loop_body
    %s15 = ssub.s32 %s10, 1
    %s16 = ssub.s32 %s10, 2
    %s23 = sadd.s32 1, %s18
    %p24 = scmp.ge.s32.totalorder %s23, 2
    %s25 = scalar_select %p24, 0, %s23
    %s26 = sadd.s32 1, %s17
    %s27 = scalar_select %p24, %s26, %s17
    %p28 = scmp.ge.s32.totalorder %s27, 2
    %s29 = scalar_select %p28, 0, %s27
    %s30 = ssub.s32 %s17, %s29
    %p31 = scmp.eq.s32.totalorder %s30, 0
    %s33 = sadd.s32 %s32, 1
    %s34 = scalar_select %p31, %s32, %s33
    %p37 = pneg %p31
    %p38 = scmp.eq.s32.totalorder %s10, 3
    %p39 = por %p37, %p38
    %p40 = scmp.ne.s32.totalorder %s32, %s35
    %p41 = scmp.eq.s32.totalorder %s10, 0
    %p42 = por %p40, %p41
    %p43 = scmp.ne.s32.totalorder %s32, %s35
    %p44 = scmp.eq.s32.totalorder %s15, 3
    %p45 = por %p43, %p44
    %p46 = scmp.ne.s32.totalorder %s35, %s36
    %p47 = scmp.eq.s32.totalorder %s15, 0
    %p48 = por %p46, %p47
    %p49 = scmp.ne.s32.totalorder %s35, %s36
    %p50 = scmp.eq.s32.totalorder %s16, 3
    %p51 = por %p49, %p50
    %p53 = scmp.ne.s32.totalorder %s36, %s52
    %p54 = scmp.eq.s32.totalorder %s16, 0
    %p55 = por %p53, %p54
    %s57 = sadd.s32 %s56, 1
    %p60 = scmp.eq.s32.totalorder %s10, 3
    %p61 = scmp.ne.s32.totalorder %s56, %s58
    %p62 = scmp.eq.s32.totalorder %s10, 0
    %p63 = por %p61, %p62
    %p64 = scmp.ne.s32.totalorder %s56, %s58
    %p65 = scmp.eq.s32.totalorder %s15, 3
    %p66 = por %p64, %p65
    %p67 = scmp.ne.s32.totalorder %s58, %s59
    %p68 = scmp.eq.s32.totalorder %s15, 0
    %p69 = por %p67, %p68
    %p70 = scmp.ne.s32.totalorder %s58, %s59
    %p71 = scmp.eq.s32.totalorder %s16, 3
    %p72 = por %p70, %p71
    %p74 = scmp.ne.s32.totalorder %s59, %s73
    %p75 = scmp.eq.s32.totalorder %s16, 0
    %p76 = por %p74, %p75
    %s77 = ssub.s32 %s17, %s29
    %s78 = ssub.s32 %s18, %s25
    %s79 = sor.u32 %s77, %s78
    %p80 = scmp.eq.s32.totalorder %s79, 0
    %s82 = sadd.s32 %s81, 1
    %s83 = scalar_select %p80, %s81, %s82
    %p86 = pneg %p80
    %p87 = scmp.eq.s32.totalorder %s10, 3
    %p88 = por %p86, %p87
    %p89 = scmp.ne.s32.totalorder %s81, %s84
    %p90 = scmp.eq.s32.totalorder %s10, 0
    %p91 = por %p89, %p90
    %p92 = scmp.ne.s32.totalorder %s81, %s84
    %p93 = scmp.eq.s32.totalorder %s15, 3
    %p94 = por %p92, %p93
    %p95 = scmp.ne.s32.totalorder %s84, %s85
    %p96 = scmp.eq.s32.totalorder %s15, 0
    %p97 = por %p95, %p96
    %p98 = scmp.ne.s32.totalorder %s84, %s85
    %p99 = scmp.eq.s32.totalorder %s16, 3
    %p100 = por %p98, %p99
    %p102 = scmp.ne.s32.totalorder %s85, %s101
    %p103 = scmp.eq.s32.totalorder %s16, 0
    %p104 = por %p102, %p103
    %s105 = ssub.s32 %s17, %s29
    %p106 = scmp.eq.s32.totalorder %s105, 0
    %s108 = sadd.s32 %s107, 1
    %s109 = scalar_select %p106, %s107, %s108
    %p112 = pneg %p106
    %p113 = scmp.eq.s32.totalorder %s10, 3
    %p114 = por %p112, %p113
    %p115 = scmp.ne.s32.totalorder %s107, %s110
    %p116 = scmp.eq.s32.totalorder %s10, 0
    %p117 = por %p115, %p116
    %p118 = scmp.ne.s32.totalorder %s107, %s110
    %p119 = scmp.eq.s32.totalorder %s15, 3
    %p120 = por %p118, %p119
    %p121 = scmp.ne.s32.totalorder %s110, %s111
    %p122 = scmp.eq.s32.totalorder %s15, 0
    %p123 = por %p121, %p122
    %p124 = scmp.ne.s32.totalorder %s110, %s111
    %p125 = scmp.eq.s32.totalorder %s16, 3
    %p126 = por %p124, %p125
    %p128 = scmp.ne.s32.totalorder %s111, %s127
    %p129 = scmp.eq.s32.totalorder %s16, 0
    %p130 = por %p128, %p129
    %p131 = scmp.le.s32.totalorder 1, %s10
    %p132 = scmp.lt.s32.totalorder %s10, 5
    %p133 = pnand %p131, %p132
    %p134 = pneg %p133
    // Predicated region
    $region9: #{double_conv.6} parent=5 // pred_check
      _
    $region10: #{double_conv.6} parent=5 // pred_check_branch
      %136 = sbr.rel (%p133) target = $region12
    $region11: #{double_conv.6} parent=5 // pred_region
      %s137 = ssub.s32 %s10, 1
      // Predicated region
      $region13: #{double_conv.6} parent=11 // pred_check
        %p138 = pneg %p69
      $region14: #{double_conv.6} parent=11 // pred_check_branch
        %140 = sbr.rel (%p138) target = $region16
      $region15: #{double_conv.6} parent=11 // pred_region
        _
      $region16: #{double_conv.6} parent=11 // pred_fallthru
        _
    $region12: #{double_conv.6} parent=5 // pred_fallthru
      _
    %p141 = scmp.lt.s32.totalorder %s10, 4
    // Predicated region
    $region17: #{double_conv.6} parent=5 // pred_check
      %p142 = pneg %p141
    $region18: #{double_conv.6} parent=5 // pred_check_branch
      %144 = sbr.rel (%p142) target = $region20
    $region19: #{double_conv.6} parent=5 // pred_region
      // Predicated region
      $region21: #{double_conv.6} parent=19 // pred_check
        %p145 = pneg %p42
      $region22: #{double_conv.6} parent=19 // pred_check_branch
        %147 = sbr.rel (%p145) target = $region24
      $region23: #{double_conv.6} parent=19 // pred_region
        %p148 = scmp.lt.s32.totalorder %s17, 1
        %s149 = scalar_select %p148, %s17, 1
        %s150 = smul.addr %s149, 54
        %s151 = smul.addr %s150, 4
        %s152 = scalar_lea.vmem %s0, %s151
      $region24: #{double_conv.6} parent=19 // pred_fallthru
        _
    $region20: #{double_conv.6} parent=5 // pred_fallthru
      _
    %p153 = scmp.le.s32.totalorder 1, %s10
    %p154 = scmp.lt.s32.totalorder %s10, 5
    %p155 = pnand %p153, %p154
    %p156 = pneg %p155
    // Predicated region
    $region25: #{double_conv.6} parent=5 // pred_check
      _
    $region26: #{double_conv.6} parent=5 // pred_check_branch
      %158 = sbr.rel (%p155) target = $region28
    $region27: #{double_conv.6} parent=5 // pred_region
      %s159 = ssub.s32 %s10, 1
      %p160 = scmp.lt.s32.totalorder %s19, 1
      %s161 = scalar_select %p160, %s19, 1
      %s162 = smul.addr %s161, 54
      %s163 = smul.addr %s162, 4
      %s164 = scalar_lea.vmem %s0, %s163
      %p165 = pneg %p48
      %p166 = pneg %p45
      %p167 = pneg %p69
      %p168 = pneg %p66
      %p169 = pneg %p97
      %p170 = pneg %p94
      %s171 = smul.u32 8, %s20
      %p172 = scmp.lt.s32.totalorder %s19, 1
      %s173 = scalar_select %p172, %s19, 1
      %p174 = scmp.lt.s32.totalorder %s171, 15
      %s175 = scalar_select %p174, %s171, 15
      %s176 = smul.addr %s175, 2
      %s177 = smul.addr %s173, 32
      %s178 = sadd.s32 %s176, %s177
      %s179 = smul.addr %s178, 8
      %s180 = scalar_lea.vmem %s2, %s179
      %p181 = pneg %p123
      %p182 = pneg %p120
      %p183 = scmp.lt.s32.totalorder %s19, 1
      %s184 = scalar_select %p183, %s19, 1
      %s185 = smul.addr %s184, 2
      %s186 = scalar_lea.vmem %s3, %s185
      %p187 = scmp.lt.s32.totalorder %s19, 1
      %s188 = scalar_select %p187, %s19, 1
      %s189 = smul.addr %s188, 54
      %s190 = smul.addr %s189, 4
      %s191 = scalar_lea.vmem %s0, %s190
      %s192 = smul.u32 8, %s20
      %p193 = scmp.lt.s32.totalorder %s19, 1
      %s194 = scalar_select %p193, %s19, 1
      %p195 = scmp.lt.s32.totalorder %s192, 15
      %s196 = scalar_select %p195, %s192, 15
      %s197 = smul.addr %s196, 2
      %s198 = smul.addr %s194, 32
      %s199 = sadd.s32 %s197, %s198
      %s200 = smul.addr %s199, 8
      %s201 = scalar_lea.vmem %s2, %s200
      %s202 = smul.u32 8, %s20
      %p203 = scmp.lt.s32.totalorder %s19, 1
      %s204 = scalar_select %p203, %s19, 1
      %s205 = smul.addr %s204, 2
      %s206 = scalar_lea.vmem %s3, %s205
      %s207 = smul.u32 %s20, 8
      %s208 = smul.u32 %s207, 3
      %s209 = smul.addr %s208, 4
      %s210 = scalar_lea.vmem %s191, %s209
      %v211 = vld [vmem:[%s210] sm:$0xf]
      %v212 = vld [vmem:[%s210 + $0x4] sm:$0xf]
      %v213 = vld [vmem:[%s210 + $0x8] sm:$0x1]
      %v214 = vld [vmem:[%s210 + $0xc] sm:$0xf]
      %v215 = vld [vmem:[%s210 + $0x10] sm:$0xf]
      %v216 = vld [vmem:[%s210 + $0x14] sm:$0x1]
      %v217 = vld [vmem:[%s210 + $0x18] sm:$0xf]
      %v218 = vld [vmem:[%s210 + $0x1c] sm:$0xf]
      %v219 = vld [vmem:[%s210 + $0x20] sm:$0x1]
      %v220 = vld [vmem:[%s210 + $0x24] sm:$0xf]
      %v221 = vld [vmem:[%s210 + $0x28] sm:$0xf]
      %v222 = vld [vmem:[%s210 + $0x2c] sm:$0x1]
      %v223 = vld [vmem:[%s210 + $0x30] sm:$0xf]
      %v224 = vld [vmem:[%s210 + $0x34] sm:$0xf]
      %v225 = vld [vmem:[%s210 + $0x38] sm:$0x1]
      %v226 = vld [vmem:[%s210 + $0x3c] sm:$0xf]
      %v227 = vld [vmem:[%s210 + $0x40] sm:$0xf]
      %v228 = vld [vmem:[%s210 + $0x44] sm:$0x1]
      %v229 = vld [vmem:[%s210 + $0x48] sm:$0xf]
      %v230 = vld [vmem:[%s210 + $0x4c] sm:$0xf]
      %v231 = vld [vmem:[%s210 + $0x50] sm:$0x1]
      %v232 = vld [vmem:[%s210 + $0x54] sm:$0xf]
      %v233 = vld [vmem:[%s210 + $0x58] sm:$0xf]
      %v234 = vld [vmem:[%s210 + $0x5c] sm:$0x1]
      %v235 = vld [vmem:[%s210 + $0x60] sm:$0xf]
      %v236 = vld [vmem:[%s210 + $0x64] sm:$0xf]
      %v237 = vld [vmem:[%s210 + $0x68] sm:$0x1]
      %v238 = vld [vmem:[%s210 + $0x6c] sm:$0xf]
      %v239 = vld [vmem:[%s210 + $0x70] sm:$0xf]
      %v240 = vld [vmem:[%s210 + $0x74] sm:$0x1]
      %v257 = vunpack.c.l.b16 %v211
      %v258 = vunpack.c.l.b16 %v212
      %v259 = vunpack.c.l.b16 %v214
      %v260 = vunpack.c.l.b16 %v215
      %v261 = vunpack.c.l.b16 %v217
      %v262 = vunpack.c.l.b16 %v218
      %v263 = vunpack.c.l.b16 %v220
      %v264 = vunpack.c.l.b16 %v221
      %v265 = vunpack.c.l.b16 %v223
      %v266 = vunpack.c.l.b16 %v224
      %v267 = vunpack.c.l.b16 %v226
      %v268 = vunpack.c.l.b16 %v227
      %v269 = vunpack.c.l.b16 %v229
      %v270 = vunpack.c.l.b16 %v230
      %v271 = vunpack.c.l.b16 %v232
      %v272 = vunpack.c.l.b16 %v233
      %v273 = vpack.c.b16 %v258, %v257
      %v274 = vpack.c.b16 %v260, %v259
      %v275 = vpack.c.b16 %v262, %v261
      %v276 = vpack.c.b16 %v264, %v263
      %v277 = vpack.c.b16 %v266, %v265
      %v278 = vpack.c.b16 %v268, %v267
      %v279 = vpack.c.b16 %v270, %v269
      %v280 = vpack.c.b16 %v272, %v271
      %v297 = vunpack.c.l.b16 %v213
      %v298 = vunpack.c.l.b16 %v216
      %v299 = vunpack.c.l.b16 %v219
      %v300 = vunpack.c.l.b16 %v222
      %v301 = vunpack.c.l.b16 %v225
      %v302 = vunpack.c.l.b16 %v228
      %v303 = vunpack.c.l.b16 %v231
      %v304 = vunpack.c.l.b16 %v234
      %v305 = vpack.c.b16 %v297, %v297
      %v306 = vpack.c.b16 %v298, %v298
      %v307 = vpack.c.b16 %v299, %v299
      %v308 = vpack.c.b16 %v300, %v300
      %v309 = vpack.c.b16 %v301, %v301
      %v310 = vpack.c.b16 %v302, %v302
      %v311 = vpack.c.b16 %v303, %v303
      %v312 = vpack.c.b16 %v304, %v304
      %vm313 = vsmask.f32 7424
      %v315 = vshrl.u32 %v273, 16
      %v317 = vshll.u32 %v273, 16
      %v319 = vrot.slane %v317, 1
      %v320 = vor.u32 %v315, %v319
      %v322 = vshll.u32 %v305, 16
      %v324 = vrot.slane %v322, 1
      %v325 = vsel %vm313, %v320, %v324
      %v327 = vshrl.u32 %v274, 16
      %v329 = vshll.u32 %v274, 16
      %v331 = vrot.slane %v329, 1
      %v332 = vor.u32 %v327, %v331
      %v334 = vshll.u32 %v306, 16
      %v336 = vrot.slane %v334, 1
      %v337 = vsel %vm313, %v332, %v336
      %v339 = vshrl.u32 %v275, 16
      %v341 = vshll.u32 %v275, 16
      %v343 = vrot.slane %v341, 1
      %v344 = vor.u32 %v339, %v343
      %v346 = vshll.u32 %v307, 16
      %v348 = vrot.slane %v346, 1
      %v349 = vsel %vm313, %v344, %v348
      %v351 = vshrl.u32 %v276, 16
      %v353 = vshll.u32 %v276, 16
      %v355 = vrot.slane %v353, 1
      %v356 = vor.u32 %v351, %v355
      %v358 = vshll.u32 %v308, 16
      %v360 = vrot.slane %v358, 1
      %v361 = vsel %vm313, %v356, %v360
      %v363 = vshrl.u32 %v277, 16
      %v365 = vshll.u32 %v277, 16
      %v367 = vrot.slane %v365, 1
      %v368 = vor.u32 %v363, %v367
      %v370 = vshll.u32 %v309, 16
      %v372 = vrot.slane %v370, 1
      %v373 = vsel %vm313, %v368, %v372
      %v375 = vshrl.u32 %v278, 16
      %v377 = vshll.u32 %v278, 16
      %v379 = vrot.slane %v377, 1
      %v380 = vor.u32 %v375, %v379
      %v382 = vshll.u32 %v310, 16
      %v384 = vrot.slane %v382, 1
      %v385 = vsel %vm313, %v380, %v384
      %v387 = vshrl.u32 %v279, 16
      %v389 = vshll.u32 %v279, 16
      %v391 = vrot.slane %v389, 1
      %v392 = vor.u32 %v387, %v391
      %v394 = vshll.u32 %v311, 16
      %v396 = vrot.slane %v394, 1
      %v397 = vsel %vm313, %v392, %v396
      %v399 = vshrl.u32 %v280, 16
      %v401 = vshll.u32 %v280, 16
      %v403 = vrot.slane %v401, 1
      %v404 = vor.u32 %v399, %v403
      %v406 = vshll.u32 %v312, 16
      %v408 = vrot.slane %v406, 1
      %v409 = vsel %vm313, %v404, %v408
      %vm418 = vcmask 1046528
      %v419 = vrot.slane %v273, 1
      %v420 = vrot.slane %v305, 1
      %v421 = vsel %vm418, %v419, %v420
      %v422 = vrot.slane %v274, 1
      %v423 = vrot.slane %v306, 1
      %v424 = vsel %vm418, %v422, %v423
      %v425 = vrot.slane %v275, 1
      %v426 = vrot.slane %v307, 1
      %v427 = vsel %vm418, %v425, %v426
      %v428 = vrot.slane %v276, 1
      %v429 = vrot.slane %v308, 1
      %v430 = vsel %vm418, %v428, %v429
      %v431 = vrot.slane %v277, 1
      %v432 = vrot.slane %v309, 1
      %v433 = vsel %vm418, %v431, %v432
      %v434 = vrot.slane %v278, 1
      %v435 = vrot.slane %v310, 1
      %v436 = vsel %vm418, %v434, %v435
      %v437 = vrot.slane %v279, 1
      %v438 = vrot.slane %v311, 1
      %v439 = vsel %vm418, %v437, %v438
      %v440 = vrot.slane %v280, 1
      %v441 = vrot.slane %v312, 1
      %v442 = vsel %vm418, %v440, %v441
      %v453 = vunpack.c.l.b16 %v235
      %v454 = vunpack.c.l.b16 %v236
      %v455 = vpack.c.b16 %v454, %v453
      %v458 = vunpack.c.l.b16 %v237
      %v459 = vpack.c.b16 %v458, %v458
      %v461 = vshrl.u32 %v455, 16
      %v463 = vshll.u32 %v455, 16
      %v465 = vrot.slane %v463, 1
      %v466 = vor.u32 %v461, %v465
      %v468 = vshll.u32 %v459, 16
      %v470 = vrot.slane %v468, 1
      %v471 = vsel %vm313, %v466, %v470
      %v473 = vrot.slane %v455, 1
      %v474 = vrot.slane %v459, 1
      %v475 = vsel %vm418, %v473, %v474
      %v479 = vunpack.c.l.b16 %v238
      %v480 = vunpack.c.l.b16 %v239
      %v481 = vpack.c.b16 %v480, %v479
      %v484 = vunpack.c.l.b16 %v240
      %v485 = vpack.c.b16 %v484, %v484
      %v487 = vshrl.u32 %v481, 16
      %v489 = vshll.u32 %v481, 16
      %v491 = vrot.slane %v489, 1
      %v492 = vor.u32 %v487, %v491
      %v494 = vshll.u32 %v485, 16
      %v496 = vrot.slane %v494, 1
      %v497 = vsel %vm313, %v492, %v496
      %v499 = vrot.slane %v481, 1
      %v500 = vrot.slane %v485, 1
      %v501 = vsel %vm418, %v499, %v500
      %v503 = vld [vmem:[%s1] sm:$0xf]
      %v504 = vld [vmem:[%s1 + $0x4] sm:$0xf]
      %v505 = vld [vmem:[%s1 + $0x8] sm:$0xf]
      %v506 = vld [vmem:[%s1 + $0xc] sm:$0xf]
      %v507 = vld [vmem:[%s1 + $0x10] sm:$0xf]
      %v508 = vld [vmem:[%s1 + $0x14] sm:$0xf]
      %v509 = vld [vmem:[%s1 + $0x18] sm:$0xf]
      %v510 = vld [vmem:[%s1 + $0x1c] sm:$0xf]
      %v511 = vld [vmem:[%s1 + $0x20] sm:$0xf]
      %v512 = vld [vmem:[%s1 + $0x24] sm:$0xf]
      %v513 = vld [vmem:[%s1 + $0x28] sm:$0xf]
      %v514 = vld [vmem:[%s1 + $0x2c] sm:$0xf]
      %v515 = vld [vmem:[%s1 + $0x30] sm:$0xf]
      %v516 = vld [vmem:[%s1 + $0x34] sm:$0xf]
      %v517 = vld [vmem:[%s1 + $0x38] sm:$0xf]
      %v518 = vld [vmem:[%s1 + $0x3c] sm:$0xf]
      %v519 = vld [vmem:[%s1 + $0x40] sm:$0xf]
      %v520 = vld [vmem:[%s1 + $0x44] sm:$0xf]
      %v521 = vld [vmem:[%s1 + $0x48] sm:$0xf]
      %v522 = vld [vmem:[%s1 + $0x4c] sm:$0xf]
      %v523 = vld [vmem:[%s1 + $0x50] sm:$0xf]
      %v524 = vld [vmem:[%s1 + $0x54] sm:$0xf]
      %v525 = vld [vmem:[%s1 + $0x58] sm:$0xf]
      %v526 = vld [vmem:[%s1 + $0x5c] sm:$0xf]
      %v527 = vld [vmem:[%s1 + $0x60] sm:$0xf]
      %v528 = vld [vmem:[%s1 + $0x64] sm:$0xf]
      %v529 = vld [vmem:[%s1 + $0x68] sm:$0xf]
      %v530 = vld [vmem:[%s1 + $0x6c] sm:$0xf]
      %v531 = vld [vmem:[%s1 + $0x70] sm:$0xf]
      %v532 = vld [vmem:[%s1 + $0x74] sm:$0xf]
      %v533 = vld [vmem:[%s1 + $0x78] sm:$0xf]
      %v534 = vld [vmem:[%s1 + $0x7c] sm:$0xf]
      %v535 = vld [vmem:[%s1 + $0x80] sm:$0xf]
      %v536 = vld [vmem:[%s1 + $0x84] sm:$0xf]
      %v537 = vld [vmem:[%s1 + $0x88] sm:$0xf]
      %v538 = vld [vmem:[%s1 + $0x8c] sm:$0xf]
      %v539 = vld [vmem:[%s1 + $0x90] sm:$0xf]
      %v540 = vld [vmem:[%s1 + $0x94] sm:$0xf]
      %v541 = vld [vmem:[%s1 + $0x98] sm:$0xf]
      %v542 = vld [vmem:[%s1 + $0x9c] sm:$0xf]
      %v543 = vld [vmem:[%s1 + $0xa0] sm:$0xf]
      %v544 = vld [vmem:[%s1 + $0xa4] sm:$0xf]
      %v545 = vld [vmem:[%s1 + $0xa8] sm:$0xf]
      %v546 = vld [vmem:[%s1 + $0xac] sm:$0xf]
      %v547 = vld [vmem:[%s1 + $0xb0] sm:$0xf]
      %v548 = vld [vmem:[%s1 + $0xb4] sm:$0xf]
      %v549 = vld [vmem:[%s1 + $0xb8] sm:$0xf]
      %v550 = vld [vmem:[%s1 + $0xbc] sm:$0xf]
      %v551 = vld [vmem:[%s1 + $0xc0] sm:$0xf]
      %v552 = vld [vmem:[%s1 + $0xc4] sm:$0xf]
      %v553 = vld [vmem:[%s1 + $0xc8] sm:$0xf]
      %v554 = vld [vmem:[%s1 + $0xcc] sm:$0xf]
      %v555 = vld [vmem:[%s1 + $0xd0] sm:$0xf]
      %v556 = vld [vmem:[%s1 + $0xd4] sm:$0xf]
      %v557 = vld [vmem:[%s1 + $0xd8] sm:$0xf]
      %v558 = vld [vmem:[%s1 + $0xdc] sm:$0xf]
      %v559 = vld [vmem:[%s1 + $0xe0] sm:$0xf]
      %v560 = vld [vmem:[%s1 + $0xe4] sm:$0xf]
      %v561 = vld [vmem:[%s1 + $0xe8] sm:$0xf]
      %v562 = vld [vmem:[%s1 + $0xec] sm:$0xf]
      %v563 = vld [vmem:[%s1 + $0xf0] sm:$0xf]
      %v564 = vld [vmem:[%s1 + $0xf4] sm:$0xf]
      %v565 = vld [vmem:[%s1 + $0xf8] sm:$0xf]
      %v566 = vld [vmem:[%s1 + $0xfc] sm:$0xf]
      %v567 = vld [vmem:[%s1 + $0x100] sm:$0xf]
      %v568 = vld [vmem:[%s1 + $0x104] sm:$0xf]
      %v569 = vld [vmem:[%s1 + $0x108] sm:$0xf]
      %v570 = vld [vmem:[%s1 + $0x10c] sm:$0xf]
      %v571 = vld [vmem:[%s1 + $0x110] sm:$0xf]
      %v572 = vld [vmem:[%s1 + $0x114] sm:$0xf]
      %v573 = vld [vmem:[%s1 + $0x118] sm:$0xf]
      %v574 = vld [vmem:[%s1 + $0x11c] sm:$0xf]
      %v575 = vld [vmem:[%s1 + $0x120] sm:$0xf]
      %v576 = vld [vmem:[%s1 + $0x124] sm:$0xf]
      %v577 = vld [vmem:[%s1 + $0x128] sm:$0xf]
      %v578 = vld [vmem:[%s1 + $0x12c] sm:$0xf]
      %v579 = vld [vmem:[%s1 + $0x130] sm:$0xf]
      %v580 = vld [vmem:[%s1 + $0x134] sm:$0xf]
      %v581 = vld [vmem:[%s1 + $0x138] sm:$0xf]
      %v582 = vld [vmem:[%s1 + $0x13c] sm:$0xf]
      %v583 = vld [vmem:[%s1 + $0x140] sm:$0xf]
      %v584 = vld [vmem:[%s1 + $0x144] sm:$0xf]
      %v585 = vld [vmem:[%s1 + $0x148] sm:$0xf]
      %v586 = vld [vmem:[%s1 + $0x14c] sm:$0xf]
      %v587 = vld [vmem:[%s1 + $0x150] sm:$0xf]
      %v588 = vld [vmem:[%s1 + $0x154] sm:$0xf]
      %v589 = vld [vmem:[%s1 + $0x158] sm:$0xf]
      %v590 = vld [vmem:[%s1 + $0x15c] sm:$0xf]
      %v591 = vld [vmem:[%s1 + $0x160] sm:$0xf]
      %v592 = vld [vmem:[%s1 + $0x164] sm:$0xf]
      %v593 = vld [vmem:[%s1 + $0x168] sm:$0xf]
      %v594 = vld [vmem:[%s1 + $0x16c] sm:$0xf]
      %v595 = vld [vmem:[%s1 + $0x170] sm:$0xf]
      %v596 = vld [vmem:[%s1 + $0x174] sm:$0xf]
      %v597 = vld [vmem:[%s1 + $0x178] sm:$0xf]
      %v598 = vld [vmem:[%s1 + $0x17c] sm:$0xf]
      %v599 = vld [vmem:[%s1 + $0x180] sm:$0xf]
      %v600 = vld [vmem:[%s1 + $0x184] sm:$0xf]
      %v601 = vld [vmem:[%s1 + $0x188] sm:$0xf]
      %v602 = vld [vmem:[%s1 + $0x18c] sm:$0xf]
      %v603 = vld [vmem:[%s1 + $0x190] sm:$0xf]
      %v604 = vld [vmem:[%s1 + $0x194] sm:$0xf]
      %v605 = vld [vmem:[%s1 + $0x198] sm:$0xf]
      %v606 = vld [vmem:[%s1 + $0x19c] sm:$0xf]
      %v607 = vld [vmem:[%s1 + $0x1a0] sm:$0xf]
      %v608 = vld [vmem:[%s1 + $0x1a4] sm:$0xf]
      %v609 = vld [vmem:[%s1 + $0x1a8] sm:$0xf]
      %v610 = vld [vmem:[%s1 + $0x1ac] sm:$0xf]
      %v611 = vld [vmem:[%s1 + $0x1b0] sm:$0xf]
      %v612 = vld [vmem:[%s1 + $0x1b4] sm:$0xf]
      %v613 = vld [vmem:[%s1 + $0x1b8] sm:$0xf]
      %v614 = vld [vmem:[%s1 + $0x1bc] sm:$0xf]
      %v615 = vld [vmem:[%s1 + $0x1c0] sm:$0xf]
      %v616 = vld [vmem:[%s1 + $0x1c4] sm:$0xf]
      %v617 = vld [vmem:[%s1 + $0x1c8] sm:$0xf]
      %v618 = vld [vmem:[%s1 + $0x1cc] sm:$0xf]
      %v619 = vld [vmem:[%s1 + $0x1d0] sm:$0xf]
      %v620 = vld [vmem:[%s1 + $0x1d4] sm:$0xf]
      %v621 = vld [vmem:[%s1 + $0x1d8] sm:$0xf]
      %v622 = vld [vmem:[%s1 + $0x1dc] sm:$0xf]
      %v623 = vld [vmem:[%s1 + $0x1e0] sm:$0xf]
      %v624 = vld [vmem:[%s1 + $0x1e4] sm:$0xf]
      %v625 = vld [vmem:[%s1 + $0x1e8] sm:$0xf]
      %v626 = vld [vmem:[%s1 + $0x1ec] sm:$0xf]
      %v627 = vld [vmem:[%s1 + $0x1f0] sm:$0xf]
      %v628 = vld [vmem:[%s1 + $0x1f4] sm:$0xf]
      %v629 = vld [vmem:[%s1 + $0x1f8] sm:$0xf]
      %v630 = vld [vmem:[%s1 + $0x1fc] sm:$0xf]
      %v631 = vld [vmem:[%s1 + $0x200] sm:$0xf]
      %v632 = vld [vmem:[%s1 + $0x204] sm:$0xf]
      %v633 = vld [vmem:[%s1 + $0x208] sm:$0xf]
      %v634 = vld [vmem:[%s1 + $0x20c] sm:$0xf]
      %v635 = vld [vmem:[%s1 + $0x210] sm:$0xf]
      %v636 = vld [vmem:[%s1 + $0x214] sm:$0xf]
      %v637 = vld [vmem:[%s1 + $0x218] sm:$0xf]
      %v638 = vld [vmem:[%s1 + $0x21c] sm:$0xf]
      %v639 = vld [vmem:[%s1 + $0x220] sm:$0xf]
      %v640 = vld [vmem:[%s1 + $0x224] sm:$0xf]
      %v641 = vld [vmem:[%s1 + $0x228] sm:$0xf]
      %v642 = vld [vmem:[%s1 + $0x22c] sm:$0xf]
      %v643 = vld [vmem:[%s1 + $0x230] sm:$0xf]
      %v644 = vld [vmem:[%s1 + $0x234] sm:$0xf]
      %v645 = vld [vmem:[%s1 + $0x238] sm:$0xf]
      %v646 = vld [vmem:[%s1 + $0x23c] sm:$0xf]
      %v791 = vunpack.c.l.b16 %v503
      %v792 = vunpack.c.l.b16 %v504
      %v793 = vunpack.c.l.b16 %v505
      %v794 = vunpack.c.l.b16 %v506
      %v795 = vunpack.c.l.b16 %v507
      %v796 = vunpack.c.l.b16 %v508
      %v797 = vunpack.c.l.b16 %v509
      %v798 = vunpack.c.l.b16 %v510
      %v799 = vunpack.c.l.b16 %v511
      %v800 = vunpack.c.l.b16 %v512
      %v801 = vunpack.c.l.b16 %v513
      %v802 = vunpack.c.l.b16 %v514
      %v803 = vunpack.c.l.b16 %v515
      %v804 = vunpack.c.l.b16 %v516
      %v805 = vunpack.c.l.b16 %v517
      %v806 = vunpack.c.l.b16 %v518
      %v807 = vunpack.c.l.b16 %v519
      %v808 = vunpack.c.l.b16 %v520
      %v809 = vunpack.c.l.b16 %v521
      %v810 = vunpack.c.l.b16 %v522
      %v811 = vunpack.c.l.b16 %v523
      %v812 = vunpack.c.l.b16 %v524
      %v813 = vunpack.c.l.b16 %v525
      %v814 = vunpack.c.l.b16 %v526
      %v815 = vunpack.c.l.b16 %v527
      %v816 = vunpack.c.l.b16 %v528
      %v817 = vunpack.c.l.b16 %v529
      %v818 = vunpack.c.l.b16 %v530
      %v819 = vunpack.c.l.b16 %v531
      %v820 = vunpack.c.l.b16 %v532
      %v821 = vunpack.c.l.b16 %v533
      %v822 = vunpack.c.l.b16 %v534
      %v823 = vunpack.c.l.b16 %v535
      %v824 = vunpack.c.l.b16 %v536
      %v825 = vunpack.c.l.b16 %v537
      %v826 = vunpack.c.l.b16 %v538
      %v827 = vunpack.c.l.b16 %v539
      %v828 = vunpack.c.l.b16 %v540
      %v829 = vunpack.c.l.b16 %v541
      %v830 = vunpack.c.l.b16 %v542
      %v831 = vunpack.c.l.b16 %v543
      %v832 = vunpack.c.l.b16 %v544
      %v833 = vunpack.c.l.b16 %v545
      %v834 = vunpack.c.l.b16 %v546
      %v835 = vunpack.c.l.b16 %v547
      %v836 = vunpack.c.l.b16 %v548
      %v837 = vunpack.c.l.b16 %v549
      %v838 = vunpack.c.l.b16 %v550
      %v839 = vunpack.c.l.b16 %v551
      %v840 = vunpack.c.l.b16 %v552
      %v841 = vunpack.c.l.b16 %v553
      %v842 = vunpack.c.l.b16 %v554
      %v843 = vunpack.c.l.b16 %v555
      %v844 = vunpack.c.l.b16 %v556
      %v845 = vunpack.c.l.b16 %v557
      %v846 = vunpack.c.l.b16 %v558
      %v847 = vunpack.c.l.b16 %v559
      %v848 = vunpack.c.l.b16 %v560
      %v849 = vunpack.c.l.b16 %v561
      %v850 = vunpack.c.l.b16 %v562
      %v851 = vunpack.c.l.b16 %v563
      %v852 = vunpack.c.l.b16 %v564
      %v853 = vunpack.c.l.b16 %v565
      %v854 = vunpack.c.l.b16 %v566
      %v855 = vunpack.c.l.b16 %v567
      %v856 = vunpack.c.l.b16 %v568
      %v857 = vunpack.c.l.b16 %v569
      %v858 = vunpack.c.l.b16 %v570
      %v859 = vunpack.c.l.b16 %v571
      %v860 = vunpack.c.l.b16 %v572
      %v861 = vunpack.c.l.b16 %v573
      %v862 = vunpack.c.l.b16 %v574
      %v863 = vunpack.c.l.b16 %v575
      %v864 = vunpack.c.l.b16 %v576
      %v865 = vunpack.c.l.b16 %v577
      %v866 = vunpack.c.l.b16 %v578
      %v867 = vunpack.c.l.b16 %v579
      %v868 = vunpack.c.l.b16 %v580
      %v869 = vunpack.c.l.b16 %v581
      %v870 = vunpack.c.l.b16 %v582
      %v871 = vunpack.c.l.b16 %v583
      %v872 = vunpack.c.l.b16 %v584
      %v873 = vunpack.c.l.b16 %v585
      %v874 = vunpack.c.l.b16 %v586
      %v875 = vunpack.c.l.b16 %v587
      %v876 = vunpack.c.l.b16 %v588
      %v877 = vunpack.c.l.b16 %v589
      %v878 = vunpack.c.l.b16 %v590
      %v879 = vunpack.c.l.b16 %v591
      %v880 = vunpack.c.l.b16 %v592
      %v881 = vunpack.c.l.b16 %v593
      %v882 = vunpack.c.l.b16 %v594
      %v883 = vunpack.c.l.b16 %v595
      %v884 = vunpack.c.l.b16 %v596
      %v885 = vunpack.c.l.b16 %v597
      %v886 = vunpack.c.l.b16 %v598
      %v887 = vunpack.c.l.b16 %v599
      %v888 = vunpack.c.l.b16 %v600
      %v889 = vunpack.c.l.b16 %v601
      %v890 = vunpack.c.l.b16 %v602
      %v891 = vunpack.c.l.b16 %v603
      %v892 = vunpack.c.l.b16 %v604
      %v893 = vunpack.c.l.b16 %v605
      %v894 = vunpack.c.l.b16 %v606
      %v895 = vunpack.c.l.b16 %v607
      %v896 = vunpack.c.l.b16 %v608
      %v897 = vunpack.c.l.b16 %v609
      %v898 = vunpack.c.l.b16 %v610
      %v899 = vunpack.c.l.b16 %v611
      %v900 = vunpack.c.l.b16 %v612
      %v901 = vunpack.c.l.b16 %v613
      %v902 = vunpack.c.l.b16 %v614
      %v903 = vunpack.c.l.b16 %v615
      %v904 = vunpack.c.l.b16 %v616
      %v905 = vunpack.c.l.b16 %v617
      %v906 = vunpack.c.l.b16 %v618
      %v907 = vunpack.c.l.b16 %v619
      %v908 = vunpack.c.l.b16 %v620
      %v909 = vunpack.c.l.b16 %v621
      %v910 = vunpack.c.l.b16 %v622
      %v911 = vunpack.c.l.b16 %v623
      %v912 = vunpack.c.l.b16 %v624
      %v913 = vunpack.c.l.b16 %v625
      %v914 = vunpack.c.l.b16 %v626
      %v915 = vunpack.c.l.b16 %v627
      %v916 = vunpack.c.l.b16 %v628
      %v917 = vunpack.c.l.b16 %v629
      %v918 = vunpack.c.l.b16 %v630
      %v919 = vunpack.c.l.b16 %v631
      %v920 = vunpack.c.l.b16 %v632
      %v921 = vunpack.c.l.b16 %v633
      %v922 = vunpack.c.l.b16 %v634
      %v923 = vunpack.c.l.b16 %v635
      %v924 = vunpack.c.l.b16 %v636
      %v925 = vunpack.c.l.b16 %v637
      %v926 = vunpack.c.l.b16 %v638
      %v927 = vunpack.c.l.b16 %v639
      %v928 = vunpack.c.l.b16 %v640
      %v929 = vunpack.c.l.b16 %v641
      %v930 = vunpack.c.l.b16 %v642
      %v931 = vunpack.c.l.b16 %v643
      %v932 = vunpack.c.l.b16 %v644
      %v933 = vunpack.c.l.b16 %v645
      %v934 = vunpack.c.l.b16 %v646
      %v935 = vpack.c.b16 %v792, %v791
      %v936 = vpack.c.b16 %v794, %v793
      %v937 = vpack.c.b16 %v796, %v795
      %v938 = vpack.c.b16 %v798, %v797
      %v939 = vpack.c.b16 %v800, %v799
      %v940 = vpack.c.b16 %v802, %v801
      %v941 = vpack.c.b16 %v804, %v803
      %v942 = vpack.c.b16 %v806, %v805
      %v943 = vpack.c.b16 %v808, %v807
      %v944 = vpack.c.b16 %v810, %v809
      %v945 = vpack.c.b16 %v812, %v811
      %v946 = vpack.c.b16 %v814, %v813
      %v947 = vpack.c.b16 %v816, %v815
      %v948 = vpack.c.b16 %v818, %v817
      %v949 = vpack.c.b16 %v820, %v819
      %v950 = vpack.c.b16 %v822, %v821
      %v951 = vpack.c.b16 %v824, %v823
      %v952 = vpack.c.b16 %v826, %v825
      %v953 = vpack.c.b16 %v828, %v827
      %v954 = vpack.c.b16 %v830, %v829
      %v955 = vpack.c.b16 %v832, %v831
      %v956 = vpack.c.b16 %v834, %v833
      %v957 = vpack.c.b16 %v836, %v835
      %v958 = vpack.c.b16 %v838, %v837
      %v959 = vpack.c.b16 %v840, %v839
      %v960 = vpack.c.b16 %v842, %v841
      %v961 = vpack.c.b16 %v844, %v843
      %v962 = vpack.c.b16 %v846, %v845
      %v963 = vpack.c.b16 %v848, %v847
      %v964 = vpack.c.b16 %v850, %v849
      %v965 = vpack.c.b16 %v852, %v851
      %v966 = vpack.c.b16 %v854, %v853
      %v967 = vpack.c.b16 %v856, %v855
      %v968 = vpack.c.b16 %v858, %v857
      %v969 = vpack.c.b16 %v860, %v859
      %v970 = vpack.c.b16 %v862, %v861
      %v971 = vpack.c.b16 %v864, %v863
      %v972 = vpack.c.b16 %v866, %v865
      %v973 = vpack.c.b16 %v868, %v867
      %v974 = vpack.c.b16 %v870, %v869
      %v975 = vpack.c.b16 %v872, %v871
      %v976 = vpack.c.b16 %v874, %v873
      %v977 = vpack.c.b16 %v876, %v875
      %v978 = vpack.c.b16 %v878, %v877
      %v979 = vpack.c.b16 %v880, %v879
      %v980 = vpack.c.b16 %v882, %v881
      %v981 = vpack.c.b16 %v884, %v883
      %v982 = vpack.c.b16 %v886, %v885
      %v983 = vpack.c.b16 %v888, %v887
      %v984 = vpack.c.b16 %v890, %v889
      %v985 = vpack.c.b16 %v892, %v891
      %v986 = vpack.c.b16 %v894, %v893
      %v987 = vpack.c.b16 %v896, %v895
      %v988 = vpack.c.b16 %v898, %v897
      %v989 = vpack.c.b16 %v900, %v899
      %v990 = vpack.c.b16 %v902, %v901
      %v991 = vpack.c.b16 %v904, %v903
      %v992 = vpack.c.b16 %v906, %v905
      %v993 = vpack.c.b16 %v908, %v907
      %v994 = vpack.c.b16 %v910, %v909
      %v995 = vpack.c.b16 %v912, %v911
      %v996 = vpack.c.b16 %v914, %v913
      %v997 = vpack.c.b16 %v916, %v915
      %v998 = vpack.c.b16 %v918, %v917
      %v999 = vpack.c.b16 %v920, %v919
      %v1000 = vpack.c.b16 %v922, %v921
      %v1001 = vpack.c.b16 %v924, %v923
      %v1002 = vpack.c.b16 %v926, %v925
      %v1003 = vpack.c.b16 %v928, %v927
      %v1004 = vpack.c.b16 %v930, %v929
      %v1005 = vpack.c.b16 %v932, %v931
      %v1006 = vpack.c.b16 %v934, %v933
      %1079 = vmatpush.bf16.msra.mxu0 %v942
      %1080 = vmatpush.bf16.msra.mxu0 %v941
      %1081 = vmatpush.bf16.msra.mxu0 %v940
      %1082 = vmatpush.bf16.msra.mxu0 %v939
      %1083 = vmatpush.bf16.msra.mxu0 %v938
      %1084 = vmatpush.bf16.msra.mxu0 %v937
      %1085 = vmatpush.bf16.msra.mxu0 %v936
      %1086 = vmatpush.bf16.msra.mxu0 %v935
      %1087 = vmatmul.bf16.gmra.mxu0 %v273
      %v1088 = vpop.f32.mrf.mxu0
      %v1089 = vadd.f32 0.0, %v1088
      %v1090 = vpop.f32.mrf.mxu0
      %v1091 = vadd.f32 0.0, %v1090
      %1092 = vmatmul.bf16.gmra.mxu0 %v274
      %v1093 = vpop.f32.mrf.mxu0
      %v1094 = vadd.f32 0.0, %v1093
      %v1095 = vpop.f32.mrf.mxu0
      %v1096 = vadd.f32 0.0, %v1095
      %1097 = vmatmul.bf16.gmra.mxu0 %v275
      %v1098 = vpop.f32.mrf.mxu0
      %v1099 = vadd.f32 0.0, %v1098
      %v1100 = vpop.f32.mrf.mxu0
      %v1101 = vadd.f32 0.0, %v1100
      %1102 = vmatmul.bf16.gmra.mxu0 %v276
      %v1103 = vpop.f32.mrf.mxu0
      %v1104 = vadd.f32 0.0, %v1103
      %v1105 = vpop.f32.mrf.mxu0
      %v1106 = vadd.f32 0.0, %v1105
      %1107 = vmatmul.bf16.gmra.mxu0 %v277
      %v1108 = vpop.f32.mrf.mxu0
      %v1109 = vadd.f32 0.0, %v1108
      %v1110 = vpop.f32.mrf.mxu0
      %v1111 = vadd.f32 0.0, %v1110
      %1112 = vmatmul.bf16.gmra.mxu0 %v278
      %v1113 = vpop.f32.mrf.mxu0
      %v1114 = vadd.f32 0.0, %v1113
      %v1115 = vpop.f32.mrf.mxu0
      %v1116 = vadd.f32 0.0, %v1115
      %1117 = vmatmul.bf16.gmra.mxu0 %v279
      %v1118 = vpop.f32.mrf.mxu0
      %v1119 = vadd.f32 0.0, %v1118
      %v1120 = vpop.f32.mrf.mxu0
      %v1121 = vadd.f32 0.0, %v1120
      %1122 = vmatmul.bf16.gmra.mxu0 %v280
      %v1123 = vpop.f32.mrf.mxu0
      %v1124 = vadd.f32 0.0, %v1123
      %v1125 = vpop.f32.mrf.mxu0
      %v1126 = vadd.f32 0.0, %v1125
      %1127 = vdwg.mxu0
      %1128 = vmatpush.bf16.msra.mxu0 %v950
      %1129 = vmatpush.bf16.msra.mxu0 %v949
      %1130 = vmatpush.bf16.msra.mxu0 %v948
      %1131 = vmatpush.bf16.msra.mxu0 %v947
      %1132 = vmatpush.bf16.msra.mxu0 %v946
      %1133 = vmatpush.bf16.msra.mxu0 %v945
      %1134 = vmatpush.bf16.msra.mxu0 %v944
      %1135 = vmatpush.bf16.msra.mxu0 %v943
      %1136 = vmatmul.bf16.gmra.mxu0 %v325
      %v1137 = vpop.f32.mrf.mxu0
      %v1138 = vadd.f32 %v1089, %v1137
      %v1139 = vpop.f32.mrf.mxu0
      %v1140 = vadd.f32 %v1091, %v1139
      %1141 = vmatmul.bf16.gmra.mxu0 %v337
      %v1142 = vpop.f32.mrf.mxu0
      %v1143 = vadd.f32 %v1094, %v1142
      %v1144 = vpop.f32.mrf.mxu0
      %v1145 = vadd.f32 %v1096, %v1144
      %1146 = vmatmul.bf16.gmra.mxu0 %v349
      %v1147 = vpop.f32.mrf.mxu0
      %v1148 = vadd.f32 %v1099, %v1147
      %v1149 = vpop.f32.mrf.mxu0
      %v1150 = vadd.f32 %v1101, %v1149
      %1151 = vmatmul.bf16.gmra.mxu0 %v361
      %v1152 = vpop.f32.mrf.mxu0
      %v1153 = vadd.f32 %v1104, %v1152
      %v1154 = vpop.f32.mrf.mxu0
      %v1155 = vadd.f32 %v1106, %v1154
      %1156 = vmatmul.bf16.gmra.mxu0 %v373
      %v1157 = vpop.f32.mrf.mxu0
      %v1158 = vadd.f32 %v1109, %v1157
      %v1159 = vpop.f32.mrf.mxu0
      %v1160 = vadd.f32 %v1111, %v1159
      %1161 = vmatmul.bf16.gmra.mxu0 %v385
      %v1162 = vpop.f32.mrf.mxu0
      %v1163 = vadd.f32 %v1114, %v1162
      %v1164 = vpop.f32.mrf.mxu0
      %v1165 = vadd.f32 %v1116, %v1164
      %1166 = vmatmul.bf16.gmra.mxu0 %v397
      %v1167 = vpop.f32.mrf.mxu0
      %v1168 = vadd.f32 %v1119, %v1167
      %v1169 = vpop.f32.mrf.mxu0
      %v1170 = vadd.f32 %v1121, %v1169
      %1171 = vmatmul.bf16.gmra.mxu0 %v409
      %v1172 = vpop.f32.mrf.mxu0
      %v1173 = vadd.f32 %v1124, %v1172
      %v1174 = vpop.f32.mrf.mxu0
      %v1175 = vadd.f32 %v1126, %v1174
      %1176 = vdwg.mxu0
      %1177 = vmatpush.bf16.msra.mxu0 %v958
      %1178 = vmatpush.bf16.msra.mxu0 %v957
      %1179 = vmatpush.bf16.msra.mxu0 %v956
      %1180 = vmatpush.bf16.msra.mxu0 %v955
      %1181 = vmatpush.bf16.msra.mxu0 %v954
      %1182 = vmatpush.bf16.msra.mxu0 %v953
      %1183 = vmatpush.bf16.msra.mxu0 %v952
      %1184 = vmatpush.bf16.msra.mxu0 %v951
      %1185 = vmatmul.bf16.gmra.mxu0 %v421
      %v1186 = vpop.f32.mrf.mxu0
      %v1187 = vadd.f32 %v1138, %v1186
      %v1188 = vpop.f32.mrf.mxu0
      %v1189 = vadd.f32 %v1140, %v1188
      %1190 = vmatmul.bf16.gmra.mxu0 %v424
      %v1191 = vpop.f32.mrf.mxu0
      %v1192 = vadd.f32 %v1143, %v1191
      %v1193 = vpop.f32.mrf.mxu0
      %v1194 = vadd.f32 %v1145, %v1193
      %1195 = vmatmul.bf16.gmra.mxu0 %v427
      %v1196 = vpop.f32.mrf.mxu0
      %v1197 = vadd.f32 %v1148, %v1196
      %v1198 = vpop.f32.mrf.mxu0
      %v1199 = vadd.f32 %v1150, %v1198
      %1200 = vmatmul.bf16.gmra.mxu0 %v430
      %v1201 = vpop.f32.mrf.mxu0
      %v1202 = vadd.f32 %v1153, %v1201
      %v1203 = vpop.f32.mrf.mxu0
      %v1204 = vadd.f32 %v1155, %v1203
      %1205 = vmatmul.bf16.gmra.mxu0 %v433
      %v1206 = vpop.f32.mrf.mxu0
      %v1207 = vadd.f32 %v1158, %v1206
      %v1208 = vpop.f32.mrf.mxu0
      %v1209 = vadd.f32 %v1160, %v1208
      %1210 = vmatmul.bf16.gmra.mxu0 %v436
      %v1211 = vpop.f32.mrf.mxu0
      %v1212 = vadd.f32 %v1163, %v1211
      %v1213 = vpop.f32.mrf.mxu0
      %v1214 = vadd.f32 %v1165, %v1213
      %1215 = vmatmul.bf16.gmra.mxu0 %v439
      %v1216 = vpop.f32.mrf.mxu0
      %v1217 = vadd.f32 %v1168, %v1216
      %v1218 = vpop.f32.mrf.mxu0
      %v1219 = vadd.f32 %v1170, %v1218
      %1220 = vmatmul.bf16.gmra.mxu0 %v442
      %v1221 = vpop.f32.mrf.mxu0
      %v1222 = vadd.f32 %v1173, %v1221
      %v1223 = vpop.f32.mrf.mxu0
      %v1224 = vadd.f32 %v1175, %v1223
      %1225 = vdwg.mxu0
      %1226 = vmatpush.bf16.msra.mxu0 %v966
      %1227 = vmatpush.bf16.msra.mxu0 %v965
      %1228 = vmatpush.bf16.msra.mxu0 %v964
      %1229 = vmatpush.bf16.msra.mxu0 %v963
      %1230 = vmatpush.bf16.msra.mxu0 %v962
      %1231 = vmatpush.bf16.msra.mxu0 %v961
      %1232 = vmatpush.bf16.msra.mxu0 %v960
      %1233 = vmatpush.bf16.msra.mxu0 %v959
      %1234 = vmatmul.bf16.gmra.mxu0 %v274
      %v1235 = vpop.f32.mrf.mxu0
      %v1236 = vadd.f32 %v1187, %v1235
      %v1237 = vpop.f32.mrf.mxu0
      %v1238 = vadd.f32 %v1189, %v1237
      %1239 = vmatmul.bf16.gmra.mxu0 %v275
      %v1240 = vpop.f32.mrf.mxu0
      %v1241 = vadd.f32 %v1192, %v1240
      %v1242 = vpop.f32.mrf.mxu0
      %v1243 = vadd.f32 %v1194, %v1242
      %1244 = vmatmul.bf16.gmra.mxu0 %v276
      %v1245 = vpop.f32.mrf.mxu0
      %v1246 = vadd.f32 %v1197, %v1245
      %v1247 = vpop.f32.mrf.mxu0
      %v1248 = vadd.f32 %v1199, %v1247
      %1249 = vmatmul.bf16.gmra.mxu0 %v277
      %v1250 = vpop.f32.mrf.mxu0
      %v1251 = vadd.f32 %v1202, %v1250
      %v1252 = vpop.f32.mrf.mxu0
      %v1253 = vadd.f32 %v1204, %v1252
      %1254 = vmatmul.bf16.gmra.mxu0 %v278
      %v1255 = vpop.f32.mrf.mxu0
      %v1256 = vadd.f32 %v1207, %v1255
      %v1257 = vpop.f32.mrf.mxu0
      %v1258 = vadd.f32 %v1209, %v1257
      %1259 = vmatmul.bf16.gmra.mxu0 %v279
      %v1260 = vpop.f32.mrf.mxu0
      %v1261 = vadd.f32 %v1212, %v1260
      %v1262 = vpop.f32.mrf.mxu0
      %v1263 = vadd.f32 %v1214, %v1262
      %1264 = vmatmul.bf16.gmra.mxu0 %v280
      %v1265 = vpop.f32.mrf.mxu0
      %v1266 = vadd.f32 %v1217, %v1265
      %v1267 = vpop.f32.mrf.mxu0
      %v1268 = vadd.f32 %v1219, %v1267
      %1269 = vmatmul.bf16.gmra.mxu0 %v455
      %v1270 = vpop.f32.mrf.mxu0
      %v1271 = vadd.f32 %v1222, %v1270
      %v1272 = vpop.f32.mrf.mxu0
      %v1273 = vadd.f32 %v1224, %v1272
      %1274 = vdwg.mxu0
      %1275 = vmatpush.bf16.msra.mxu0 %v974
      %1276 = vmatpush.bf16.msra.mxu0 %v973
      %1277 = vmatpush.bf16.msra.mxu0 %v972
      %1278 = vmatpush.bf16.msra.mxu0 %v971
      %1279 = vmatpush.bf16.msra.mxu0 %v970
      %1280 = vmatpush.bf16.msra.mxu0 %v969
      %1281 = vmatpush.bf16.msra.mxu0 %v968
      %1282 = vmatpush.bf16.msra.mxu0 %v967
      %1283 = vmatmul.bf16.gmra.mxu0 %v337
      %v1284 = vpop.f32.mrf.mxu0
      %v1285 = vadd.f32 %v1236, %v1284
      %v1286 = vpop.f32.mrf.mxu0
      %v1287 = vadd.f32 %v1238, %v1286
      %1288 = vmatmul.bf16.gmra.mxu0 %v349
      %v1289 = vpop.f32.mrf.mxu0
      %v1290 = vadd.f32 %v1241, %v1289
      %v1291 = vpop.f32.mrf.mxu0
      %v1292 = vadd.f32 %v1243, %v1291
      %1293 = vmatmul.bf16.gmra.mxu0 %v361
      %v1294 = vpop.f32.mrf.mxu0
      %v1295 = vadd.f32 %v1246, %v1294
      %v1296 = vpop.f32.mrf.mxu0
      %v1297 = vadd.f32 %v1248, %v1296
      %1298 = vmatmul.bf16.gmra.mxu0 %v373
      %v1299 = vpop.f32.mrf.mxu0
      %v1300 = vadd.f32 %v1251, %v1299
      %v1301 = vpop.f32.mrf.mxu0
      %v1302 = vadd.f32 %v1253, %v1301
      %1303 = vmatmul.bf16.gmra.mxu0 %v385
      %v1304 = vpop.f32.mrf.mxu0
      %v1305 = vadd.f32 %v1256, %v1304
      %v1306 = vpop.f32.mrf.mxu0
      %v1307 = vadd.f32 %v1258, %v1306
      %1308 = vmatmul.bf16.gmra.mxu0 %v397
      %v1309 = vpop.f32.mrf.mxu0
      %v1310 = vadd.f32 %v1261, %v1309
      %v1311 = vpop.f32.mrf.mxu0
      %v1312 = vadd.f32 %v1263, %v1311
      %1313 = vmatmul.bf16.gmra.mxu0 %v409
      %v1314 = vpop.f32.mrf.mxu0
      %v1315 = vadd.f32 %v1266, %v1314
      %v1316 = vpop.f32.mrf.mxu0
      %v1317 = vadd.f32 %v1268, %v1316
      %1318 = vmatmul.bf16.gmra.mxu0 %v471
      %v1319 = vpop.f32.mrf.mxu0
      %v1320 = vadd.f32 %v1271, %v1319
      %v1321 = vpop.f32.mrf.mxu0
      %v1322 = vadd.f32 %v1273, %v1321
      %1323 = vdwg.mxu0
      %1324 = vmatpush.bf16.msra.mxu0 %v982
      %1325 = vmatpush.bf16.msra.mxu0 %v981
      %1326 = vmatpush.bf16.msra.mxu0 %v980
      %1327 = vmatpush.bf16.msra.mxu0 %v979
      %1328 = vmatpush.bf16.msra.mxu0 %v978
      %1329 = vmatpush.bf16.msra.mxu0 %v977
      %1330 = vmatpush.bf16.msra.mxu0 %v976
      %1331 = vmatpush.bf16.msra.mxu0 %v975
      %1332 = vmatmul.bf16.gmra.mxu0 %v424
      %v1333 = vpop.f32.mrf.mxu0
      %v1334 = vadd.f32 %v1285, %v1333
      %v1335 = vpop.f32.mrf.mxu0
      %v1336 = vadd.f32 %v1287, %v1335
      %1337 = vmatmul.bf16.gmra.mxu0 %v427
      %v1338 = vpop.f32.mrf.mxu0
      %v1339 = vadd.f32 %v1290, %v1338
      %v1340 = vpop.f32.mrf.mxu0
      %v1341 = vadd.f32 %v1292, %v1340
      %1342 = vmatmul.bf16.gmra.mxu0 %v430
      %v1343 = vpop.f32.mrf.mxu0
      %v1344 = vadd.f32 %v1295, %v1343
      %v1345 = vpop.f32.mrf.mxu0
      %v1346 = vadd.f32 %v1297, %v1345
      %1347 = vmatmul.bf16.gmra.mxu0 %v433
      %v1348 = vpop.f32.mrf.mxu0
      %v1349 = vadd.f32 %v1300, %v1348
      %v1350 = vpop.f32.mrf.mxu0
      %v1351 = vadd.f32 %v1302, %v1350
      %1352 = vmatmul.bf16.gmra.mxu0 %v436
      %v1353 = vpop.f32.mrf.mxu0
      %v1354 = vadd.f32 %v1305, %v1353
      %v1355 = vpop.f32.mrf.mxu0
      %v1356 = vadd.f32 %v1307, %v1355
      %1357 = vmatmul.bf16.gmra.mxu0 %v439
      %v1358 = vpop.f32.mrf.mxu0
      %v1359 = vadd.f32 %v1310, %v1358
      %v1360 = vpop.f32.mrf.mxu0
      %v1361 = vadd.f32 %v1312, %v1360
      %1362 = vmatmul.bf16.gmra.mxu0 %v442
      %v1363 = vpop.f32.mrf.mxu0
      %v1364 = vadd.f32 %v1315, %v1363
      %v1365 = vpop.f32.mrf.mxu0
      %v1366 = vadd.f32 %v1317, %v1365
      %1367 = vmatmul.bf16.gmra.mxu0 %v475
      %v1368 = vpop.f32.mrf.mxu0
      %v1369 = vadd.f32 %v1320, %v1368
      %v1370 = vpop.f32.mrf.mxu0
      %v1371 = vadd.f32 %v1322, %v1370
      %1372 = vdwg.mxu0
      %1373 = vmatpush.bf16.msra.mxu0 %v990
      %1374 = vmatpush.bf16.msra.mxu0 %v989
      %1375 = vmatpush.bf16.msra.mxu0 %v988
      %1376 = vmatpush.bf16.msra.mxu0 %v987
      %1377 = vmatpush.bf16.msra.mxu0 %v986
      %1378 = vmatpush.bf16.msra.mxu0 %v985
      %1379 = vmatpush.bf16.msra.mxu0 %v984
      %1380 = vmatpush.bf16.msra.mxu0 %v983
      %1381 = vmatmul.bf16.gmra.mxu0 %v275
      %v1382 = vpop.f32.mrf.mxu0
      %v1383 = vadd.f32 %v1334, %v1382
      %v1384 = vpop.f32.mrf.mxu0
      %v1385 = vadd.f32 %v1336, %v1384
      %1386 = vmatmul.bf16.gmra.mxu0 %v276
      %v1387 = vpop.f32.mrf.mxu0
      %v1388 = vadd.f32 %v1339, %v1387
      %v1389 = vpop.f32.mrf.mxu0
      %v1390 = vadd.f32 %v1341, %v1389
      %1391 = vmatmul.bf16.gmra.mxu0 %v277
      %v1392 = vpop.f32.mrf.mxu0
      %v1393 = vadd.f32 %v1344, %v1392
      %v1394 = vpop.f32.mrf.mxu0
      %v1395 = vadd.f32 %v1346, %v1394
      %1396 = vmatmul.bf16.gmra.mxu0 %v278
      %v1397 = vpop.f32.mrf.mxu0
      %v1398 = vadd.f32 %v1349, %v1397
      %v1399 = vpop.f32.mrf.mxu0
      %v1400 = vadd.f32 %v1351, %v1399
      %1401 = vmatmul.bf16.gmra.mxu0 %v279
      %v1402 = vpop.f32.mrf.mxu0
      %v1403 = vadd.f32 %v1354, %v1402
      %v1404 = vpop.f32.mrf.mxu0
      %v1405 = vadd.f32 %v1356, %v1404
      %1406 = vmatmul.bf16.gmra.mxu0 %v280
      %v1407 = vpop.f32.mrf.mxu0
      %v1408 = vadd.f32 %v1359, %v1407
      %v1409 = vpop.f32.mrf.mxu0
      %v1410 = vadd.f32 %v1361, %v1409
      %1411 = vmatmul.bf16.gmra.mxu0 %v455
      %v1412 = vpop.f32.mrf.mxu0
      %v1413 = vadd.f32 %v1364, %v1412
      %v1414 = vpop.f32.mrf.mxu0
      %v1415 = vadd.f32 %v1366, %v1414
      %1416 = vmatmul.bf16.gmra.mxu0 %v481
      %v1417 = vpop.f32.mrf.mxu0
      %v1418 = vadd.f32 %v1369, %v1417
      %v1419 = vpop.f32.mrf.mxu0
      %v1420 = vadd.f32 %v1371, %v1419
      %1421 = vdwg.mxu0
      %1422 = vmatpush.bf16.msra.mxu0 %v998
      %1423 = vmatpush.bf16.msra.mxu0 %v997
      %1424 = vmatpush.bf16.msra.mxu0 %v996
      %1425 = vmatpush.bf16.msra.mxu0 %v995
      %1426 = vmatpush.bf16.msra.mxu0 %v994
      %1427 = vmatpush.bf16.msra.mxu0 %v993
      %1428 = vmatpush.bf16.msra.mxu0 %v992
      %1429 = vmatpush.bf16.msra.mxu0 %v991
      %1430 = vmatmul.bf16.gmra.mxu0 %v349
      %v1431 = vpop.f32.mrf.mxu0
      %v1432 = vadd.f32 %v1383, %v1431
      %v1433 = vpop.f32.mrf.mxu0
      %v1434 = vadd.f32 %v1385, %v1433
      %1435 = vmatmul.bf16.gmra.mxu0 %v361
      %v1436 = vpop.f32.mrf.mxu0
      %v1437 = vadd.f32 %v1388, %v1436
      %v1438 = vpop.f32.mrf.mxu0
      %v1439 = vadd.f32 %v1390, %v1438
      %1440 = vmatmul.bf16.gmra.mxu0 %v373
      %v1441 = vpop.f32.mrf.mxu0
      %v1442 = vadd.f32 %v1393, %v1441
      %v1443 = vpop.f32.mrf.mxu0
      %v1444 = vadd.f32 %v1395, %v1443
      %1445 = vmatmul.bf16.gmra.mxu0 %v385
      %v1446 = vpop.f32.mrf.mxu0
      %v1447 = vadd.f32 %v1398, %v1446
      %v1448 = vpop.f32.mrf.mxu0
      %v1449 = vadd.f32 %v1400, %v1448
      %1450 = vmatmul.bf16.gmra.mxu0 %v397
      %v1451 = vpop.f32.mrf.mxu0
      %v1452 = vadd.f32 %v1403, %v1451
      %v1453 = vpop.f32.mrf.mxu0
      %v1454 = vadd.f32 %v1405, %v1453
      %1455 = vmatmul.bf16.gmra.mxu0 %v409
      %v1456 = vpop.f32.mrf.mxu0
      %v1457 = vadd.f32 %v1408, %v1456
      %v1458 = vpop.f32.mrf.mxu0
      %v1459 = vadd.f32 %v1410, %v1458
      %1460 = vmatmul.bf16.gmra.mxu0 %v471
      %v1461 = vpop.f32.mrf.mxu0
      %v1462 = vadd.f32 %v1413, %v1461
      %v1463 = vpop.f32.mrf.mxu0
      %v1464 = vadd.f32 %v1415, %v1463
      %1465 = vmatmul.bf16.gmra.mxu0 %v497
      %v1466 = vpop.f32.mrf.mxu0
      %v1467 = vadd.f32 %v1418, %v1466
      %v1468 = vpop.f32.mrf.mxu0
      %v1469 = vadd.f32 %v1420, %v1468
      %1470 = vdwg.mxu0
      %1471 = vmatpush.bf16.msra.mxu0 %v1006
      %1472 = vmatpush.bf16.msra.mxu0 %v1005
      %1473 = vmatpush.bf16.msra.mxu0 %v1004
      %1474 = vmatpush.bf16.msra.mxu0 %v1003
      %1475 = vmatpush.bf16.msra.mxu0 %v1002
      %1476 = vmatpush.bf16.msra.mxu0 %v1001
      %1477 = vmatpush.bf16.msra.mxu0 %v1000
      %1478 = vmatpush.bf16.msra.mxu0 %v999
      %1479 = vmatmul.bf16.gmra.mxu0 %v427
      %v1480 = vpop.f32.mrf.mxu0
      %v1481 = vadd.f32 %v1432, %v1480
      %v1482 = vpop.f32.mrf.mxu0
      %v1483 = vadd.f32 %v1434, %v1482
      %1484 = vmatmul.bf16.gmra.mxu0 %v430
      %v1485 = vpop.f32.mrf.mxu0
      %v1486 = vadd.f32 %v1437, %v1485
      %v1487 = vpop.f32.mrf.mxu0
      %v1488 = vadd.f32 %v1439, %v1487
      %1489 = vmatmul.bf16.gmra.mxu0 %v433
      %v1490 = vpop.f32.mrf.mxu0
      %v1491 = vadd.f32 %v1442, %v1490
      %v1492 = vpop.f32.mrf.mxu0
      %v1493 = vadd.f32 %v1444, %v1492
      %1494 = vmatmul.bf16.gmra.mxu0 %v436
      %v1495 = vpop.f32.mrf.mxu0
      %v1496 = vadd.f32 %v1447, %v1495
      %v1497 = vpop.f32.mrf.mxu0
      %v1498 = vadd.f32 %v1449, %v1497
      %1499 = vmatmul.bf16.gmra.mxu0 %v439
      %v1500 = vpop.f32.mrf.mxu0
      %v1501 = vadd.f32 %v1452, %v1500
      %v1502 = vpop.f32.mrf.mxu0
      %v1503 = vadd.f32 %v1454, %v1502
      %1504 = vmatmul.bf16.gmra.mxu0 %v442
      %v1505 = vpop.f32.mrf.mxu0
      %v1506 = vadd.f32 %v1457, %v1505
      %v1507 = vpop.f32.mrf.mxu0
      %v1508 = vadd.f32 %v1459, %v1507
      %1509 = vmatmul.bf16.gmra.mxu0 %v475
      %v1510 = vpop.f32.mrf.mxu0
      %v1511 = vadd.f32 %v1462, %v1510
      %v1512 = vpop.f32.mrf.mxu0
      %v1513 = vadd.f32 %v1464, %v1512
      %1514 = vmatmul.bf16.gmra.mxu0 %v501
      %v1515 = vpop.f32.mrf.mxu0
      %v1516 = vadd.f32 %v1467, %v1515
      %v1517 = vpop.f32.mrf.mxu0
      %v1518 = vadd.f32 %v1469, %v1517
      %1519 = vdwg.mxu0
      %1520 = vst [vmem:[%s201] sm:$0xff] %v1481
      %1521 = vst [vmem:[%s201 + $0x8] sm:$0xff] %v1483
      %1522 = vst [vmem:[%s201 + $0x10] sm:$0xff] %v1486
      %1523 = vst [vmem:[%s201 + $0x18] sm:$0xff] %v1488
      %1524 = vst [vmem:[%s201 + $0x20] sm:$0xff] %v1491
      %1525 = vst [vmem:[%s201 + $0x28] sm:$0xff] %v1493
      %1526 = vst [vmem:[%s201 + $0x30] sm:$0xff] %v1496
      %1527 = vst [vmem:[%s201 + $0x38] sm:$0xff] %v1498
      %1528 = vst [vmem:[%s201 + $0x40] sm:$0xff] %v1501
      %1529 = vst [vmem:[%s201 + $0x48] sm:$0xff] %v1503
      %1530 = vst [vmem:[%s201 + $0x50] sm:$0xff] %v1506
      %1531 = vst [vmem:[%s201 + $0x58] sm:$0xff] %v1508
      %1532 = vst [vmem:[%s201 + $0x60] sm:$0xff] %v1511
      %1533 = vst [vmem:[%s201 + $0x68] sm:$0xff] %v1513
      %1534 = vst [vmem:[%s201 + $0x70] sm:$0xff] %v1516
      %1535 = vst [vmem:[%s201 + $0x78] sm:$0xff] %v1518
      %v1536 = vadd.f32 %v1481, %v1483
      %v1537 = vadd.f32 %v1536, %v1486
      %v1538 = vadd.f32 %v1537, %v1488
      %v1539 = vadd.f32 %v1538, %v1491
      %v1540 = vadd.f32 %v1539, %v1493
      %v1541 = vadd.f32 %v1540, %v1496
      %v1542 = vadd.f32 %v1541, %v1498
      %v1543 = vadd.f32 %v1542, %v1501
      %v1544 = vadd.f32 %v1543, %v1503
      %v1545 = vadd.f32 %v1544, %v1506
      %v1546 = vadd.f32 %v1545, %v1508
      %v1547 = vadd.f32 %v1546, %v1511
      %v1548 = vadd.f32 %v1547, %v1513
      %v1549 = vadd.f32 %v1548, %v1516
      %v1550 = vadd.f32 %v1549, %v1518
      %v1551 = vrot.slane %v1550, 4
      %v1552 = vadd.f32 %v1550, %v1551
      %v1553 = vrot.slane %v1552, 2
      %v1554 = vadd.f32 %v1552, %v1553
      %v1555 = vrot.slane %v1554, 1
      %v1556 = vadd.f32 %v1554, %v1555
      %v1557 = vmul.f32 %v1481, %v1481
      %v1558 = vmul.f32 %v1483, %v1483
      %v1559 = vmul.f32 %v1486, %v1486
      %v1560 = vmul.f32 %v1488, %v1488
      %v1561 = vmul.f32 %v1491, %v1491
      %v1562 = vmul.f32 %v1493, %v1493
      %v1563 = vmul.f32 %v1496, %v1496
      %v1564 = vmul.f32 %v1498, %v1498
      %v1565 = vmul.f32 %v1501, %v1501
      %v1566 = vmul.f32 %v1503, %v1503
      %v1567 = vmul.f32 %v1506, %v1506
      %v1568 = vmul.f32 %v1508, %v1508
      %v1569 = vmul.f32 %v1511, %v1511
      %v1570 = vmul.f32 %v1513, %v1513
      %v1571 = vmul.f32 %v1516, %v1516
      %v1572 = vmul.f32 %v1518, %v1518
      %v1573 = vadd.f32 %v1557, %v1558
      %v1574 = vadd.f32 %v1573, %v1559
      %v1575 = vadd.f32 %v1574, %v1560
      %v1576 = vadd.f32 %v1575, %v1561
      %v1577 = vadd.f32 %v1576, %v1562
      %v1578 = vadd.f32 %v1577, %v1563
      %v1579 = vadd.f32 %v1578, %v1564
      %v1580 = vadd.f32 %v1579, %v1565
      %v1581 = vadd.f32 %v1580, %v1566
      %v1582 = vadd.f32 %v1581, %v1567
      %v1583 = vadd.f32 %v1582, %v1568
      %v1584 = vadd.f32 %v1583, %v1569
      %v1585 = vadd.f32 %v1584, %v1570
      %v1586 = vadd.f32 %v1585, %v1571
      %v1587 = vadd.f32 %v1586, %v1572
      %v1588 = vrot.slane %v1587, 4
      %v1589 = vadd.f32 %v1587, %v1588
      %v1590 = vrot.slane %v1589, 2
      %v1591 = vadd.f32 %v1589, %v1590
      %v1592 = vrot.slane %v1591, 1
      %v1593 = vadd.f32 %v1591, %v1592
      %vm1594 = vcmask 1040384
      %v1595 = vsel %vm1594, %v1556, %v1593
      %p1596 = scmp.eq.s32.totalorder %s20, 0
      // Predicated region
      $region29: #{double_conv.6} parent=27 // pred_check
        %p1597 = pneg %p1596
      $region30: #{double_conv.6} parent=27 // pred_check_branch
        %1599 = sbr.rel (%p1597) target = $region32
      $region31: #{double_conv.6} parent=27 // pred_region
        %1600 = vst [vmem:[%s206] sm:$0x3] %v1595
      $region32: #{double_conv.6} parent=27 // pred_fallthru
        _
      %p1601 = scmp.gt.s32.totalorder %s20, 0
      // Predicated region
      $region33: #{double_conv.6} parent=27 // pred_check
        %p1602 = pneg %p1601
      $region34: #{double_conv.6} parent=27 // pred_check_branch
        %1604 = sbr.rel (%p1602) target = $region36
      $region35: #{double_conv.6} parent=27 // pred_region
        %v1605 = vld [vmem:[%s206] sm:$0x3]
        %v1606 = vadd.f32 %v1605, %v1595
        %1607 = vst [vmem:[%s206] sm:$0x3] %v1606
      $region36: #{double_conv.6} parent=27 // pred_fallthru
        _
      %s1608 = smul.u32 8, %s20
      %p1609 = scmp.lt.s32.totalorder %s19, 1
      %s1610 = scalar_select %p1609, %s19, 1
      %p1611 = scmp.lt.s32.totalorder %s1608, 15
      %s1612 = scalar_select %p1611, %s1608, 15
      %s1613 = smul.addr %s1612, 2
      %s1614 = smul.addr %s1610, 32
      %s1615 = sadd.s32 %s1613, %s1614
      %s1616 = smul.addr %s1615, 8
      %s1617 = scalar_lea.vmem %s2, %s1616
      %p1618 = scmp.lt.s32.totalorder %s19, 1
      %s1619 = scalar_select %p1618, %s19, 1
      %s1620 = smul.addr %s1619, 2
      %s1621 = scalar_lea.vmem %s3, %s1620
      // Predicated region
      $region37: #{double_conv.6} parent=27 // pred_check
        %p1622 = pneg %p94
      $region38: #{double_conv.6} parent=27 // pred_check_branch
        %1624 = sbr.rel (%p1622) target = $region40
      $region39: #{double_conv.6} parent=27 // pred_region
        %s1625 = smul.u32 8, %s20
      $region40: #{double_conv.6} parent=27 // pred_fallthru
        _
      // Predicated region
      $region41: #{double_conv.6} parent=27 // pred_check
        %p1626 = pneg %p120
      $region42: #{double_conv.6} parent=27 // pred_check_branch
        %1628 = sbr.rel (%p1626) target = $region44
      $region43: #{double_conv.6} parent=27 // pred_region
        _
      $region44: #{double_conv.6} parent=27 // pred_fallthru
        _
    $region28: #{double_conv.6} parent=5 // pred_fallthru
      _
    %p1629 = scmp.le.s32.totalorder 2, %s10
    // Predicated region
    $region45: #{double_conv.6} parent=5 // pred_check
      %p1630 = pneg %p1629
    $region46: #{double_conv.6} parent=5 // pred_check_branch
      %1632 = sbr.rel (%p1630) target = $region48
    $region47: #{double_conv.6} parent=5 // pred_region
      %s1633 = ssub.s32 %s10, 2
      // Predicated region
      $region49: #{double_conv.6} parent=47 // pred_check
        %p1634 = pneg %p100
      $region50: #{double_conv.6} parent=47 // pred_check_branch
        %1636 = sbr.rel (%p1634) target = $region52
      $region51: #{double_conv.6} parent=47 // pred_region
        %s1637 = smul.u32 8, %s22
        %p1638 = scmp.lt.s32.totalorder %s21, 1
        %s1639 = scalar_select %p1638, %s21, 1
        %p1640 = scmp.lt.s32.totalorder %s1637, 15
        %s1641 = scalar_select %p1640, %s1637, 15
        %s1642 = smul.addr %s1641, 2
        %s1643 = smul.addr %s1639, 32
        %s1644 = sadd.s32 %s1642, %s1643
        %s1645 = smul.addr %s1644, 8
        %s1646 = scalar_lea.vmem %s2, %s1645
      $region52: #{double_conv.6} parent=47 // pred_fallthru
        _
      // Predicated region
      $region53: #{double_conv.6} parent=47 // pred_check
        %p1647 = pneg %p126
      $region54: #{double_conv.6} parent=47 // pred_check_branch
        %1649 = sbr.rel (%p1647) target = $region56
      $region55: #{double_conv.6} parent=47 // pred_region
        %p1650 = scmp.lt.s32.totalorder %s21, 1
        %s1651 = scalar_select %p1650, %s21, 1
        %s1652 = smul.addr %s1651, 2
        %s1653 = scalar_lea.vmem %s3, %s1652
      $region56: #{double_conv.6} parent=47 // pred_fallthru
        _
    $region48: #{double_conv.6} parent=5 // pred_fallthru
      _
  $region6: #{double_conv.6} parent=0 // loop_footer
    %s14 = sadd.s32 1, %s10
  $region7: #{double_conv.6} parent=0 // loop_footer_branch
    %9 = sbr.rel target = $region3
  $region8: #{double_conv.6} parent=0 // loop_exit
    _

</llo_original>
